<compile_context>
chip_gen: v5e
topology: v5e:2x2
jax: 0.10.0
libtpu: 0.0.40
codegen_flags: <defaults>
</compile_context>

<pallas_src>
import math

import jax
import jax.numpy as jnp
from jax.experimental import pallas as pl
from jax.experimental.pallas import tpu as pltpu


def _make_transformer_kernel(num_layers, B, T, H, num_heads, num_classes, eps=1e-5):
    hd = H // num_heads
    scale = 1.0 / math.sqrt(hd)

    def layer_norm(x, gamma, beta):
        mu = jnp.mean(x, axis=-1, keepdims=True)
        xc = x - mu
        var = jnp.mean(xc * xc, axis=-1, keepdims=True)
        inv = jax.lax.rsqrt(var + eps)
        return xc * inv * gamma + beta

    def kernel(*refs):
        # refs layout:
        #  [0]                 x        (B*T, D_in)
        #  [1], [2]            embed W^T (D_in, H), embed bias (1, H)
        #  [3 .. 3+12L)        per-layer: Win^T(H,3H), b_in(1,3H), Wout^T(H,H),
        #                      b_out(1,H), W1^T(H,FF), b1(1,FF), W2^T(FF,H),
        #                      b2(1,H), ln1_g(1,H), ln1_b(1,H), ln2_g(1,H), ln2_b(1,H)
        #  [3+12L]             pooling matrix (B, B*T)  (mean over time)
        #  [4+12L], [5+12L]    classifier W^T (H, C), bias (1, C)
        #  [6+12L]             out_ref (B, C)
        #  [7+12L]             scratch: attention output buffer (B*T, H)
        idx = 0
        x_ref = refs[idx]; idx += 1
        wemb_ref, bemb_ref = refs[idx], refs[idx + 1]; idx += 2
        layer_refs = refs[idx: idx + 12 * num_layers]; idx += 12 * num_layers
        pool_ref, wcls_ref, bcls_ref = refs[idx:idx + 3]; idx += 3
        out_ref = refs[idx]; idx += 1
        attn_sc = refs[idx]

        # --- embedding + ReLU: one (B*T, D_in) x (D_in, H) matmul ---
        h = jnp.dot(x_ref[...], wemb_ref[...],
                    preferred_element_type=jnp.float32) + bemb_ref[...]
        h = jnp.maximum(h, 0.0)

        # Static loop over encoder layers (num_layers is small & fixed).
        for l in range(num_layers):
            (win, b_in, wout, b_out, w1, b1, w2, b2,
             g1, be1, g2, be2) = [layer_refs[12 * l + k][...] for k in range(12)]

            # Fused QKV projection over all B*T rows (single big matmul).
            qkv = jnp.dot(h, win, preferred_element_type=jnp.float32) + b_in  # (B*T, 3H)
            q = qkv[:, 0:H]
            k = qkv[:, H:2 * H]
            v = qkv[:, 2 * H:3 * H]

            # Per (batch, head) attention; B and num_heads are tiny & static.
            # TODO(synk): dropout inside MultiheadAttention / FFN is train-mode
            # only; eval-mode (identity) semantics are implemented here.
            for b in range(B):
                r0, r1 = b * T, (b + 1) * T
                qb, kb, vb = q[r0:r1, :], k[r0:r1, :], v[r0:r1, :]
                for hh in range(num_heads):
                    c0, c1 = hh * hd, (hh + 1) * hd
                    qh = qb[:, c0:c1] * scale
                    kh = kb[:, c0:c1]
                    vh = vb[:, c0:c1]
                    # q @ k^T without materializing a transpose (contract last dims).
                    s = jax.lax.dot_general(
                        qh, kh, (((1,), (1,)), ((), ())),
                        preferred_element_type=jnp.float32)           # (T, T)
                    s = s - jnp.max(s, axis=-1, keepdims=True)
                    p = jnp.exp(s)
                    p = p / jnp.sum(p, axis=-1, keepdims=True)
                    attn_sc[r0:r1, c0:c1] = jnp.dot(
                        p, vh, preferred_element_type=jnp.float32)    # (T, hd)

            # Output projection + residual + post-norm (PyTorch norm_first=False).
            attn = jnp.dot(attn_sc[...], wout,
                           preferred_element_type=jnp.float32) + b_out
            h = layer_norm(h + attn, g1, be1)

            # Feed-forward (ReLU) + residual + post-norm.
            ff = jnp.dot(h, w1, preferred_element_type=jnp.float32) + b1
            ff = jnp.maximum(ff, 0.0)
            ff = jnp.dot(ff, w2, preferred_element_type=jnp.float32) + b2
            h = layer_norm(h + ff, g2, be2)

        # Mean over the sequence dim as a tiny matmul with a pooling matrix.
        pooled = jnp.dot(pool_ref[...], h, preferred_element_type=jnp.float32)  # (B, H)
        out_ref[...] = (jnp.dot(pooled, wcls_ref[...],
                                preferred_element_type=jnp.float32)
                        + bcls_ref[...]).astype(out_ref.dtype)

    return kernel


def transformer_classifier_forward(x, params, *, num_heads):
    """x: (B, T, input_dim) batch-first, matching the PyTorch module."""
    B, T, D_in = x.shape
    H = params["emb_w_t"].shape[1]
    C = params["cls_w_t"].shape[1]
    L = len(params["layers"])

    x2 = x.reshape(B * T, D_in).astype(jnp.float32)

    # Pooling matrix implementing mean over the sequence dim: (B, B*T).
    pool = jnp.kron(jnp.eye(B, dtype=jnp.float32),
                    jnp.full((1, T), 1.0 / T, jnp.float32))

    flat = [x2, params["emb_w_t"], params["emb_b"]]
    for lp in params["layers"]:
        flat.extend(lp)
    flat.extend([pool, params["cls_w_t"], params["cls_b"]])

    # All arrays are 2-D and passed as full-size blocks (single grid step).
    in_specs = [pl.BlockSpec(a.shape, lambda i: (0, 0)) for a in flat]

    kernel = _make_transformer_kernel(L, B, T, H, num_heads, C)

    return pl.pallas_call(
        kernel,
        out_shape=jax.ShapeDtypeStruct((B, C), jnp.float32),
        grid_spec=pltpu.PrefetchScalarGridSpec(
            num_scalar_prefetch=0,
            grid=(1,),
            in_specs=in_specs,
            out_specs=pl.BlockSpec((B, C), lambda i: (0, 0)),
            scratch_shapes=[pltpu.VMEM((B * T, H), jnp.float32)],  # attn output
        ),
        compiler_params=pltpu.CompilerParams(
            dimension_semantics=("arbitrary",),
        ),
    )(*flat)


# ----------------------------------------------------------------------------
# Pure-JAX reference of the same (eval-mode) TransformerClassifier forward.
# ----------------------------------------------------------------------------
def _ln_ref(x, g, b, eps=1e-5):
    mu = x.mean(axis=-1, keepdims=True)
    var = ((x - mu) ** 2).mean(axis=-1, keepdims=True)
    return (x - mu) / jnp.sqrt(var + eps) * g + b


def _reference_forward(x, params, *, num_heads):
    B, T, D_in = x.shape
    H = params["emb_w_t"].shape[1]
    hd = H // num_heads

    h = jax.nn.relu(x @ params["emb_w_t"] + params["emb_b"])          # (B,T,H)
    for lp in params["layers"]:
        (win, b_in, wout, b_out, w1, b1, w2, b2, g1, be1, g2, be2) = lp
        qkv = h @ win + b_in                                           # (B,T,3H)
        q, k, v = qkv[..., :H], qkv[..., H:2 * H], qkv[..., 2 * H:]
        qh = q.reshape(B, T, num_heads, hd).transpose(0, 2, 1, 3)
        kh = k.reshape(B, T, num_heads, hd).transpose(0, 2, 1, 3)
        vh = v.reshape(B, T, num_heads, hd).transpose(0, 2, 1, 3)
        s = jnp.einsum('bhqd,bhkd->bhqk', qh, kh) / math.sqrt(hd)
        p = jax.nn.softmax(s, axis=-1)
        o = jnp.einsum('bhqk,bhkd->bhqd', p, vh)
        o = o.transpose(0, 2, 1, 3).reshape(B, T, H)
        attn = o @ wout + b_out
        h = _ln_ref(h + attn, g1, be1)
        ff = jax.nn.relu(h @ w1 + b1) @ w2 + b2
        h = _ln_ref(h + ff, g2, be2)
    pooled = h.mean(axis=1)                                            # (B,H)
    return pooled @ params["cls_w_t"] + params["cls_b"]


if __name__ == "__main__":
    # Small shapes consistent with the module's forward.
    B, T = 4, 8
    input_dim = 32
    hidden_dim = 64          # d_model == dim_feedforward
    num_layers = 2
    num_heads = 4
    num_classes = 10

    key = jax.random.PRNGKey(0)

    def uni(k, shape, bound):
        return jax.random.uniform(k, shape, jnp.float32, -bound, bound)

    # Embedding Linear(input_dim, hidden_dim)
    k1, k2, key = jax.random.split(key, 3)
    bnd = 1.0 / math.sqrt(input_dim)
    emb_w = uni(k1, (hidden_dim, input_dim), bnd)
    emb_b = uni(k2, (hidden_dim,), bnd)

    layers = []
    for _ in range(num_layers):
        (ka, kb, kc, kd, ke, kf, kg, kh_, ki, kj, key) = jax.random.split(key, 11)
        bnd_h = 1.0 / math.sqrt(hidden_dim)
        in_proj_w = uni(ka, (3 * hidden_dim, hidden_dim), bnd_h)
        in_proj_b = uni(kb, (3 * hidden_dim,), bnd_h)
        out_proj_w = uni(kc, (hidden_dim, hidden_dim), bnd_h)
        out_proj_b = uni(kd, (hidden_dim,), bnd_h)
        lin1_w = uni(ke, (hidden_dim, hidden_dim), bnd_h)   # dim_feedforward = hidden_dim
        lin1_b = uni(kf, (hidden_dim,), bnd_h)
        lin2_w = uni(kg, (hidden_dim, hidden_dim), bnd_h)
        lin2_b = uni(kh_, (hidden_dim,), bnd_h)
        ln1_g = 1.0 + 0.1 * uni(ki, (hidden_dim,), 1.0)
        ln1_b = 0.1 * uni(ki, (hidden_dim,), 1.0)
        ln2_g = 1.0 + 0.1 * uni(kj, (hidden_dim,), 1.0)
        ln2_b = 0.1 * uni(kj, (hidden_dim,), 1.0)
        layers.append((
            jnp.transpose(in_proj_w), in_proj_b.reshape(1, -1),
            jnp.transpose(out_proj_w), out_proj_b.reshape(1, -1),
            jnp.transpose(lin1_w), lin1_b.reshape(1, -1),
            jnp.transpose(lin2_w), lin2_b.reshape(1, -1),
            ln1_g.reshape(1, -1), ln1_b.reshape(1, -1),
            ln2_g.reshape(1, -1), ln2_b.reshape(1, -1),
        ))

    kc1, kc2, kx, key = jax.random.split(key, 4)
    bnd_c = 1.0 / math.sqrt(hidden_dim)
    cls_w = uni(kc1, (num_classes, hidden_dim), bnd_c)
    cls_b = uni(kc2, (num_classes,), bnd_c)

    params = {
        "emb_w_t": jnp.transpose(emb_w),          # (D_in, H)
        "emb_b": emb_b.reshape(1, -1),            # (1, H)
        "layers": layers,
        "cls_w_t": jnp.transpose(cls_w),          # (H, C)
        "cls_b": cls_b.reshape(1, -1),            # (1, C)
    }

    x = jax.random.normal(kx, (B, T, input_dim), dtype=jnp.float32)

    out = transformer_classifier_forward(x, params, num_heads=num_heads)
    out = jax.block_until_ready(out)

    ref = _reference_forward(x, params, num_heads=num_heads)
    assert out.shape == (B, num_classes)
    assert jnp.allclose(out, ref, rtol=1e-4, atol=1e-4), "mismatch vs reference"

    print("KERNEL_OK")
</pallas_src>

<mosaic_0001>
module attributes {stable_mosaic.version = 11 : i64} {
  func.func @kernel(%arg0: i32, %arg1: memref<32x32xf32, #tpu.memory_space<vmem>>, %arg2: memref<32x64xf32, #tpu.memory_space<vmem>>, %arg3: memref<1x64xf32, #tpu.memory_space<vmem>>, %arg4: memref<64x192xf32, #tpu.memory_space<vmem>>, %arg5: memref<1x192xf32, #tpu.memory_space<vmem>>, %arg6: memref<64x64xf32, #tpu.memory_space<vmem>>, %arg7: memref<1x64xf32, #tpu.memory_space<vmem>>, %arg8: memref<64x64xf32, #tpu.memory_space<vmem>>, %arg9: memref<1x64xf32, #tpu.memory_space<vmem>>, %arg10: memref<64x64xf32, #tpu.memory_space<vmem>>, %arg11: memref<1x64xf32, #tpu.memory_space<vmem>>, %arg12: memref<1x64xf32, #tpu.memory_space<vmem>>, %arg13: memref<1x64xf32, #tpu.memory_space<vmem>>, %arg14: memref<1x64xf32, #tpu.memory_space<vmem>>, %arg15: memref<1x64xf32, #tpu.memory_space<vmem>>, %arg16: memref<64x192xf32, #tpu.memory_space<vmem>>, %arg17: memref<1x192xf32, #tpu.memory_space<vmem>>, %arg18: memref<64x64xf32, #tpu.memory_space<vmem>>, %arg19: memref<1x64xf32, #tpu.memory_space<vmem>>, %arg20: memref<64x64xf32, #tpu.memory_space<vmem>>, %arg21: memref<1x64xf32, #tpu.memory_space<vmem>>, %arg22: memref<64x64xf32, #tpu.memory_space<vmem>>, %arg23: memref<1x64xf32, #tpu.memory_space<vmem>>, %arg24: memref<1x64xf32, #tpu.memory_space<vmem>>, %arg25: memref<1x64xf32, #tpu.memory_space<vmem>>, %arg26: memref<1x64xf32, #tpu.memory_space<vmem>>, %arg27: memref<1x64xf32, #tpu.memory_space<vmem>>, %arg28: memref<4x32xf32, #tpu.memory_space<vmem>>, %arg29: memref<64x10xf32, #tpu.memory_space<vmem>>, %arg30: memref<1x10xf32, #tpu.memory_space<vmem>>, %arg31: memref<4x10xf32, #tpu.memory_space<vmem>>, %arg32: memref<32x64xf32, #tpu.memory_space<vmem>>) attributes {dimension_semantics = [#tpu.dimension_semantics<arbitrary>], iteration_bounds = array<i64: 1>, scalar_prefetch = 0 : i64, scratch_operands = 1 : i64, tpu.core_type = #tpu.core_type<tc>, window_params = [{pipeline_mode = #tpu.pipeline_mode<synchronous>, transform_indices = @transform_0, window_bounds = array<i64: 32, 32>}, {pipeline_mode = #tpu.pipeline_mode<synchronous>, transform_indices = @transform_1, window_bounds = array<i64: 32, 64>}, {pipeline_mode = #tpu.pipeline_mode<synchronous>, transform_indices = @transform_2, window_bounds = array<i64: 1, 64>}, {pipeline_mode = #tpu.pipeline_mode<synchronous>, transform_indices = @transform_3, window_bounds = array<i64: 64, 192>}, {pipeline_mode = #tpu.pipeline_mode<synchronous>, transform_indices = @transform_4, window_bounds = array<i64: 1, 192>}, {pipeline_mode = #tpu.pipeline_mode<synchronous>, transform_indices = @transform_5, window_bounds = array<i64: 64, 64>}, {pipeline_mode = #tpu.pipeline_mode<synchronous>, transform_indices = @transform_6, window_bounds = array<i64: 1, 64>}, {pipeline_mode = #tpu.pipeline_mode<synchronous>, transform_indices = @transform_7, window_bounds = array<i64: 64, 64>}, {pipeline_mode = #tpu.pipeline_mode<synchronous>, transform_indices = @transform_8, window_bounds = array<i64: 1, 64>}, {pipeline_mode = #tpu.pipeline_mode<synchronous>, transform_indices = @transform_9, window_bounds = array<i64: 64, 64>}, {pipeline_mode = #tpu.pipeline_mode<synchronous>, transform_indices = @transform_10, window_bounds = array<i64: 1, 64>}, {pipeline_mode = #tpu.pipeline_mode<synchronous>, transform_indices = @transform_11, window_bounds = array<i64: 1, 64>}, {pipeline_mode = #tpu.pipeline_mode<synchronous>, transform_indices = @transform_12, window_bounds = array<i64: 1, 64>}, {pipeline_mode = #tpu.pipeline_mode<synchronous>, transform_indices = @transform_13, window_bounds = array<i64: 1, 64>}, {pipeline_mode = #tpu.pipeline_mode<synchronous>, transform_indices = @transform_14, window_bounds = array<i64: 1, 64>}, {pipeline_mode = #tpu.pipeline_mode<synchronous>, transform_indices = @transform_15, window_bounds = array<i64: 64, 192>}, {pipeline_mode = #tpu.pipeline_mode<synchronous>, transform_indices = @transform_16, window_bounds = array<i64: 1, 192>}, {pipeline_mode = #tpu.pipeline_mode<synchronous>, transform_indices = @transform_17, window_bounds = array<i64: 64, 64>}, {pipeline_mode = #tpu.pipeline_mode<synchronous>, transform_indices = @transform_18, window_bounds = array<i64: 1, 64>}, {pipeline_mode = #tpu.pipeline_mode<synchronous>, transform_indices = @transform_19, window_bounds = array<i64: 64, 64>}, {pipeline_mode = #tpu.pipeline_mode<synchronous>, transform_indices = @transform_20, window_bounds = array<i64: 1, 64>}, {pipeline_mode = #tpu.pipeline_mode<synchronous>, transform_indices = @transform_21, window_bounds = array<i64: 64, 64>}, {pipeline_mode = #tpu.pipeline_mode<synchronous>, transform_indices = @transform_22, window_bounds = array<i64: 1, 64>}, {pipeline_mode = #tpu.pipeline_mode<synchronous>, transform_indices = @transform_23, window_bounds = array<i64: 1, 64>}, {pipeline_mode = #tpu.pipeline_mode<synchronous>, transform_indices = @transform_24, window_bounds = array<i64: 1, 64>}, {pipeline_mode = #tpu.pipeline_mode<synchronous>, transform_indices = @transform_25, window_bounds = array<i64: 1, 64>}, {pipeline_mode = #tpu.pipeline_mode<synchronous>, transform_indices = @transform_26, window_bounds = array<i64: 1, 64>}, {pipeline_mode = #tpu.pipeline_mode<synchronous>, transform_indices = @transform_27, window_bounds = array<i64: 4, 32>}, {pipeline_mode = #tpu.pipeline_mode<synchronous>, transform_indices = @transform_28, window_bounds = array<i64: 64, 10>}, {pipeline_mode = #tpu.pipeline_mode<synchronous>, transform_indices = @transform_29, window_bounds = array<i64: 1, 10>}, {pipeline_mode = #tpu.pipeline_mode<synchronous>, transform_indices = @transform_30, window_bounds = array<i64: 4, 10>}]} {
    %c0 = arith.constant 0 : index
    %c0_0 = arith.constant 0 : index
    %0 = vector.load %arg1[%c0, %c0_0] : memref<32x32xf32, #tpu.memory_space<vmem>>, vector<32x32xf32>
    %c0_1 = arith.constant 0 : index
    %c0_2 = arith.constant 0 : index
    %1 = vector.load %arg2[%c0_1, %c0_2] : memref<32x64xf32, #tpu.memory_space<vmem>>, vector<32x64xf32>
    %cst = arith.constant dense<0.000000e+00> : vector<32x64xf32>
    %2 = tpu.matmul %0, %1, %cst {dimension_numbers = #tpu.dot_dimension_numbers<[1], [0], [0], [1], [0, 0, 1, 1], [], []>} : vector<32x32xf32>, vector<32x64xf32>, vector<32x64xf32> -> vector<32x64xf32>
    %c0_3 = arith.constant 0 : index
    %c0_4 = arith.constant 0 : index
    %3 = vector.load %arg3[%c0_3, %c0_4] : memref<1x64xf32, #tpu.memory_space<vmem>>, vector<1x64xf32>
    %4 = vector.broadcast %3 : vector<1x64xf32> to vector<32x64xf32>
    %5 = arith.addf %2, %4 : vector<32x64xf32>
    %cst_5 = arith.constant 0.000000e+00 : f32
    %6 = vector.broadcast %cst_5 : f32 to vector<32x64xf32>
    %7 = arith.maximumf %5, %6 : vector<32x64xf32>
    %c0_6 = arith.constant 0 : index
    %c0_7 = arith.constant 0 : index
    %8 = vector.load %arg4[%c0_6, %c0_7] : memref<64x192xf32, #tpu.memory_space<vmem>>, vector<64x192xf32>
    %c0_8 = arith.constant 0 : index
    %c0_9 = arith.constant 0 : index
    %9 = vector.load %arg5[%c0_8, %c0_9] : memref<1x192xf32, #tpu.memory_space<vmem>>, vector<1x192xf32>
    %c0_10 = arith.constant 0 : index
    %c0_11 = arith.constant 0 : index
    %10 = vector.load %arg6[%c0_10, %c0_11] : memref<64x64xf32, #tpu.memory_space<vmem>>, vector<64x64xf32>
    %c0_12 = arith.constant 0 : index
    %c0_13 = arith.constant 0 : index
    %11 = vector.load %arg7[%c0_12, %c0_13] : memref<1x64xf32, #tpu.memory_space<vmem>>, vector<1x64xf32>
    %c0_14 = arith.constant 0 : index
    %c0_15 = arith.constant 0 : index
    %12 = vector.load %arg8[%c0_14, %c0_15] : memref<64x64xf32, #tpu.memory_space<vmem>>, vector<64x64xf32>
    %c0_16 = arith.constant 0 : index
    %c0_17 = arith.constant 0 : index
    %13 = vector.load %arg9[%c0_16, %c0_17] : memref<1x64xf32, #tpu.memory_space<vmem>>, vector<1x64xf32>
    %c0_18 = arith.constant 0 : index
    %c0_19 = arith.constant 0 : index
    %14 = vector.load %arg10[%c0_18, %c0_19] : memref<64x64xf32, #tpu.memory_space<vmem>>, vector<64x64xf32>
    %c0_20 = arith.constant 0 : index
    %c0_21 = arith.constant 0 : index
    %15 = vector.load %arg11[%c0_20, %c0_21] : memref<1x64xf32, #tpu.memory_space<vmem>>, vector<1x64xf32>
    %c0_22 = arith.constant 0 : index
    %c0_23 = arith.constant 0 : index
    %16 = vector.load %arg12[%c0_22, %c0_23] : memref<1x64xf32, #tpu.memory_space<vmem>>, vector<1x64xf32>
    %c0_24 = arith.constant 0 : index
    %c0_25 = arith.constant 0 : index
    %17 = vector.load %arg13[%c0_24, %c0_25] : memref<1x64xf32, #tpu.memory_space<vmem>>, vector<1x64xf32>
    %c0_26 = arith.constant 0 : index
    %c0_27 = arith.constant 0 : index
    %18 = vector.load %arg14[%c0_26, %c0_27] : memref<1x64xf32, #tpu.memory_space<vmem>>, vector<1x64xf32>
    %c0_28 = arith.constant 0 : index
    %c0_29 = arith.constant 0 : index
    %19 = vector.load %arg15[%c0_28, %c0_29] : memref<1x64xf32, #tpu.memory_space<vmem>>, vector<1x64xf32>
    %cst_30 = arith.constant dense<0.000000e+00> : vector<32x192xf32>
    %20 = tpu.matmul %7, %8, %cst_30 {dimension_numbers = #tpu.dot_dimension_numbers<[1], [0], [0], [1], [0, 0, 1, 1], [], []>} : vector<32x64xf32>, vector<64x192xf32>, vector<32x192xf32> -> vector<32x192xf32>
    %21 = vector.broadcast %9 : vector<1x192xf32> to vector<32x192xf32>
    %22 = arith.addf %20, %21 : vector<32x192xf32>
    %23 = vector.extract_strided_slice %22 {offsets = [0, 0], sizes = [32, 64], strides = [1, 1]} : vector<32x192xf32> to vector<32x64xf32>
    %24 = vector.extract_strided_slice %22 {offsets = [0, 64], sizes = [32, 64], strides = [1, 1]} : vector<32x192xf32> to vector<32x64xf32>
    %25 = vector.extract_strided_slice %22 {offsets = [0, 128], sizes = [32, 64], strides = [1, 1]} : vector<32x192xf32> to vector<32x64xf32>
    %26 = vector.extract_strided_slice %23 {offsets = [0, 0], sizes = [8, 64], strides = [1, 1]} : vector<32x64xf32> to vector<8x64xf32>
    %27 = vector.extract_strided_slice %24 {offsets = [0, 0], sizes = [8, 64], strides = [1, 1]} : vector<32x64xf32> to vector<8x64xf32>
    %28 = vector.extract_strided_slice %25 {offsets = [0, 0], sizes = [8, 64], strides = [1, 1]} : vector<32x64xf32> to vector<8x64xf32>
    %29 = vector.extract_strided_slice %26 {offsets = [0, 0], sizes = [8, 16], strides = [1, 1]} : vector<8x64xf32> to vector<8x16xf32>
    %cst_31 = arith.constant 2.500000e-01 : f32
    %30 = vector.broadcast %cst_31 : f32 to vector<8x16xf32>
    %31 = arith.mulf %29, %30 : vector<8x16xf32>
    %32 = vector.extract_strided_slice %27 {offsets = [0, 0], sizes = [8, 16], strides = [1, 1]} : vector<8x64xf32> to vector<8x16xf32>
    %33 = vector.extract_strided_slice %28 {offsets = [0, 0], sizes = [8, 16], strides = [1, 1]} : vector<8x64xf32> to vector<8x16xf32>
    %cst_32 = arith.constant dense<0.000000e+00> : vector<8x8xf32>
    %34 = tpu.matmul %31, %32, %cst_32 {dimension_numbers = #tpu.dot_dimension_numbers<[1], [1], [0], [0], [0, 0, 1, 0], [], []>} : vector<8x16xf32>, vector<8x16xf32>, vector<8x8xf32> -> vector<8x8xf32>
    %cst_33 = arith.constant dense<0xFF800000> : vector<8xf32>
    %35 = vector.multi_reduction <maximumf>, %34, %cst_33 [1] : vector<8x8xf32> to vector<8xf32>
    %36 = vector.shape_cast %35 : vector<8xf32> to vector<8x1xf32>
    %37 = vector.broadcast %36 : vector<8x1xf32> to vector<8x8xf32>
    %38 = arith.subf %34, %37 : vector<8x8xf32>
    %39 = math.exp %38 : vector<8x8xf32>
    %cst_34 = arith.constant dense<0.000000e+00> : vector<8xf32>
    %40 = vector.multi_reduction <add>, %39, %cst_34 [1] : vector<8x8xf32> to vector<8xf32>
    %41 = vector.shape_cast %40 : vector<8xf32> to vector<8x1xf32>
    %42 = vector.broadcast %41 : vector<8x1xf32> to vector<8x8xf32>
    %43 = arith.divf %39, %42 : vector<8x8xf32>
    %cst_35 = arith.constant dense<0.000000e+00> : vector<8x16xf32>
    %44 = tpu.matmul %43, %33, %cst_35 {dimension_numbers = #tpu.dot_dimension_numbers<[1], [0], [0], [1], [0, 0, 1, 1], [], []>} : vector<8x8xf32>, vector<8x16xf32>, vector<8x16xf32> -> vector<8x16xf32>
    %c0_36 = arith.constant 0 : index
    %c0_37 = arith.constant 0 : index
    %45 = vector.load %arg32[%c0_36, %c0_37] : memref<32x64xf32, #tpu.memory_space<vmem>>, vector<8x16xf32>
    tpu.vector_store %arg32[%c0_36, %c0_37], %44 {strides = array<i32>} : memref<32x64xf32, #tpu.memory_space<vmem>>, vector<8x16xf32>,
    %46 = vector.extract_strided_slice %26 {offsets = [0, 16], sizes = [8, 16], strides = [1, 1]} : vector<8x64xf32> to vector<8x16xf32>
    %cst_38 = arith.constant 2.500000e-01 : f32
    %47 = vector.broadcast %cst_38 : f32 to vector<8x16xf32>
    %48 = arith.mulf %46, %47 : vector<8x16xf32>
    %49 = vector.extract_strided_slice %27 {offsets = [0, 16], sizes = [8, 16], strides = [1, 1]} : vector<8x64xf32> to vector<8x16xf32>
    %50 = vector.extract_strided_slice %28 {offsets = [0, 16], sizes = [8, 16], strides = [1, 1]} : vector<8x64xf32> to vector<8x16xf32>
    %cst_39 = arith.constant dense<0.000000e+00> : vector<8x8xf32>
    %51 = tpu.matmul %48, %49, %cst_39 {dimension_numbers = #tpu.dot_dimension_numbers<[1], [1], [0], [0], [0, 0, 1, 0], [], []>} : vector<8x16xf32>, vector<8x16xf32>, vector<8x8xf32> -> vector<8x8xf32>
    %cst_40 = arith.constant dense<0xFF800000> : vector<8xf32>
    %52 = vector.multi_reduction <maximumf>, %51, %cst_40 [1] : vector<8x8xf32> to vector<8xf32>
    %53 = vector.shape_cast %52 : vector<8xf32> to vector<8x1xf32>
    %54 = vector.broadcast %53 : vector<8x1xf32> to vector<8x8xf32>
    %55 = arith.subf %51, %54 : vector<8x8xf32>
    %56 = math.exp %55 : vector<8x8xf32>
    %cst_41 = arith.constant dense<0.000000e+00> : vector<8xf32>
    %57 = vector.multi_reduction <add>, %56, %cst_41 [1] : vector<8x8xf32> to vector<8xf32>
    %58 = vector.shape_cast %57 : vector<8xf32> to vector<8x1xf32>
    %59 = vector.broadcast %58 : vector<8x1xf32> to vector<8x8xf32>
    %60 = arith.divf %56, %59 : vector<8x8xf32>
    %cst_42 = arith.constant dense<0.000000e+00> : vector<8x16xf32>
    %61 = tpu.matmul %60, %50, %cst_42 {dimension_numbers = #tpu.dot_dimension_numbers<[1], [0], [0], [1], [0, 0, 1, 1], [], []>} : vector<8x8xf32>, vector<8x16xf32>, vector<8x16xf32> -> vector<8x16xf32>
    %c0_43 = arith.constant 0 : index
    %c16 = arith.constant 16 : index
    %62 = vector.load %arg32[%c0_43, %c16] : memref<32x64xf32, #tpu.memory_space<vmem>>, vector<8x16xf32>
    tpu.vector_store %arg32[%c0_43, %c16], %61 {strides = array<i32>} : memref<32x64xf32, #tpu.memory_space<vmem>>, vector<8x16xf32>,
    %63 = vector.extract_strided_slice %26 {offsets = [0, 32], sizes = [8, 16], strides = [1, 1]} : vector<8x64xf32> to vector<8x16xf32>
    %cst_44 = arith.constant 2.500000e-01 : f32
    %64 = vector.broadcast %cst_44 : f32 to vector<8x16xf32>
    %65 = arith.mulf %63, %64 : vector<8x16xf32>
    %66 = vector.extract_strided_slice %27 {offsets = [0, 32], sizes = [8, 16], strides = [1, 1]} : vector<8x64xf32> to vector<8x16xf32>
    %67 = vector.extract_strided_slice %28 {offsets = [0, 32], sizes = [8, 16], strides = [1, 1]} : vector<8x64xf32> to vector<8x16xf32>
    %cst_45 = arith.constant dense<0.000000e+00> : vector<8x8xf32>
    %68 = tpu.matmul %65, %66, %cst_45 {dimension_numbers = #tpu.dot_dimension_numbers<[1], [1], [0], [0], [0, 0, 1, 0], [], []>} : vector<8x16xf32>, vector<8x16xf32>, vector<8x8xf32> -> vector<8x8xf32>
    %cst_46 = arith.constant dense<0xFF800000> : vector<8xf32>
    %69 = vector.multi_reduction <maximumf>, %68, %cst_46 [1] : vector<8x8xf32> to vector<8xf32>
    %70 = vector.shape_cast %69 : vector<8xf32> to vector<8x1xf32>
    %71 = vector.broadcast %70 : vector<8x1xf32> to vector<8x8xf32>
    %72 = arith.subf %68, %71 : vector<8x8xf32>
    %73 = math.exp %72 : vector<8x8xf32>
    %cst_47 = arith.constant dense<0.000000e+00> : vector<8xf32>
    %74 = vector.multi_reduction <add>, %73, %cst_47 [1] : vector<8x8xf32> to vector<8xf32>
    %75 = vector.shape_cast %74 : vector<8xf32> to vector<8x1xf32>
    %76 = vector.broadcast %75 : vector<8x1xf32> to vector<8x8xf32>
    %77 = arith.divf %73, %76 : vector<8x8xf32>
    %cst_48 = arith.constant dense<0.000000e+00> : vector<8x16xf32>
    %78 = tpu.matmul %77, %67, %cst_48 {dimension_numbers = #tpu.dot_dimension_numbers<[1], [0], [0], [1], [0, 0, 1, 1], [], []>} : vector<8x8xf32>, vector<8x16xf32>, vector<8x16xf32> -> vector<8x16xf32>
    %c0_49 = arith.constant 0 : index
    %c32 = arith.constant 32 : index
    %79 = vector.load %arg32[%c0_49, %c32] : memref<32x64xf32, #tpu.memory_space<vmem>>, vector<8x16xf32>
    tpu.vector_store %arg32[%c0_49, %c32], %78 {strides = array<i32>} : memref<32x64xf32, #tpu.memory_space<vmem>>, vector<8x16xf32>,
    %80 = vector.extract_strided_slice %26 {offsets = [0, 48], sizes = [8, 16], strides = [1, 1]} : vector<8x64xf32> to vector<8x16xf32>
    %cst_50 = arith.constant 2.500000e-01 : f32
    %81 = vector.broadcast %cst_50 : f32 to vector<8x16xf32>
    %82 = arith.mulf %80, %81 : vector<8x16xf32>
    %83 = vector.extract_strided_slice %27 {offsets = [0, 48], sizes = [8, 16], strides = [1, 1]} : vector<8x64xf32> to vector<8x16xf32>
    %84 = vector.extract_strided_slice %28 {offsets = [0, 48], sizes = [8, 16], strides = [1, 1]} : vector<8x64xf32> to vector<8x16xf32>
    %cst_51 = arith.constant dense<0.000000e+00> : vector<8x8xf32>
    %85 = tpu.matmul %82, %83, %cst_51 {dimension_numbers = #tpu.dot_dimension_numbers<[1], [1], [0], [0], [0, 0, 1, 0], [], []>} : vector<8x16xf32>, vector<8x16xf32>, vector<8x8xf32> -> vector<8x8xf32>
    %cst_52 = arith.constant dense<0xFF800000> : vector<8xf32>
    %86 = vector.multi_reduction <maximumf>, %85, %cst_52 [1] : vector<8x8xf32> to vector<8xf32>
    %87 = vector.shape_cast %86 : vector<8xf32> to vector<8x1xf32>
    %88 = vector.broadcast %87 : vector<8x1xf32> to vector<8x8xf32>
    %89 = arith.subf %85, %88 : vector<8x8xf32>
    %90 = math.exp %89 : vector<8x8xf32>
    %cst_53 = arith.constant dense<0.000000e+00> : vector<8xf32>
    %91 = vector.multi_reduction <add>, %90, %cst_53 [1] : vector<8x8xf32> to vector<8xf32>
    %92 = vector.shape_cast %91 : vector<8xf32> to vector<8x1xf32>
    %93 = vector.broadcast %92 : vector<8x1xf32> to vector<8x8xf32>
    %94 = arith.divf %90, %93 : vector<8x8xf32>
    %cst_54 = arith.constant dense<0.000000e+00> : vector<8x16xf32>
    %95 = tpu.matmul %94, %84, %cst_54 {dimension_numbers = #tpu.dot_dimension_numbers<[1], [0], [0], [1], [0, 0, 1, 1], [], []>} : vector<8x8xf32>, vector<8x16xf32>, vector<8x16xf32> -> vector<8x16xf32>
    %c0_55 = arith.constant 0 : index
    %c48 = arith.constant 48 : index
    %96 = vector.load %arg32[%c0_55, %c48] : memref<32x64xf32, #tpu.memory_space<vmem>>, vector<8x16xf32>
    tpu.vector_store %arg32[%c0_55, %c48], %95 {strides = array<i32>} : memref<32x64xf32, #tpu.memory_space<vmem>>, vector<8x16xf32>,
    %97 = vector.extract_strided_slice %23 {offsets = [8, 0], sizes = [8, 64], strides = [1, 1]} : vector<32x64xf32> to vector<8x64xf32>
    %98 = vector.extract_strided_slice %24 {offsets = [8, 0], sizes = [8, 64], strides = [1, 1]} : vector<32x64xf32> to vector<8x64xf32>
    %99 = vector.extract_strided_slice %25 {offsets = [8, 0], sizes = [8, 64], strides = [1, 1]} : vector<32x64xf32> to vector<8x64xf32>
    %100 = vector.extract_strided_slice %97 {offsets = [0, 0], sizes = [8, 16], strides = [1, 1]} : vector<8x64xf32> to vector<8x16xf32>
    %cst_56 = arith.constant 2.500000e-01 : f32
    %101 = vector.broadcast %cst_56 : f32 to vector<8x16xf32>
    %102 = arith.mulf %100, %101 : vector<8x16xf32>
    %103 = vector.extract_strided_slice %98 {offsets = [0, 0], sizes = [8, 16], strides = [1, 1]} : vector<8x64xf32> to vector<8x16xf32>
    %104 = vector.extract_strided_slice %99 {offsets = [0, 0], sizes = [8, 16], strides = [1, 1]} : vector<8x64xf32> to vector<8x16xf32>
    %cst_57 = arith.constant dense<0.000000e+00> : vector<8x8xf32>
    %105 = tpu.matmul %102, %103, %cst_57 {dimension_numbers = #tpu.dot_dimension_numbers<[1], [1], [0], [0], [0, 0, 1, 0], [], []>} : vector<8x16xf32>, vector<8x16xf32>, vector<8x8xf32> -> vector<8x8xf32>
    %cst_58 = arith.constant dense<0xFF800000> : vector<8xf32>
    %106 = vector.multi_reduction <maximumf>, %105, %cst_58 [1] : vector<8x8xf32> to vector<8xf32>
    %107 = vector.shape_cast %106 : vector<8xf32> to vector<8x1xf32>
    %108 = vector.broadcast %107 : vector<8x1xf32> to vector<8x8xf32>
    %109 = arith.subf %105, %108 : vector<8x8xf32>
    %110 = math.exp %109 : vector<8x8xf32>
    %cst_59 = arith.constant dense<0.000000e+00> : vector<8xf32>
    %111 = vector.multi_reduction <add>, %110, %cst_59 [1] : vector<8x8xf32> to vector<8xf32>
    %112 = vector.shape_cast %111 : vector<8xf32> to vector<8x1xf32>
    %113 = vector.broadcast %112 : vector<8x1xf32> to vector<8x8xf32>
    %114 = arith.divf %110, %113 : vector<8x8xf32>
    %cst_60 = arith.constant dense<0.000000e+00> : vector<8x16xf32>
    %115 = tpu.matmul %114, %104, %cst_60 {dimension_numbers = #tpu.dot_dimension_numbers<[1], [0], [0], [1], [0, 0, 1, 1], [], []>} : vector<8x8xf32>, vector<8x16xf32>, vector<8x16xf32> -> vector<8x16xf32>
    %c8 = arith.constant 8 : index
    %c0_61 = arith.constant 0 : index
    %116 = vector.load %arg32[%c8, %c0_61] : memref<32x64xf32, #tpu.memory_space<vmem>>, vector<8x16xf32>
    tpu.vector_store %arg32[%c8, %c0_61], %115 {strides = array<i32>} : memref<32x64xf32, #tpu.memory_space<vmem>>, vector<8x16xf32>,
    %117 = vector.extract_strided_slice %97 {offsets = [0, 16], sizes = [8, 16], strides = [1, 1]} : vector<8x64xf32> to vector<8x16xf32>
    %cst_62 = arith.constant 2.500000e-01 : f32
    %118 = vector.broadcast %cst_62 : f32 to vector<8x16xf32>
    %119 = arith.mulf %117, %118 : vector<8x16xf32>
    %120 = vector.extract_strided_slice %98 {offsets = [0, 16], sizes = [8, 16], strides = [1, 1]} : vector<8x64xf32> to vector<8x16xf32>
    %121 = vector.extract_strided_slice %99 {offsets = [0, 16], sizes = [8, 16], strides = [1, 1]} : vector<8x64xf32> to vector<8x16xf32>
    %cst_63 = arith.constant dense<0.000000e+00> : vector<8x8xf32>
    %122 = tpu.matmul %119, %120, %cst_63 {dimension_numbers = #tpu.dot_dimension_numbers<[1], [1], [0], [0], [0, 0, 1, 0], [], []>} : vector<8x16xf32>, vector<8x16xf32>, vector<8x8xf32> -> vector<8x8xf32>
    %cst_64 = arith.constant dense<0xFF800000> : vector<8xf32>
    %123 = vector.multi_reduction <maximumf>, %122, %cst_64 [1] : vector<8x8xf32> to vector<8xf32>
    %124 = vector.shape_cast %123 : vector<8xf32> to vector<8x1xf32>
    %125 = vector.broadcast %124 : vector<8x1xf32> to vector<8x8xf32>
    %126 = arith.subf %122, %125 : vector<8x8xf32>
    %127 = math.exp %126 : vector<8x8xf32>
    %cst_65 = arith.constant dense<0.000000e+00> : vector<8xf32>
    %128 = vector.multi_reduction <add>, %127, %cst_65 [1] : vector<8x8xf32> to vector<8xf32>
    %129 = vector.shape_cast %128 : vector<8xf32> to vector<8x1xf32>
    %130 = vector.broadcast %129 : vector<8x1xf32> to vector<8x8xf32>
    %131 = arith.divf %127, %130 : vector<8x8xf32>
    %cst_66 = arith.constant dense<0.000000e+00> : vector<8x16xf32>
    %132 = tpu.matmul %131, %121, %cst_66 {dimension_numbers = #tpu.dot_dimension_numbers<[1], [0], [0], [1], [0, 0, 1, 1], [], []>} : vector<8x8xf32>, vector<8x16xf32>, vector<8x16xf32> -> vector<8x16xf32>
    %c8_67 = arith.constant 8 : index
    %c16_68 = arith.constant 16 : index
    %133 = vector.load %arg32[%c8_67, %c16_68] : memref<32x64xf32, #tpu.memory_space<vmem>>, vector<8x16xf32>
    tpu.vector_store %arg32[%c8_67, %c16_68], %132 {strides = array<i32>} : memref<32x64xf32, #tpu.memory_space<vmem>>, vector<8x16xf32>,
    %134 = vector.extract_strided_slice %97 {offsets = [0, 32], sizes = [8, 16], strides = [1, 1]} : vector<8x64xf32> to vector<8x16xf32>
    %cst_69 = arith.constant 2.500000e-01 : f32
    %135 = vector.broadcast %cst_69 : f32 to vector<8x16xf32>
    %136 = arith.mulf %134, %135 : vector<8x16xf32>
    %137 = vector.extract_strided_slice %98 {offsets = [0, 32], sizes = [8, 16], strides = [1, 1]} : vector<8x64xf32> to vector<8x16xf32>
    %138 = vector.extract_strided_slice %99 {offsets = [0, 32], sizes = [8, 16], strides = [1, 1]} : vector<8x64xf32> to vector<8x16xf32>
    %cst_70 = arith.constant dense<0.000000e+00> : vector<8x8xf32>
    %139 = tpu.matmul %136, %137, %cst_70 {dimension_numbers = #tpu.dot_dimension_numbers<[1], [1], [0], [0], [0, 0, 1, 0], [], []>} : vector<8x16xf32>, vector<8x16xf32>, vector<8x8xf32> -> vector<8x8xf32>
    %cst_71 = arith.constant dense<0xFF800000> : vector<8xf32>
    %140 = vector.multi_reduction <maximumf>, %139, %cst_71 [1] : vector<8x8xf32> to vector<8xf32>
    %141 = vector.shape_cast %140 : vector<8xf32> to vector<8x1xf32>
    %142 = vector.broadcast %141 : vector<8x1xf32> to vector<8x8xf32>
    %143 = arith.subf %139, %142 : vector<8x8xf32>
    %144 = math.exp %143 : vector<8x8xf32>
    %cst_72 = arith.constant dense<0.000000e+00> : vector<8xf32>
    %145 = vector.multi_reduction <add>, %144, %cst_72 [1] : vector<8x8xf32> to vector<8xf32>
    %146 = vector.shape_cast %145 : vector<8xf32> to vector<8x1xf32>
    %147 = vector.broadcast %146 : vector<8x1xf32> to vector<8x8xf32>
    %148 = arith.divf %144, %147 : vector<8x8xf32>
    %cst_73 = arith.constant dense<0.000000e+00> : vector<8x16xf32>
    %149 = tpu.matmul %148, %138, %cst_73 {dimension_numbers = #tpu.dot_dimension_numbers<[1], [0], [0], [1], [0, 0, 1, 1], [], []>} : vector<8x8xf32>, vector<8x16xf32>, vector<8x16xf32> -> vector<8x16xf32>
    %c8_74 = arith.constant 8 : index
    %c32_75 = arith.constant 32 : index
    %150 = vector.load %arg32[%c8_74, %c32_75] : memref<32x64xf32, #tpu.memory_space<vmem>>, vector<8x16xf32>
    tpu.vector_store %arg32[%c8_74, %c32_75], %149 {strides = array<i32>} : memref<32x64xf32, #tpu.memory_space<vmem>>, vector<8x16xf32>,
    %151 = vector.extract_strided_slice %97 {offsets = [0, 48], sizes = [8, 16], strides = [1, 1]} : vector<8x64xf32> to vector<8x16xf32>
    %cst_76 = arith.constant 2.500000e-01 : f32
    %152 = vector.broadcast %cst_76 : f32 to vector<8x16xf32>
    %153 = arith.mulf %151, %152 : vector<8x16xf32>
    %154 = vector.extract_strided_slice %98 {offsets = [0, 48], sizes = [8, 16], strides = [1, 1]} : vector<8x64xf32> to vector<8x16xf32>
    %155 = vector.extract_strided_slice %99 {offsets = [0, 48], sizes = [8, 16], strides = [1, 1]} : vector<8x64xf32> to vector<8x16xf32>
    %cst_77 = arith.constant dense<0.000000e+00> : vector<8x8xf32>
    %156 = tpu.matmul %153, %154, %cst_77 {dimension_numbers = #tpu.dot_dimension_numbers<[1], [1], [0], [0], [0, 0, 1, 0], [], []>} : vector<8x16xf32>, vector<8x16xf32>, vector<8x8xf32> -> vector<8x8xf32>
    %cst_78 = arith.constant dense<0xFF800000> : vector<8xf32>
    %157 = vector.multi_reduction <maximumf>, %156, %cst_78 [1] : vector<8x8xf32> to vector<8xf32>
    %158 = vector.shape_cast %157 : vector<8xf32> to vector<8x1xf32>
    %159 = vector.broadcast %158 : vector<8x1xf32> to vector<8x8xf32>
    %160 = arith.subf %156, %159 : vector<8x8xf32>
    %161 = math.exp %160 : vector<8x8xf32>
    %cst_79 = arith.constant dense<0.000000e+00> : vector<8xf32>
    %162 = vector.multi_reduction <add>, %161, %cst_79 [1] : vector<8x8xf32> to vector<8xf32>
    %163 = vector.shape_cast %162 : vector<8xf32> to vector<8x1xf32>
    %164 = vector.broadcast %163 : vector<8x1xf32> to vector<8x8xf32>
    %165 = arith.divf %161, %164 : vector<8x8xf32>
    %cst_80 = arith.constant dense<0.000000e+00> : vector<8x16xf32>
    %166 = tpu.matmul %165, %155, %cst_80 {dimension_numbers = #tpu.dot_dimension_numbers<[1], [0], [0], [1], [0, 0, 1, 1], [], []>} : vector<8x8xf32>, vector<8x16xf32>, vector<8x16xf32> -> vector<8x16xf32>
    %c8_81 = arith.constant 8 : index
    %c48_82 = arith.constant 48 : index
    %167 = vector.load %arg32[%c8_81, %c48_82] : memref<32x64xf32, #tpu.memory_space<vmem>>, vector<8x16xf32>
    tpu.vector_store %arg32[%c8_81, %c48_82], %166 {strides = array<i32>} : memref<32x64xf32, #tpu.memory_space<vmem>>, vector<8x16xf32>,
    %168 = vector.extract_strided_slice %23 {offsets = [16, 0], sizes = [8, 64], strides = [1, 1]} : vector<32x64xf32> to vector<8x64xf32>
    %169 = vector.extract_strided_slice %24 {offsets = [16, 0], sizes = [8, 64], strides = [1, 1]} : vector<32x64xf32> to vector<8x64xf32>
    %170 = vector.extract_strided_slice %25 {offsets = [16, 0], sizes = [8, 64], strides = [1, 1]} : vector<32x64xf32> to vector<8x64xf32>
    %171 = vector.extract_strided_slice %168 {offsets = [0, 0], sizes = [8, 16], strides = [1, 1]} : vector<8x64xf32> to vector<8x16xf32>
    %cst_83 = arith.constant 2.500000e-01 : f32
    %172 = vector.broadcast %cst_83 : f32 to vector<8x16xf32>
    %173 = arith.mulf %171, %172 : vector<8x16xf32>
    %174 = vector.extract_strided_slice %169 {offsets = [0, 0], sizes = [8, 16], strides = [1, 1]} : vector<8x64xf32> to vector<8x16xf32>
    %175 = vector.extract_strided_slice %170 {offsets = [0, 0], sizes = [8, 16], strides = [1, 1]} : vector<8x64xf32> to vector<8x16xf32>
    %cst_84 = arith.constant dense<0.000000e+00> : vector<8x8xf32>
    %176 = tpu.matmul %173, %174, %cst_84 {dimension_numbers = #tpu.dot_dimension_numbers<[1], [1], [0], [0], [0, 0, 1, 0], [], []>} : vector<8x16xf32>, vector<8x16xf32>, vector<8x8xf32> -> vector<8x8xf32>
    %cst_85 = arith.constant dense<0xFF800000> : vector<8xf32>
    %177 = vector.multi_reduction <maximumf>, %176, %cst_85 [1] : vector<8x8xf32> to vector<8xf32>
    %178 = vector.shape_cast %177 : vector<8xf32> to vector<8x1xf32>
    %179 = vector.broadcast %178 : vector<8x1xf32> to vector<8x8xf32>
    %180 = arith.subf %176, %179 : vector<8x8xf32>
    %181 = math.exp %180 : vector<8x8xf32>
    %cst_86 = arith.constant dense<0.000000e+00> : vector<8xf32>
    %182 = vector.multi_reduction <add>, %181, %cst_86 [1] : vector<8x8xf32> to vector<8xf32>
    %183 = vector.shape_cast %182 : vector<8xf32> to vector<8x1xf32>
    %184 = vector.broadcast %183 : vector<8x1xf32> to vector<8x8xf32>
    %185 = arith.divf %181, %184 : vector<8x8xf32>
    %cst_87 = arith.constant dense<0.000000e+00> : vector<8x16xf32>
    %186 = tpu.matmul %185, %175, %cst_87 {dimension_numbers = #tpu.dot_dimension_numbers<[1], [0], [0], [1], [0, 0, 1, 1], [], []>} : vector<8x8xf32>, vector<8x16xf32>, vector<8x16xf32> -> vector<8x16xf32>
    %c16_88 = arith.constant 16 : index
    %c0_89 = arith.constant 0 : index
    %187 = vector.load %arg32[%c16_88, %c0_89] : memref<32x64xf32, #tpu.memory_space<vmem>>, vector<8x16xf32>
    tpu.vector_store %arg32[%c16_88, %c0_89], %186 {strides = array<i32>} : memref<32x64xf32, #tpu.memory_space<vmem>>, vector<8x16xf32>,
    %188 = vector.extract_strided_slice %168 {offsets = [0, 16], sizes = [8, 16], strides = [1, 1]} : vector<8x64xf32> to vector<8x16xf32>
    %cst_90 = arith.constant 2.500000e-01 : f32
    %189 = vector.broadcast %cst_90 : f32 to vector<8x16xf32>
    %190 = arith.mulf %188, %189 : vector<8x16xf32>
    %191 = vector.extract_strided_slice %169 {offsets = [0, 16], sizes = [8, 16], strides = [1, 1]} : vector<8x64xf32> to vector<8x16xf32>
    %192 = vector.extract_strided_slice %170 {offsets = [0, 16], sizes = [8, 16], strides = [1, 1]} : vector<8x64xf32> to vector<8x16xf32>
    %cst_91 = arith.constant dense<0.000000e+00> : vector<8x8xf32>
    %193 = tpu.matmul %190, %191, %cst_91 {dimension_numbers = #tpu.dot_dimension_numbers<[1], [1], [0], [0], [0, 0, 1, 0], [], []>} : vector<8x16xf32>, vector<8x16xf32>, vector<8x8xf32> -> vector<8x8xf32>
    %cst_92 = arith.constant dense<0xFF800000> : vector<8xf32>
    %194 = vector.multi_reduction <maximumf>, %193, %cst_92 [1] : vector<8x8xf32> to vector<8xf32>
    %195 = vector.shape_cast %194 : vector<8xf32> to vector<8x1xf32>
    %196 = vector.broadcast %195 : vector<8x1xf32> to vector<8x8xf32>
    %197 = arith.subf %193, %196 : vector<8x8xf32>
    %198 = math.exp %197 : vector<8x8xf32>
    %cst_93 = arith.constant dense<0.000000e+00> : vector<8xf32>
    %199 = vector.multi_reduction <add>, %198, %cst_93 [1] : vector<8x8xf32> to vector<8xf32>
    %200 = vector.shape_cast %199 : vector<8xf32> to vector<8x1xf32>
    %201 = vector.broadcast %200 : vector<8x1xf32> to vector<8x8xf32>
    %202 = arith.divf %198, %201 : vector<8x8xf32>
    %cst_94 = arith.constant dense<0.000000e+00> : vector<8x16xf32>
    %203 = tpu.matmul %202, %192, %cst_94 {dimension_numbers = #tpu.dot_dimension_numbers<[1], [0], [0], [1], [0, 0, 1, 1], [], []>} : vector<8x8xf32>, vector<8x16xf32>, vector<8x16xf32> -> vector<8x16xf32>
    %c16_95 = arith.constant 16 : index
    %c16_96 = arith.constant 16 : index
    %204 = vector.load %arg32[%c16_95, %c16_96] : memref<32x64xf32, #tpu.memory_space<vmem>>, vector<8x16xf32>
    tpu.vector_store %arg32[%c16_95, %c16_96], %203 {strides = array<i32>} : memref<32x64xf32, #tpu.memory_space<vmem>>, vector<8x16xf32>,
    %205 = vector.extract_strided_slice %168 {offsets = [0, 32], sizes = [8, 16], strides = [1, 1]} : vector<8x64xf32> to vector<8x16xf32>
    %cst_97 = arith.constant 2.500000e-01 : f32
    %206 = vector.broadcast %cst_97 : f32 to vector<8x16xf32>
    %207 = arith.mulf %205, %206 : vector<8x16xf32>
    %208 = vector.extract_strided_slice %169 {offsets = [0, 32], sizes = [8, 16], strides = [1, 1]} : vector<8x64xf32> to vector<8x16xf32>
    %209 = vector.extract_strided_slice %170 {offsets = [0, 32], sizes = [8, 16], strides = [1, 1]} : vector<8x64xf32> to vector<8x16xf32>
    %cst_98 = arith.constant dense<0.000000e+00> : vector<8x8xf32>
    %210 = tpu.matmul %207, %208, %cst_98 {dimension_numbers = #tpu.dot_dimension_numbers<[1], [1], [0], [0], [0, 0, 1, 0], [], []>} : vector<8x16xf32>, vector<8x16xf32>, vector<8x8xf32> -> vector<8x8xf32>
    %cst_99 = arith.constant dense<0xFF800000> : vector<8xf32>
    %211 = vector.multi_reduction <maximumf>, %210, %cst_99 [1] : vector<8x8xf32> to vector<8xf32>
    %212 = vector.shape_cast %211 : vector<8xf32> to vector<8x1xf32>
    %213 = vector.broadcast %212 : vector<8x1xf32> to vector<8x8xf32>
    %214 = arith.subf %210, %213 : vector<8x8xf32>
    %215 = math.exp %214 : vector<8x8xf32>
    %cst_100 = arith.constant dense<0.000000e+00> : vector<8xf32>
    %216 = vector.multi_reduction <add>, %215, %cst_100 [1] : vector<8x8xf32> to vector<8xf32>
    %217 = vector.shape_cast %216 : vector<8xf32> to vector<8x1xf32>
    %218 = vector.broadcast %217 : vector<8x1xf32> to vector<8x8xf32>
    %219 = arith.divf %215, %218 : vector<8x8xf32>
    %cst_101 = arith.constant dense<0.000000e+00> : vector<8x16xf32>
    %220 = tpu.matmul %219, %209, %cst_101 {dimension_numbers = #tpu.dot_dimension_numbers<[1], [0], [0], [1], [0, 0, 1, 1], [], []>} : vector<8x8xf32>, vector<8x16xf32>, vector<8x16xf32> -> vector<8x16xf32>
    %c16_102 = arith.constant 16 : index
    %c32_103 = arith.constant 32 : index
    %221 = vector.load %arg32[%c16_102, %c32_103] : memref<32x64xf32, #tpu.memory_space<vmem>>, vector<8x16xf32>
    tpu.vector_store %arg32[%c16_102, %c32_103], %220 {strides = array<i32>} : memref<32x64xf32, #tpu.memory_space<vmem>>, vector<8x16xf32>,
    %222 = vector.extract_strided_slice %168 {offsets = [0, 48], sizes = [8, 16], strides = [1, 1]} : vector<8x64xf32> to vector<8x16xf32>
    %cst_104 = arith.constant 2.500000e-01 : f32
    %223 = vector.broadcast %cst_104 : f32 to vector<8x16xf32>
    %224 = arith.mulf %222, %223 : vector<8x16xf32>
    %225 = vector.extract_strided_slice %169 {offsets = [0, 48], sizes = [8, 16], strides = [1, 1]} : vector<8x64xf32> to vector<8x16xf32>
    %226 = vector.extract_strided_slice %170 {offsets = [0, 48], sizes = [8, 16], strides = [1, 1]} : vector<8x64xf32> to vector<8x16xf32>
    %cst_105 = arith.constant dense<0.000000e+00> : vector<8x8xf32>
    %227 = tpu.matmul %224, %225, %cst_105 {dimension_numbers = #tpu.dot_dimension_numbers<[1], [1], [0], [0], [0, 0, 1, 0], [], []>} : vector<8x16xf32>, vector<8x16xf32>, vector<8x8xf32> -> vector<8x8xf32>
    %cst_106 = arith.constant dense<0xFF800000> : vector<8xf32>
    %228 = vector.multi_reduction <maximumf>, %227, %cst_106 [1] : vector<8x8xf32> to vector<8xf32>
    %229 = vector.shape_cast %228 : vector<8xf32> to vector<8x1xf32>
    %230 = vector.broadcast %229 : vector<8x1xf32> to vector<8x8xf32>
    %231 = arith.subf %227, %230 : vector<8x8xf32>
    %232 = math.exp %231 : vector<8x8xf32>
    %cst_107 = arith.constant dense<0.000000e+00> : vector<8xf32>
    %233 = vector.multi_reduction <add>, %232, %cst_107 [1] : vector<8x8xf32> to vector<8xf32>
    %234 = vector.shape_cast %233 : vector<8xf32> to vector<8x1xf32>
    %235 = vector.broadcast %234 : vector<8x1xf32> to vector<8x8xf32>
    %236 = arith.divf %232, %235 : vector<8x8xf32>
    %cst_108 = arith.constant dense<0.000000e+00> : vector<8x16xf32>
    %237 = tpu.matmul %236, %226, %cst_108 {dimension_numbers = #tpu.dot_dimension_numbers<[1], [0], [0], [1], [0, 0, 1, 1], [], []>} : vector<8x8xf32>, vector<8x16xf32>, vector<8x16xf32> -> vector<8x16xf32>
    %c16_109 = arith.constant 16 : index
    %c48_110 = arith.constant 48 : index
    %238 = vector.load %arg32[%c16_109, %c48_110] : memref<32x64xf32, #tpu.memory_space<vmem>>, vector<8x16xf32>
    tpu.vector_store %arg32[%c16_109, %c48_110], %237 {strides = array<i32>} : memref<32x64xf32, #tpu.memory_space<vmem>>, vector<8x16xf32>,
    %239 = vector.extract_strided_slice %23 {offsets = [24, 0], sizes = [8, 64], strides = [1, 1]} : vector<32x64xf32> to vector<8x64xf32>
    %240 = vector.extract_strided_slice %24 {offsets = [24, 0], sizes = [8, 64], strides = [1, 1]} : vector<32x64xf32> to vector<8x64xf32>
    %241 = vector.extract_strided_slice %25 {offsets = [24, 0], sizes = [8, 64], strides = [1, 1]} : vector<32x64xf32> to vector<8x64xf32>
    %242 = vector.extract_strided_slice %239 {offsets = [0, 0], sizes = [8, 16], strides = [1, 1]} : vector<8x64xf32> to vector<8x16xf32>
    %cst_111 = arith.constant 2.500000e-01 : f32
    %243 = vector.broadcast %cst_111 : f32 to vector<8x16xf32>
    %244 = arith.mulf %242, %243 : vector<8x16xf32>
    %245 = vector.extract_strided_slice %240 {offsets = [0, 0], sizes = [8, 16], strides = [1, 1]} : vector<8x64xf32> to vector<8x16xf32>
    %246 = vector.extract_strided_slice %241 {offsets = [0, 0], sizes = [8, 16], strides = [1, 1]} : vector<8x64xf32> to vector<8x16xf32>
    %cst_112 = arith.constant dense<0.000000e+00> : vector<8x8xf32>
    %247 = tpu.matmul %244, %245, %cst_112 {dimension_numbers = #tpu.dot_dimension_numbers<[1], [1], [0], [0], [0, 0, 1, 0], [], []>} : vector<8x16xf32>, vector<8x16xf32>, vector<8x8xf32> -> vector<8x8xf32>
    %cst_113 = arith.constant dense<0xFF800000> : vector<8xf32>
    %248 = vector.multi_reduction <maximumf>, %247, %cst_113 [1] : vector<8x8xf32> to vector<8xf32>
    %249 = vector.shape_cast %248 : vector<8xf32> to vector<8x1xf32>
    %250 = vector.broadcast %249 : vector<8x1xf32> to vector<8x8xf32>
    %251 = arith.subf %247, %250 : vector<8x8xf32>
    %252 = math.exp %251 : vector<8x8xf32>
    %cst_114 = arith.constant dense<0.000000e+00> : vector<8xf32>
    %253 = vector.multi_reduction <add>, %252, %cst_114 [1] : vector<8x8xf32> to vector<8xf32>
    %254 = vector.shape_cast %253 : vector<8xf32> to vector<8x1xf32>
    %255 = vector.broadcast %254 : vector<8x1xf32> to vector<8x8xf32>
    %256 = arith.divf %252, %255 : vector<8x8xf32>
    %cst_115 = arith.constant dense<0.000000e+00> : vector<8x16xf32>
    %257 = tpu.matmul %256, %246, %cst_115 {dimension_numbers = #tpu.dot_dimension_numbers<[1], [0], [0], [1], [0, 0, 1, 1], [], []>} : vector<8x8xf32>, vector<8x16xf32>, vector<8x16xf32> -> vector<8x16xf32>
    %c24 = arith.constant 24 : index
    %c0_116 = arith.constant 0 : index
    %258 = vector.load %arg32[%c24, %c0_116] : memref<32x64xf32, #tpu.memory_space<vmem>>, vector<8x16xf32>
    tpu.vector_store %arg32[%c24, %c0_116], %257 {strides = array<i32>} : memref<32x64xf32, #tpu.memory_space<vmem>>, vector<8x16xf32>,
    %259 = vector.extract_strided_slice %239 {offsets = [0, 16], sizes = [8, 16], strides = [1, 1]} : vector<8x64xf32> to vector<8x16xf32>
    %cst_117 = arith.constant 2.500000e-01 : f32
    %260 = vector.broadcast %cst_117 : f32 to vector<8x16xf32>
    %261 = arith.mulf %259, %260 : vector<8x16xf32>
    %262 = vector.extract_strided_slice %240 {offsets = [0, 16], sizes = [8, 16], strides = [1, 1]} : vector<8x64xf32> to vector<8x16xf32>
    %263 = vector.extract_strided_slice %241 {offsets = [0, 16], sizes = [8, 16], strides = [1, 1]} : vector<8x64xf32> to vector<8x16xf32>
    %cst_118 = arith.constant dense<0.000000e+00> : vector<8x8xf32>
    %264 = tpu.matmul %261, %262, %cst_118 {dimension_numbers = #tpu.dot_dimension_numbers<[1], [1], [0], [0], [0, 0, 1, 0], [], []>} : vector<8x16xf32>, vector<8x16xf32>, vector<8x8xf32> -> vector<8x8xf32>
    %cst_119 = arith.constant dense<0xFF800000> : vector<8xf32>
    %265 = vector.multi_reduction <maximumf>, %264, %cst_119 [1] : vector<8x8xf32> to vector<8xf32>
    %266 = vector.shape_cast %265 : vector<8xf32> to vector<8x1xf32>
    %267 = vector.broadcast %266 : vector<8x1xf32> to vector<8x8xf32>
    %268 = arith.subf %264, %267 : vector<8x8xf32>
    %269 = math.exp %268 : vector<8x8xf32>
    %cst_120 = arith.constant dense<0.000000e+00> : vector<8xf32>
    %270 = vector.multi_reduction <add>, %269, %cst_120 [1] : vector<8x8xf32> to vector<8xf32>
    %271 = vector.shape_cast %270 : vector<8xf32> to vector<8x1xf32>
    %272 = vector.broadcast %271 : vector<8x1xf32> to vector<8x8xf32>
    %273 = arith.divf %269, %272 : vector<8x8xf32>
    %cst_121 = arith.constant dense<0.000000e+00> : vector<8x16xf32>
    %274 = tpu.matmul %273, %263, %cst_121 {dimension_numbers = #tpu.dot_dimension_numbers<[1], [0], [0], [1], [0, 0, 1, 1], [], []>} : vector<8x8xf32>, vector<8x16xf32>, vector<8x16xf32> -> vector<8x16xf32>
    %c24_122 = arith.constant 24 : index
    %c16_123 = arith.constant 16 : index
    %275 = vector.load %arg32[%c24_122, %c16_123] : memref<32x64xf32, #tpu.memory_space<vmem>>, vector<8x16xf32>
    tpu.vector_store %arg32[%c24_122, %c16_123], %274 {strides = array<i32>} : memref<32x64xf32, #tpu.memory_space<vmem>>, vector<8x16xf32>,
    %276 = vector.extract_strided_slice %239 {offsets = [0, 32], sizes = [8, 16], strides = [1, 1]} : vector<8x64xf32> to vector<8x16xf32>
    %cst_124 = arith.constant 2.500000e-01 : f32
    %277 = vector.broadcast %cst_124 : f32 to vector<8x16xf32>
    %278 = arith.mulf %276, %277 : vector<8x16xf32>
    %279 = vector.extract_strided_slice %240 {offsets = [0, 32], sizes = [8, 16], strides = [1, 1]} : vector<8x64xf32> to vector<8x16xf32>
    %280 = vector.extract_strided_slice %241 {offsets = [0, 32], sizes = [8, 16], strides = [1, 1]} : vector<8x64xf32> to vector<8x16xf32>
    %cst_125 = arith.constant dense<0.000000e+00> : vector<8x8xf32>
    %281 = tpu.matmul %278, %279, %cst_125 {dimension_numbers = #tpu.dot_dimension_numbers<[1], [1], [0], [0], [0, 0, 1, 0], [], []>} : vector<8x16xf32>, vector<8x16xf32>, vector<8x8xf32> -> vector<8x8xf32>
    %cst_126 = arith.constant dense<0xFF800000> : vector<8xf32>
    %282 = vector.multi_reduction <maximumf>, %281, %cst_126 [1] : vector<8x8xf32> to vector<8xf32>
    %283 = vector.shape_cast %282 : vector<8xf32> to vector<8x1xf32>
    %284 = vector.broadcast %283 : vector<8x1xf32> to vector<8x8xf32>
    %285 = arith.subf %281, %284 : vector<8x8xf32>
    %286 = math.exp %285 : vector<8x8xf32>
    %cst_127 = arith.constant dense<0.000000e+00> : vector<8xf32>
    %287 = vector.multi_reduction <add>, %286, %cst_127 [1] : vector<8x8xf32> to vector<8xf32>
    %288 = vector.shape_cast %287 : vector<8xf32> to vector<8x1xf32>
    %289 = vector.broadcast %288 : vector<8x1xf32> to vector<8x8xf32>
    %290 = arith.divf %286, %289 : vector<8x8xf32>
    %cst_128 = arith.constant dense<0.000000e+00> : vector<8x16xf32>
    %291 = tpu.matmul %290, %280, %cst_128 {dimension_numbers = #tpu.dot_dimension_numbers<[1], [0], [0], [1], [0, 0, 1, 1], [], []>} : vector<8x8xf32>, vector<8x16xf32>, vector<8x16xf32> -> vector<8x16xf32>
    %c24_129 = arith.constant 24 : index
    %c32_130 = arith.constant 32 : index
    %292 = vector.load %arg32[%c24_129, %c32_130] : memref<32x64xf32, #tpu.memory_space<vmem>>, vector<8x16xf32>
    tpu.vector_store %arg32[%c24_129, %c32_130], %291 {strides = array<i32>} : memref<32x64xf32, #tpu.memory_space<vmem>>, vector<8x16xf32>,
    %293 = vector.extract_strided_slice %239 {offsets = [0, 48], sizes = [8, 16], strides = [1, 1]} : vector<8x64xf32> to vector<8x16xf32>
    %cst_131 = arith.constant 2.500000e-01 : f32
    %294 = vector.broadcast %cst_131 : f32 to vector<8x16xf32>
    %295 = arith.mulf %293, %294 : vector<8x16xf32>
    %296 = vector.extract_strided_slice %240 {offsets = [0, 48], sizes = [8, 16], strides = [1, 1]} : vector<8x64xf32> to vector<8x16xf32>
    %297 = vector.extract_strided_slice %241 {offsets = [0, 48], sizes = [8, 16], strides = [1, 1]} : vector<8x64xf32> to vector<8x16xf32>
    %cst_132 = arith.constant dense<0.000000e+00> : vector<8x8xf32>
    %298 = tpu.matmul %295, %296, %cst_132 {dimension_numbers = #tpu.dot_dimension_numbers<[1], [1], [0], [0], [0, 0, 1, 0], [], []>} : vector<8x16xf32>, vector<8x16xf32>, vector<8x8xf32> -> vector<8x8xf32>
    %cst_133 = arith.constant dense<0xFF800000> : vector<8xf32>
    %299 = vector.multi_reduction <maximumf>, %298, %cst_133 [1] : vector<8x8xf32> to vector<8xf32>
    %300 = vector.shape_cast %299 : vector<8xf32> to vector<8x1xf32>
    %301 = vector.broadcast %300 : vector<8x1xf32> to vector<8x8xf32>
    %302 = arith.subf %298, %301 : vector<8x8xf32>
    %303 = math.exp %302 : vector<8x8xf32>
    %cst_134 = arith.constant dense<0.000000e+00> : vector<8xf32>
    %304 = vector.multi_reduction <add>, %303, %cst_134 [1] : vector<8x8xf32> to vector<8xf32>
    %305 = vector.shape_cast %304 : vector<8xf32> to vector<8x1xf32>
    %306 = vector.broadcast %305 : vector<8x1xf32> to vector<8x8xf32>
    %307 = arith.divf %303, %306 : vector<8x8xf32>
    %cst_135 = arith.constant dense<0.000000e+00> : vector<8x16xf32>
    %308 = tpu.matmul %307, %297, %cst_135 {dimension_numbers = #tpu.dot_dimension_numbers<[1], [0], [0], [1], [0, 0, 1, 1], [], []>} : vector<8x8xf32>, vector<8x16xf32>, vector<8x16xf32> -> vector<8x16xf32>
    %c24_136 = arith.constant 24 : index
    %c48_137 = arith.constant 48 : index
    %309 = vector.load %arg32[%c24_136, %c48_137] : memref<32x64xf32, #tpu.memory_space<vmem>>, vector<8x16xf32>
    tpu.vector_store %arg32[%c24_136, %c48_137], %308 {strides = array<i32>} : memref<32x64xf32, #tpu.memory_space<vmem>>, vector<8x16xf32>,
    %c0_138 = arith.constant 0 : index
    %c0_139 = arith.constant 0 : index
    %310 = vector.load %arg32[%c0_138, %c0_139] : memref<32x64xf32, #tpu.memory_space<vmem>>, vector<32x64xf32>
    %cst_140 = arith.constant dense<0.000000e+00> : vector<32x64xf32>
    %311 = tpu.matmul %310, %10, %cst_140 {dimension_numbers = #tpu.dot_dimension_numbers<[1], [0], [0], [1], [0, 0, 1, 1], [], []>} : vector<32x64xf32>, vector<64x64xf32>, vector<32x64xf32> -> vector<32x64xf32>
    %312 = vector.broadcast %11 : vector<1x64xf32> to vector<32x64xf32>
    %313 = arith.addf %311, %312 : vector<32x64xf32>
    %314 = arith.addf %7, %313 : vector<32x64xf32>
    %cst_141 = arith.constant dense<0.000000e+00> : vector<32xf32>
    %315 = vector.multi_reduction <add>, %314, %cst_141 [1] : vector<32x64xf32> to vector<32xf32>
    %316 = vector.shape_cast %315 : vector<32xf32> to vector<32x1xf32>
    %cst_142 = arith.constant 6.400000e+01 : f32
    %317 = vector.broadcast %cst_142 : f32 to vector<32x1xf32>
    %318 = arith.divf %316, %317 : vector<32x1xf32>
    %319 = vector.broadcast %318 : vector<32x1xf32> to vector<32x64xf32>
    %320 = arith.subf %314, %319 : vector<32x64xf32>
    %321 = arith.mulf %320, %320 : vector<32x64xf32>
    %cst_143 = arith.constant dense<0.000000e+00> : vector<32xf32>
    %322 = vector.multi_reduction <add>, %321, %cst_143 [1] : vector<32x64xf32> to vector<32xf32>
    %323 = vector.shape_cast %322 : vector<32xf32> to vector<32x1xf32>
    %cst_144 = arith.constant 6.400000e+01 : f32
    %324 = vector.broadcast %cst_144 : f32 to vector<32x1xf32>
    %325 = arith.divf %323, %324 : vector<32x1xf32>
    %cst_145 = arith.constant 9.99999974E-6 : f32
    %326 = vector.broadcast %cst_145 : f32 to vector<32x1xf32>
    %327 = arith.addf %325, %326 : vector<32x1xf32>
    %328 = math.rsqrt %327 : vector<32x1xf32>
    %329 = vector.broadcast %328 : vector<32x1xf32> to vector<32x64xf32>
    %330 = arith.mulf %320, %329 : vector<32x64xf32>
    %331 = vector.broadcast %16 : vector<1x64xf32> to vector<32x64xf32>
    %332 = arith.mulf %330, %331 : vector<32x64xf32>
    %333 = vector.broadcast %17 : vector<1x64xf32> to vector<32x64xf32>
    %334 = arith.addf %332, %333 : vector<32x64xf32>
    %cst_146 = arith.constant dense<0.000000e+00> : vector<32x64xf32>
    %335 = tpu.matmul %334, %12, %cst_146 {dimension_numbers = #tpu.dot_dimension_numbers<[1], [0], [0], [1], [0, 0, 1, 1], [], []>} : vector<32x64xf32>, vector<64x64xf32>, vector<32x64xf32> -> vector<32x64xf32>
    %336 = vector.broadcast %13 : vector<1x64xf32> to vector<32x64xf32>
    %337 = arith.addf %335, %336 : vector<32x64xf32>
    %cst_147 = arith.constant 0.000000e+00 : f32
    %338 = vector.broadcast %cst_147 : f32 to vector<32x64xf32>
    %339 = arith.maximumf %337, %338 : vector<32x64xf32>
    %cst_148 = arith.constant dense<0.000000e+00> : vector<32x64xf32>
    %340 = tpu.matmul %339, %14, %cst_148 {dimension_numbers = #tpu.dot_dimension_numbers<[1], [0], [0], [1], [0, 0, 1, 1], [], []>} : vector<32x64xf32>, vector<64x64xf32>, vector<32x64xf32> -> vector<32x64xf32>
    %341 = vector.broadcast %15 : vector<1x64xf32> to vector<32x64xf32>
    %342 = arith.addf %340, %341 : vector<32x64xf32>
    %343 = arith.addf %334, %342 : vector<32x64xf32>
    %cst_149 = arith.constant dense<0.000000e+00> : vector<32xf32>
    %344 = vector.multi_reduction <add>, %343, %cst_149 [1] : vector<32x64xf32> to vector<32xf32>
    %345 = vector.shape_cast %344 : vector<32xf32> to vector<32x1xf32>
    %cst_150 = arith.constant 6.400000e+01 : f32
    %346 = vector.broadcast %cst_150 : f32 to vector<32x1xf32>
    %347 = arith.divf %345, %346 : vector<32x1xf32>
    %348 = vector.broadcast %347 : vector<32x1xf32> to vector<32x64xf32>
    %349 = arith.subf %343, %348 : vector<32x64xf32>
    %350 = arith.mulf %349, %349 : vector<32x64xf32>
    %cst_151 = arith.constant dense<0.000000e+00> : vector<32xf32>
    %351 = vector.multi_reduction <add>, %350, %cst_151 [1] : vector<32x64xf32> to vector<32xf32>
    %352 = vector.shape_cast %351 : vector<32xf32> to vector<32x1xf32>
    %cst_152 = arith.constant 6.400000e+01 : f32
    %353 = vector.broadcast %cst_152 : f32 to vector<32x1xf32>
    %354 = arith.divf %352, %353 : vector<32x1xf32>
    %cst_153 = arith.constant 9.99999974E-6 : f32
    %355 = vector.broadcast %cst_153 : f32 to vector<32x1xf32>
    %356 = arith.addf %354, %355 : vector<32x1xf32>
    %357 = math.rsqrt %356 : vector<32x1xf32>
    %358 = vector.broadcast %357 : vector<32x1xf32> to vector<32x64xf32>
    %359 = arith.mulf %349, %358 : vector<32x64xf32>
    %360 = vector.broadcast %18 : vector<1x64xf32> to vector<32x64xf32>
    %361 = arith.mulf %359, %360 : vector<32x64xf32>
    %362 = vector.broadcast %19 : vector<1x64xf32> to vector<32x64xf32>
    %363 = arith.addf %361, %362 : vector<32x64xf32>
    %c0_154 = arith.constant 0 : index
    %c0_155 = arith.constant 0 : index
    %364 = vector.load %arg16[%c0_154, %c0_155] : memref<64x192xf32, #tpu.memory_space<vmem>>, vector<64x192xf32>
    %c0_156 = arith.constant 0 : index
    %c0_157 = arith.constant 0 : index
    %365 = vector.load %arg17[%c0_156, %c0_157] : memref<1x192xf32, #tpu.memory_space<vmem>>, vector<1x192xf32>
    %c0_158 = arith.constant 0 : index
    %c0_159 = arith.constant 0 : index
    %366 = vector.load %arg18[%c0_158, %c0_159] : memref<64x64xf32, #tpu.memory_space<vmem>>, vector<64x64xf32>
    %c0_160 = arith.constant 0 : index
    %c0_161 = arith.constant 0 : index
    %367 = vector.load %arg19[%c0_160, %c0_161] : memref<1x64xf32, #tpu.memory_space<vmem>>, vector<1x64xf32>
    %c0_162 = arith.constant 0 : index
    %c0_163 = arith.constant 0 : index
    %368 = vector.load %arg20[%c0_162, %c0_163] : memref<64x64xf32, #tpu.memory_space<vmem>>, vector<64x64xf32>
    %c0_164 = arith.constant 0 : index
    %c0_165 = arith.constant 0 : index
    %369 = vector.load %arg21[%c0_164, %c0_165] : memref<1x64xf32, #tpu.memory_space<vmem>>, vector<1x64xf32>
    %c0_166 = arith.constant 0 : index
    %c0_167 = arith.constant 0 : index
    %370 = vector.load %arg22[%c0_166, %c0_167] : memref<64x64xf32, #tpu.memory_space<vmem>>, vector<64x64xf32>
    %c0_168 = arith.constant 0 : index
    %c0_169 = arith.constant 0 : index
    %371 = vector.load %arg23[%c0_168, %c0_169] : memref<1x64xf32, #tpu.memory_space<vmem>>, vector<1x64xf32>
    %c0_170 = arith.constant 0 : index
    %c0_171 = arith.constant 0 : index
    %372 = vector.load %arg24[%c0_170, %c0_171] : memref<1x64xf32, #tpu.memory_space<vmem>>, vector<1x64xf32>
    %c0_172 = arith.constant 0 : index
    %c0_173 = arith.constant 0 : index
    %373 = vector.load %arg25[%c0_172, %c0_173] : memref<1x64xf32, #tpu.memory_space<vmem>>, vector<1x64xf32>
    %c0_174 = arith.constant 0 : index
    %c0_175 = arith.constant 0 : index
    %374 = vector.load %arg26[%c0_174, %c0_175] : memref<1x64xf32, #tpu.memory_space<vmem>>, vector<1x64xf32>
    %c0_176 = arith.constant 0 : index
    %c0_177 = arith.constant 0 : index
    %375 = vector.load %arg27[%c0_176, %c0_177] : memref<1x64xf32, #tpu.memory_space<vmem>>, vector<1x64xf32>
    %cst_178 = arith.constant dense<0.000000e+00> : vector<32x192xf32>
    %376 = tpu.matmul %363, %364, %cst_178 {dimension_numbers = #tpu.dot_dimension_numbers<[1], [0], [0], [1], [0, 0, 1, 1], [], []>} : vector<32x64xf32>, vector<64x192xf32>, vector<32x192xf32> -> vector<32x192xf32>
    %377 = vector.broadcast %365 : vector<1x192xf32> to vector<32x192xf32>
    %378 = arith.addf %376, %377 : vector<32x192xf32>
    %379 = vector.extract_strided_slice %378 {offsets = [0, 0], sizes = [32, 64], strides = [1, 1]} : vector<32x192xf32> to vector<32x64xf32>
    %380 = vector.extract_strided_slice %378 {offsets = [0, 64], sizes = [32, 64], strides = [1, 1]} : vector<32x192xf32> to vector<32x64xf32>
    %381 = vector.extract_strided_slice %378 {offsets = [0, 128], sizes = [32, 64], strides = [1, 1]} : vector<32x192xf32> to vector<32x64xf32>
    %382 = vector.extract_strided_slice %379 {offsets = [0, 0], sizes = [8, 64], strides = [1, 1]} : vector<32x64xf32> to vector<8x64xf32>
    %383 = vector.extract_strided_slice %380 {offsets = [0, 0], sizes = [8, 64], strides = [1, 1]} : vector<32x64xf32> to vector<8x64xf32>
    %384 = vector.extract_strided_slice %381 {offsets = [0, 0], sizes = [8, 64], strides = [1, 1]} : vector<32x64xf32> to vector<8x64xf32>
    %385 = vector.extract_strided_slice %382 {offsets = [0, 0], sizes = [8, 16], strides = [1, 1]} : vector<8x64xf32> to vector<8x16xf32>
    %cst_179 = arith.constant 2.500000e-01 : f32
    %386 = vector.broadcast %cst_179 : f32 to vector<8x16xf32>
    %387 = arith.mulf %385, %386 : vector<8x16xf32>
    %388 = vector.extract_strided_slice %383 {offsets = [0, 0], sizes = [8, 16], strides = [1, 1]} : vector<8x64xf32> to vector<8x16xf32>
    %389 = vector.extract_strided_slice %384 {offsets = [0, 0], sizes = [8, 16], strides = [1, 1]} : vector<8x64xf32> to vector<8x16xf32>
    %cst_180 = arith.constant dense<0.000000e+00> : vector<8x8xf32>
    %390 = tpu.matmul %387, %388, %cst_180 {dimension_numbers = #tpu.dot_dimension_numbers<[1], [1], [0], [0], [0, 0, 1, 0], [], []>} : vector<8x16xf32>, vector<8x16xf32>, vector<8x8xf32> -> vector<8x8xf32>
    %cst_181 = arith.constant dense<0xFF800000> : vector<8xf32>
    %391 = vector.multi_reduction <maximumf>, %390, %cst_181 [1] : vector<8x8xf32> to vector<8xf32>
    %392 = vector.shape_cast %391 : vector<8xf32> to vector<8x1xf32>
    %393 = vector.broadcast %392 : vector<8x1xf32> to vector<8x8xf32>
    %394 = arith.subf %390, %393 : vector<8x8xf32>
    %395 = math.exp %394 : vector<8x8xf32>
    %cst_182 = arith.constant dense<0.000000e+00> : vector<8xf32>
    %396 = vector.multi_reduction <add>, %395, %cst_182 [1] : vector<8x8xf32> to vector<8xf32>
    %397 = vector.shape_cast %396 : vector<8xf32> to vector<8x1xf32>
    %398 = vector.broadcast %397 : vector<8x1xf32> to vector<8x8xf32>
    %399 = arith.divf %395, %398 : vector<8x8xf32>
    %cst_183 = arith.constant dense<0.000000e+00> : vector<8x16xf32>
    %400 = tpu.matmul %399, %389, %cst_183 {dimension_numbers = #tpu.dot_dimension_numbers<[1], [0], [0], [1], [0, 0, 1, 1], [], []>} : vector<8x8xf32>, vector<8x16xf32>, vector<8x16xf32> -> vector<8x16xf32>
    %c0_184 = arith.constant 0 : index
    %c0_185 = arith.constant 0 : index
    %401 = vector.load %arg32[%c0_184, %c0_185] : memref<32x64xf32, #tpu.memory_space<vmem>>, vector<8x16xf32>
    tpu.vector_store %arg32[%c0_184, %c0_185], %400 {strides = array<i32>} : memref<32x64xf32, #tpu.memory_space<vmem>>, vector<8x16xf32>,
    %402 = vector.extract_strided_slice %382 {offsets = [0, 16], sizes = [8, 16], strides = [1, 1]} : vector<8x64xf32> to vector<8x16xf32>
    %cst_186 = arith.constant 2.500000e-01 : f32
    %403 = vector.broadcast %cst_186 : f32 to vector<8x16xf32>
    %404 = arith.mulf %402, %403 : vector<8x16xf32>
    %405 = vector.extract_strided_slice %383 {offsets = [0, 16], sizes = [8, 16], strides = [1, 1]} : vector<8x64xf32> to vector<8x16xf32>
    %406 = vector.extract_strided_slice %384 {offsets = [0, 16], sizes = [8, 16], strides = [1, 1]} : vector<8x64xf32> to vector<8x16xf32>
    %cst_187 = arith.constant dense<0.000000e+00> : vector<8x8xf32>
    %407 = tpu.matmul %404, %405, %cst_187 {dimension_numbers = #tpu.dot_dimension_numbers<[1], [1], [0], [0], [0, 0, 1, 0], [], []>} : vector<8x16xf32>, vector<8x16xf32>, vector<8x8xf32> -> vector<8x8xf32>
    %cst_188 = arith.constant dense<0xFF800000> : vector<8xf32>
    %408 = vector.multi_reduction <maximumf>, %407, %cst_188 [1] : vector<8x8xf32> to vector<8xf32>
    %409 = vector.shape_cast %408 : vector<8xf32> to vector<8x1xf32>
    %410 = vector.broadcast %409 : vector<8x1xf32> to vector<8x8xf32>
    %411 = arith.subf %407, %410 : vector<8x8xf32>
    %412 = math.exp %411 : vector<8x8xf32>
    %cst_189 = arith.constant dense<0.000000e+00> : vector<8xf32>
    %413 = vector.multi_reduction <add>, %412, %cst_189 [1] : vector<8x8xf32> to vector<8xf32>
    %414 = vector.shape_cast %413 : vector<8xf32> to vector<8x1xf32>
    %415 = vector.broadcast %414 : vector<8x1xf32> to vector<8x8xf32>
    %416 = arith.divf %412, %415 : vector<8x8xf32>
    %cst_190 = arith.constant dense<0.000000e+00> : vector<8x16xf32>
    %417 = tpu.matmul %416, %406, %cst_190 {dimension_numbers = #tpu.dot_dimension_numbers<[1], [0], [0], [1], [0, 0, 1, 1], [], []>} : vector<8x8xf32>, vector<8x16xf32>, vector<8x16xf32> -> vector<8x16xf32>
    %c0_191 = arith.constant 0 : index
    %c16_192 = arith.constant 16 : index
    %418 = vector.load %arg32[%c0_191, %c16_192] : memref<32x64xf32, #tpu.memory_space<vmem>>, vector<8x16xf32>
    tpu.vector_store %arg32[%c0_191, %c16_192], %417 {strides = array<i32>} : memref<32x64xf32, #tpu.memory_space<vmem>>, vector<8x16xf32>,
    %419 = vector.extract_strided_slice %382 {offsets = [0, 32], sizes = [8, 16], strides = [1, 1]} : vector<8x64xf32> to vector<8x16xf32>
    %cst_193 = arith.constant 2.500000e-01 : f32
    %420 = vector.broadcast %cst_193 : f32 to vector<8x16xf32>
    %421 = arith.mulf %419, %420 : vector<8x16xf32>
    %422 = vector.extract_strided_slice %383 {offsets = [0, 32], sizes = [8, 16], strides = [1, 1]} : vector<8x64xf32> to vector<8x16xf32>
    %423 = vector.extract_strided_slice %384 {offsets = [0, 32], sizes = [8, 16], strides = [1, 1]} : vector<8x64xf32> to vector<8x16xf32>
    %cst_194 = arith.constant dense<0.000000e+00> : vector<8x8xf32>
    %424 = tpu.matmul %421, %422, %cst_194 {dimension_numbers = #tpu.dot_dimension_numbers<[1], [1], [0], [0], [0, 0, 1, 0], [], []>} : vector<8x16xf32>, vector<8x16xf32>, vector<8x8xf32> -> vector<8x8xf32>
    %cst_195 = arith.constant dense<0xFF800000> : vector<8xf32>
    %425 = vector.multi_reduction <maximumf>, %424, %cst_195 [1] : vector<8x8xf32> to vector<8xf32>
    %426 = vector.shape_cast %425 : vector<8xf32> to vector<8x1xf32>
    %427 = vector.broadcast %426 : vector<8x1xf32> to vector<8x8xf32>
    %428 = arith.subf %424, %427 : vector<8x8xf32>
    %429 = math.exp %428 : vector<8x8xf32>
    %cst_196 = arith.constant dense<0.000000e+00> : vector<8xf32>
    %430 = vector.multi_reduction <add>, %429, %cst_196 [1] : vector<8x8xf32> to vector<8xf32>
    %431 = vector.shape_cast %430 : vector<8xf32> to vector<8x1xf32>
    %432 = vector.broadcast %431 : vector<8x1xf32> to vector<8x8xf32>
    %433 = arith.divf %429, %432 : vector<8x8xf32>
    %cst_197 = arith.constant dense<0.000000e+00> : vector<8x16xf32>
    %434 = tpu.matmul %433, %423, %cst_197 {dimension_numbers = #tpu.dot_dimension_numbers<[1], [0], [0], [1], [0, 0, 1, 1], [], []>} : vector<8x8xf32>, vector<8x16xf32>, vector<8x16xf32> -> vector<8x16xf32>
    %c0_198 = arith.constant 0 : index
    %c32_199 = arith.constant 32 : index
    %435 = vector.load %arg32[%c0_198, %c32_199] : memref<32x64xf32, #tpu.memory_space<vmem>>, vector<8x16xf32>
    tpu.vector_store %arg32[%c0_198, %c32_199], %434 {strides = array<i32>} : memref<32x64xf32, #tpu.memory_space<vmem>>, vector<8x16xf32>,
    %436 = vector.extract_strided_slice %382 {offsets = [0, 48], sizes = [8, 16], strides = [1, 1]} : vector<8x64xf32> to vector<8x16xf32>
    %cst_200 = arith.constant 2.500000e-01 : f32
    %437 = vector.broadcast %cst_200 : f32 to vector<8x16xf32>
    %438 = arith.mulf %436, %437 : vector<8x16xf32>
    %439 = vector.extract_strided_slice %383 {offsets = [0, 48], sizes = [8, 16], strides = [1, 1]} : vector<8x64xf32> to vector<8x16xf32>
    %440 = vector.extract_strided_slice %384 {offsets = [0, 48], sizes = [8, 16], strides = [1, 1]} : vector<8x64xf32> to vector<8x16xf32>
    %cst_201 = arith.constant dense<0.000000e+00> : vector<8x8xf32>
    %441 = tpu.matmul %438, %439, %cst_201 {dimension_numbers = #tpu.dot_dimension_numbers<[1], [1], [0], [0], [0, 0, 1, 0], [], []>} : vector<8x16xf32>, vector<8x16xf32>, vector<8x8xf32> -> vector<8x8xf32>
    %cst_202 = arith.constant dense<0xFF800000> : vector<8xf32>
    %442 = vector.multi_reduction <maximumf>, %441, %cst_202 [1] : vector<8x8xf32> to vector<8xf32>
    %443 = vector.shape_cast %442 : vector<8xf32> to vector<8x1xf32>
    %444 = vector.broadcast %443 : vector<8x1xf32> to vector<8x8xf32>
    %445 = arith.subf %441, %444 : vector<8x8xf32>
    %446 = math.exp %445 : vector<8x8xf32>
    %cst_203 = arith.constant dense<0.000000e+00> : vector<8xf32>
    %447 = vector.multi_reduction <add>, %446, %cst_203 [1] : vector<8x8xf32> to vector<8xf32>
    %448 = vector.shape_cast %447 : vector<8xf32> to vector<8x1xf32>
    %449 = vector.broadcast %448 : vector<8x1xf32> to vector<8x8xf32>
    %450 = arith.divf %446, %449 : vector<8x8xf32>
    %cst_204 = arith.constant dense<0.000000e+00> : vector<8x16xf32>
    %451 = tpu.matmul %450, %440, %cst_204 {dimension_numbers = #tpu.dot_dimension_numbers<[1], [0], [0], [1], [0, 0, 1, 1], [], []>} : vector<8x8xf32>, vector<8x16xf32>, vector<8x16xf32> -> vector<8x16xf32>
    %c0_205 = arith.constant 0 : index
    %c48_206 = arith.constant 48 : index
    %452 = vector.load %arg32[%c0_205, %c48_206] : memref<32x64xf32, #tpu.memory_space<vmem>>, vector<8x16xf32>
    tpu.vector_store %arg32[%c0_205, %c48_206], %451 {strides = array<i32>} : memref<32x64xf32, #tpu.memory_space<vmem>>, vector<8x16xf32>,
    %453 = vector.extract_strided_slice %379 {offsets = [8, 0], sizes = [8, 64], strides = [1, 1]} : vector<32x64xf32> to vector<8x64xf32>
    %454 = vector.extract_strided_slice %380 {offsets = [8, 0], sizes = [8, 64], strides = [1, 1]} : vector<32x64xf32> to vector<8x64xf32>
    %455 = vector.extract_strided_slice %381 {offsets = [8, 0], sizes = [8, 64], strides = [1, 1]} : vector<32x64xf32> to vector<8x64xf32>
    %456 = vector.extract_strided_slice %453 {offsets = [0, 0], sizes = [8, 16], strides = [1, 1]} : vector<8x64xf32> to vector<8x16xf32>
    %cst_207 = arith.constant 2.500000e-01 : f32
    %457 = vector.broadcast %cst_207 : f32 to vector<8x16xf32>
    %458 = arith.mulf %456, %457 : vector<8x16xf32>
    %459 = vector.extract_strided_slice %454 {offsets = [0, 0], sizes = [8, 16], strides = [1, 1]} : vector<8x64xf32> to vector<8x16xf32>
    %460 = vector.extract_strided_slice %455 {offsets = [0, 0], sizes = [8, 16], strides = [1, 1]} : vector<8x64xf32> to vector<8x16xf32>
    %cst_208 = arith.constant dense<0.000000e+00> : vector<8x8xf32>
    %461 = tpu.matmul %458, %459, %cst_208 {dimension_numbers = #tpu.dot_dimension_numbers<[1], [1], [0], [0], [0, 0, 1, 0], [], []>} : vector<8x16xf32>, vector<8x16xf32>, vector<8x8xf32> -> vector<8x8xf32>
    %cst_209 = arith.constant dense<0xFF800000> : vector<8xf32>
    %462 = vector.multi_reduction <maximumf>, %461, %cst_209 [1] : vector<8x8xf32> to vector<8xf32>
    %463 = vector.shape_cast %462 : vector<8xf32> to vector<8x1xf32>
    %464 = vector.broadcast %463 : vector<8x1xf32> to vector<8x8xf32>
    %465 = arith.subf %461, %464 : vector<8x8xf32>
    %466 = math.exp %465 : vector<8x8xf32>
    %cst_210 = arith.constant dense<0.000000e+00> : vector<8xf32>
    %467 = vector.multi_reduction <add>, %466, %cst_210 [1] : vector<8x8xf32> to vector<8xf32>
    %468 = vector.shape_cast %467 : vector<8xf32> to vector<8x1xf32>
    %469 = vector.broadcast %468 : vector<8x1xf32> to vector<8x8xf32>
    %470 = arith.divf %466, %469 : vector<8x8xf32>
    %cst_211 = arith.constant dense<0.000000e+00> : vector<8x16xf32>
    %471 = tpu.matmul %470, %460, %cst_211 {dimension_numbers = #tpu.dot_dimension_numbers<[1], [0], [0], [1], [0, 0, 1, 1], [], []>} : vector<8x8xf32>, vector<8x16xf32>, vector<8x16xf32> -> vector<8x16xf32>
    %c8_212 = arith.constant 8 : index
    %c0_213 = arith.constant 0 : index
    %472 = vector.load %arg32[%c8_212, %c0_213] : memref<32x64xf32, #tpu.memory_space<vmem>>, vector<8x16xf32>
    tpu.vector_store %arg32[%c8_212, %c0_213], %471 {strides = array<i32>} : memref<32x64xf32, #tpu.memory_space<vmem>>, vector<8x16xf32>,
    %473 = vector.extract_strided_slice %453 {offsets = [0, 16], sizes = [8, 16], strides = [1, 1]} : vector<8x64xf32> to vector<8x16xf32>
    %cst_214 = arith.constant 2.500000e-01 : f32
    %474 = vector.broadcast %cst_214 : f32 to vector<8x16xf32>
    %475 = arith.mulf %473, %474 : vector<8x16xf32>
    %476 = vector.extract_strided_slice %454 {offsets = [0, 16], sizes = [8, 16], strides = [1, 1]} : vector<8x64xf32> to vector<8x16xf32>
    %477 = vector.extract_strided_slice %455 {offsets = [0, 16], sizes = [8, 16], strides = [1, 1]} : vector<8x64xf32> to vector<8x16xf32>
    %cst_215 = arith.constant dense<0.000000e+00> : vector<8x8xf32>
    %478 = tpu.matmul %475, %476, %cst_215 {dimension_numbers = #tpu.dot_dimension_numbers<[1], [1], [0], [0], [0, 0, 1, 0], [], []>} : vector<8x16xf32>, vector<8x16xf32>, vector<8x8xf32> -> vector<8x8xf32>
    %cst_216 = arith.constant dense<0xFF800000> : vector<8xf32>
    %479 = vector.multi_reduction <maximumf>, %478, %cst_216 [1] : vector<8x8xf32> to vector<8xf32>
    %480 = vector.shape_cast %479 : vector<8xf32> to vector<8x1xf32>
    %481 = vector.broadcast %480 : vector<8x1xf32> to vector<8x8xf32>
    %482 = arith.subf %478, %481 : vector<8x8xf32>
    %483 = math.exp %482 : vector<8x8xf32>
    %cst_217 = arith.constant dense<0.000000e+00> : vector<8xf32>
    %484 = vector.multi_reduction <add>, %483, %cst_217 [1] : vector<8x8xf32> to vector<8xf32>
    %485 = vector.shape_cast %484 : vector<8xf32> to vector<8x1xf32>
    %486 = vector.broadcast %485 : vector<8x1xf32> to vector<8x8xf32>
    %487 = arith.divf %483, %486 : vector<8x8xf32>
    %cst_218 = arith.constant dense<0.000000e+00> : vector<8x16xf32>
    %488 = tpu.matmul %487, %477, %cst_218 {dimension_numbers = #tpu.dot_dimension_numbers<[1], [0], [0], [1], [0, 0, 1, 1], [], []>} : vector<8x8xf32>, vector<8x16xf32>, vector<8x16xf32> -> vector<8x16xf32>
    %c8_219 = arith.constant 8 : index
    %c16_220 = arith.constant 16 : index
    %489 = vector.load %arg32[%c8_219, %c16_220] : memref<32x64xf32, #tpu.memory_space<vmem>>, vector<8x16xf32>
    tpu.vector_store %arg32[%c8_219, %c16_220], %488 {strides = array<i32>} : memref<32x64xf32, #tpu.memory_space<vmem>>, vector<8x16xf32>,
    %490 = vector.extract_strided_slice %453 {offsets = [0, 32], sizes = [8, 16], strides = [1, 1]} : vector<8x64xf32> to vector<8x16xf32>
    %cst_221 = arith.constant 2.500000e-01 : f32
    %491 = vector.broadcast %cst_221 : f32 to vector<8x16xf32>
    %492 = arith.mulf %490, %491 : vector<8x16xf32>
    %493 = vector.extract_strided_slice %454 {offsets = [0, 32], sizes = [8, 16], strides = [1, 1]} : vector<8x64xf32> to vector<8x16xf32>
    %494 = vector.extract_strided_slice %455 {offsets = [0, 32], sizes = [8, 16], strides = [1, 1]} : vector<8x64xf32> to vector<8x16xf32>
    %cst_222 = arith.constant dense<0.000000e+00> : vector<8x8xf32>
    %495 = tpu.matmul %492, %493, %cst_222 {dimension_numbers = #tpu.dot_dimension_numbers<[1], [1], [0], [0], [0, 0, 1, 0], [], []>} : vector<8x16xf32>, vector<8x16xf32>, vector<8x8xf32> -> vector<8x8xf32>
    %cst_223 = arith.constant dense<0xFF800000> : vector<8xf32>
    %496 = vector.multi_reduction <maximumf>, %495, %cst_223 [1] : vector<8x8xf32> to vector<8xf32>
    %497 = vector.shape_cast %496 : vector<8xf32> to vector<8x1xf32>
    %498 = vector.broadcast %497 : vector<8x1xf32> to vector<8x8xf32>
    %499 = arith.subf %495, %498 : vector<8x8xf32>
    %500 = math.exp %499 : vector<8x8xf32>
    %cst_224 = arith.constant dense<0.000000e+00> : vector<8xf32>
    %501 = vector.multi_reduction <add>, %500, %cst_224 [1] : vector<8x8xf32> to vector<8xf32>
    %502 = vector.shape_cast %501 : vector<8xf32> to vector<8x1xf32>
    %503 = vector.broadcast %502 : vector<8x1xf32> to vector<8x8xf32>
    %504 = arith.divf %500, %503 : vector<8x8xf32>
    %cst_225 = arith.constant dense<0.000000e+00> : vector<8x16xf32>
    %505 = tpu.matmul %504, %494, %cst_225 {dimension_numbers = #tpu.dot_dimension_numbers<[1], [0], [0], [1], [0, 0, 1, 1], [], []>} : vector<8x8xf32>, vector<8x16xf32>, vector<8x16xf32> -> vector<8x16xf32>
    %c8_226 = arith.constant 8 : index
    %c32_227 = arith.constant 32 : index
    %506 = vector.load %arg32[%c8_226, %c32_227] : memref<32x64xf32, #tpu.memory_space<vmem>>, vector<8x16xf32>
    tpu.vector_store %arg32[%c8_226, %c32_227], %505 {strides = array<i32>} : memref<32x64xf32, #tpu.memory_space<vmem>>, vector<8x16xf32>,
    %507 = vector.extract_strided_slice %453 {offsets = [0, 48], sizes = [8, 16], strides = [1, 1]} : vector<8x64xf32> to vector<8x16xf32>
    %cst_228 = arith.constant 2.500000e-01 : f32
    %508 = vector.broadcast %cst_228 : f32 to vector<8x16xf32>
    %509 = arith.mulf %507, %508 : vector<8x16xf32>
    %510 = vector.extract_strided_slice %454 {offsets = [0, 48], sizes = [8, 16], strides = [1, 1]} : vector<8x64xf32> to vector<8x16xf32>
    %511 = vector.extract_strided_slice %455 {offsets = [0, 48], sizes = [8, 16], strides = [1, 1]} : vector<8x64xf32> to vector<8x16xf32>
    %cst_229 = arith.constant dense<0.000000e+00> : vector<8x8xf32>
    %512 = tpu.matmul %509, %510, %cst_229 {dimension_numbers = #tpu.dot_dimension_numbers<[1], [1], [0], [0], [0, 0, 1, 0], [], []>} : vector<8x16xf32>, vector<8x16xf32>, vector<8x8xf32> -> vector<8x8xf32>
    %cst_230 = arith.constant dense<0xFF800000> : vector<8xf32>
    %513 = vector.multi_reduction <maximumf>, %512, %cst_230 [1] : vector<8x8xf32> to vector<8xf32>
    %514 = vector.shape_cast %513 : vector<8xf32> to vector<8x1xf32>
    %515 = vector.broadcast %514 : vector<8x1xf32> to vector<8x8xf32>
    %516 = arith.subf %512, %515 : vector<8x8xf32>
    %517 = math.exp %516 : vector<8x8xf32>
    %cst_231 = arith.constant dense<0.000000e+00> : vector<8xf32>
    %518 = vector.multi_reduction <add>, %517, %cst_231 [1] : vector<8x8xf32> to vector<8xf32>
    %519 = vector.shape_cast %518 : vector<8xf32> to vector<8x1xf32>
    %520 = vector.broadcast %519 : vector<8x1xf32> to vector<8x8xf32>
    %521 = arith.divf %517, %520 : vector<8x8xf32>
    %cst_232 = arith.constant dense<0.000000e+00> : vector<8x16xf32>
    %522 = tpu.matmul %521, %511, %cst_232 {dimension_numbers = #tpu.dot_dimension_numbers<[1], [0], [0], [1], [0, 0, 1, 1], [], []>} : vector<8x8xf32>, vector<8x16xf32>, vector<8x16xf32> -> vector<8x16xf32>
    %c8_233 = arith.constant 8 : index
    %c48_234 = arith.constant 48 : index
    %523 = vector.load %arg32[%c8_233, %c48_234] : memref<32x64xf32, #tpu.memory_space<vmem>>, vector<8x16xf32>
    tpu.vector_store %arg32[%c8_233, %c48_234], %522 {strides = array<i32>} : memref<32x64xf32, #tpu.memory_space<vmem>>, vector<8x16xf32>,
    %524 = vector.extract_strided_slice %379 {offsets = [16, 0], sizes = [8, 64], strides = [1, 1]} : vector<32x64xf32> to vector<8x64xf32>
    %525 = vector.extract_strided_slice %380 {offsets = [16, 0], sizes = [8, 64], strides = [1, 1]} : vector<32x64xf32> to vector<8x64xf32>
    %526 = vector.extract_strided_slice %381 {offsets = [16, 0], sizes = [8, 64], strides = [1, 1]} : vector<32x64xf32> to vector<8x64xf32>
    %527 = vector.extract_strided_slice %524 {offsets = [0, 0], sizes = [8, 16], strides = [1, 1]} : vector<8x64xf32> to vector<8x16xf32>
    %cst_235 = arith.constant 2.500000e-01 : f32
    %528 = vector.broadcast %cst_235 : f32 to vector<8x16xf32>
    %529 = arith.mulf %527, %528 : vector<8x16xf32>
    %530 = vector.extract_strided_slice %525 {offsets = [0, 0], sizes = [8, 16], strides = [1, 1]} : vector<8x64xf32> to vector<8x16xf32>
    %531 = vector.extract_strided_slice %526 {offsets = [0, 0], sizes = [8, 16], strides = [1, 1]} : vector<8x64xf32> to vector<8x16xf32>
    %cst_236 = arith.constant dense<0.000000e+00> : vector<8x8xf32>
    %532 = tpu.matmul %529, %530, %cst_236 {dimension_numbers = #tpu.dot_dimension_numbers<[1], [1], [0], [0], [0, 0, 1, 0], [], []>} : vector<8x16xf32>, vector<8x16xf32>, vector<8x8xf32> -> vector<8x8xf32>
    %cst_237 = arith.constant dense<0xFF800000> : vector<8xf32>
    %533 = vector.multi_reduction <maximumf>, %532, %cst_237 [1] : vector<8x8xf32> to vector<8xf32>
    %534 = vector.shape_cast %533 : vector<8xf32> to vector<8x1xf32>
    %535 = vector.broadcast %534 : vector<8x1xf32> to vector<8x8xf32>
    %536 = arith.subf %532, %535 : vector<8x8xf32>
    %537 = math.exp %536 : vector<8x8xf32>
    %cst_238 = arith.constant dense<0.000000e+00> : vector<8xf32>
    %538 = vector.multi_reduction <add>, %537, %cst_238 [1] : vector<8x8xf32> to vector<8xf32>
    %539 = vector.shape_cast %538 : vector<8xf32> to vector<8x1xf32>
    %540 = vector.broadcast %539 : vector<8x1xf32> to vector<8x8xf32>
    %541 = arith.divf %537, %540 : vector<8x8xf32>
    %cst_239 = arith.constant dense<0.000000e+00> : vector<8x16xf32>
    %542 = tpu.matmul %541, %531, %cst_239 {dimension_numbers = #tpu.dot_dimension_numbers<[1], [0], [0], [1], [0, 0, 1, 1], [], []>} : vector<8x8xf32>, vector<8x16xf32>, vector<8x16xf32> -> vector<8x16xf32>
    %c16_240 = arith.constant 16 : index
    %c0_241 = arith.constant 0 : index
    %543 = vector.load %arg32[%c16_240, %c0_241] : memref<32x64xf32, #tpu.memory_space<vmem>>, vector<8x16xf32>
    tpu.vector_store %arg32[%c16_240, %c0_241], %542 {strides = array<i32>} : memref<32x64xf32, #tpu.memory_space<vmem>>, vector<8x16xf32>,
    %544 = vector.extract_strided_slice %524 {offsets = [0, 16], sizes = [8, 16], strides = [1, 1]} : vector<8x64xf32> to vector<8x16xf32>
    %cst_242 = arith.constant 2.500000e-01 : f32
    %545 = vector.broadcast %cst_242 : f32 to vector<8x16xf32>
    %546 = arith.mulf %544, %545 : vector<8x16xf32>
    %547 = vector.extract_strided_slice %525 {offsets = [0, 16], sizes = [8, 16], strides = [1, 1]} : vector<8x64xf32> to vector<8x16xf32>
    %548 = vector.extract_strided_slice %526 {offsets = [0, 16], sizes = [8, 16], strides = [1, 1]} : vector<8x64xf32> to vector<8x16xf32>
    %cst_243 = arith.constant dense<0.000000e+00> : vector<8x8xf32>
    %549 = tpu.matmul %546, %547, %cst_243 {dimension_numbers = #tpu.dot_dimension_numbers<[1], [1], [0], [0], [0, 0, 1, 0], [], []>} : vector<8x16xf32>, vector<8x16xf32>, vector<8x8xf32> -> vector<8x8xf32>
    %cst_244 = arith.constant dense<0xFF800000> : vector<8xf32>
    %550 = vector.multi_reduction <maximumf>, %549, %cst_244 [1] : vector<8x8xf32> to vector<8xf32>
    %551 = vector.shape_cast %550 : vector<8xf32> to vector<8x1xf32>
    %552 = vector.broadcast %551 : vector<8x1xf32> to vector<8x8xf32>
    %553 = arith.subf %549, %552 : vector<8x8xf32>
    %554 = math.exp %553 : vector<8x8xf32>
    %cst_245 = arith.constant dense<0.000000e+00> : vector<8xf32>
    %555 = vector.multi_reduction <add>, %554, %cst_245 [1] : vector<8x8xf32> to vector<8xf32>
    %556 = vector.shape_cast %555 : vector<8xf32> to vector<8x1xf32>
    %557 = vector.broadcast %556 : vector<8x1xf32> to vector<8x8xf32>
    %558 = arith.divf %554, %557 : vector<8x8xf32>
    %cst_246 = arith.constant dense<0.000000e+00> : vector<8x16xf32>
    %559 = tpu.matmul %558, %548, %cst_246 {dimension_numbers = #tpu.dot_dimension_numbers<[1], [0], [0], [1], [0, 0, 1, 1], [], []>} : vector<8x8xf32>, vector<8x16xf32>, vector<8x16xf32> -> vector<8x16xf32>
    %c16_247 = arith.constant 16 : index
    %c16_248 = arith.constant 16 : index
    %560 = vector.load %arg32[%c16_247, %c16_248] : memref<32x64xf32, #tpu.memory_space<vmem>>, vector<8x16xf32>
    tpu.vector_store %arg32[%c16_247, %c16_248], %559 {strides = array<i32>} : memref<32x64xf32, #tpu.memory_space<vmem>>, vector<8x16xf32>,
    %561 = vector.extract_strided_slice %524 {offsets = [0, 32], sizes = [8, 16], strides = [1, 1]} : vector<8x64xf32> to vector<8x16xf32>
    %cst_249 = arith.constant 2.500000e-01 : f32
    %562 = vector.broadcast %cst_249 : f32 to vector<8x16xf32>
    %563 = arith.mulf %561, %562 : vector<8x16xf32>
    %564 = vector.extract_strided_slice %525 {offsets = [0, 32], sizes = [8, 16], strides = [1, 1]} : vector<8x64xf32> to vector<8x16xf32>
    %565 = vector.extract_strided_slice %526 {offsets = [0, 32], sizes = [8, 16], strides = [1, 1]} : vector<8x64xf32> to vector<8x16xf32>
    %cst_250 = arith.constant dense<0.000000e+00> : vector<8x8xf32>
    %566 = tpu.matmul %563, %564, %cst_250 {dimension_numbers = #tpu.dot_dimension_numbers<[1], [1], [0], [0], [0, 0, 1, 0], [], []>} : vector<8x16xf32>, vector<8x16xf32>, vector<8x8xf32> -> vector<8x8xf32>
    %cst_251 = arith.constant dense<0xFF800000> : vector<8xf32>
    %567 = vector.multi_reduction <maximumf>, %566, %cst_251 [1] : vector<8x8xf32> to vector<8xf32>
    %568 = vector.shape_cast %567 : vector<8xf32> to vector<8x1xf32>
    %569 = vector.broadcast %568 : vector<8x1xf32> to vector<8x8xf32>
    %570 = arith.subf %566, %569 : vector<8x8xf32>
    %571 = math.exp %570 : vector<8x8xf32>
    %cst_252 = arith.constant dense<0.000000e+00> : vector<8xf32>
    %572 = vector.multi_reduction <add>, %571, %cst_252 [1] : vector<8x8xf32> to vector<8xf32>
    %573 = vector.shape_cast %572 : vector<8xf32> to vector<8x1xf32>
    %574 = vector.broadcast %573 : vector<8x1xf32> to vector<8x8xf32>
    %575 = arith.divf %571, %574 : vector<8x8xf32>
    %cst_253 = arith.constant dense<0.000000e+00> : vector<8x16xf32>
    %576 = tpu.matmul %575, %565, %cst_253 {dimension_numbers = #tpu.dot_dimension_numbers<[1], [0], [0], [1], [0, 0, 1, 1], [], []>} : vector<8x8xf32>, vector<8x16xf32>, vector<8x16xf32> -> vector<8x16xf32>
    %c16_254 = arith.constant 16 : index
    %c32_255 = arith.constant 32 : index
    %577 = vector.load %arg32[%c16_254, %c32_255] : memref<32x64xf32, #tpu.memory_space<vmem>>, vector<8x16xf32>
    tpu.vector_store %arg32[%c16_254, %c32_255], %576 {strides = array<i32>} : memref<32x64xf32, #tpu.memory_space<vmem>>, vector<8x16xf32>,
    %578 = vector.extract_strided_slice %524 {offsets = [0, 48], sizes = [8, 16], strides = [1, 1]} : vector<8x64xf32> to vector<8x16xf32>
    %cst_256 = arith.constant 2.500000e-01 : f32
    %579 = vector.broadcast %cst_256 : f32 to vector<8x16xf32>
    %580 = arith.mulf %578, %579 : vector<8x16xf32>
    %581 = vector.extract_strided_slice %525 {offsets = [0, 48], sizes = [8, 16], strides = [1, 1]} : vector<8x64xf32> to vector<8x16xf32>
    %582 = vector.extract_strided_slice %526 {offsets = [0, 48], sizes = [8, 16], strides = [1, 1]} : vector<8x64xf32> to vector<8x16xf32>
    %cst_257 = arith.constant dense<0.000000e+00> : vector<8x8xf32>
    %583 = tpu.matmul %580, %581, %cst_257 {dimension_numbers = #tpu.dot_dimension_numbers<[1], [1], [0], [0], [0, 0, 1, 0], [], []>} : vector<8x16xf32>, vector<8x16xf32>, vector<8x8xf32> -> vector<8x8xf32>
    %cst_258 = arith.constant dense<0xFF800000> : vector<8xf32>
    %584 = vector.multi_reduction <maximumf>, %583, %cst_258 [1] : vector<8x8xf32> to vector<8xf32>
    %585 = vector.shape_cast %584 : vector<8xf32> to vector<8x1xf32>
    %586 = vector.broadcast %585 : vector<8x1xf32> to vector<8x8xf32>
    %587 = arith.subf %583, %586 : vector<8x8xf32>
    %588 = math.exp %587 : vector<8x8xf32>
    %cst_259 = arith.constant dense<0.000000e+00> : vector<8xf32>
    %589 = vector.multi_reduction <add>, %588, %cst_259 [1] : vector<8x8xf32> to vector<8xf32>
    %590 = vector.shape_cast %589 : vector<8xf32> to vector<8x1xf32>
    %591 = vector.broadcast %590 : vector<8x1xf32> to vector<8x8xf32>
    %592 = arith.divf %588, %591 : vector<8x8xf32>
    %cst_260 = arith.constant dense<0.000000e+00> : vector<8x16xf32>
    %593 = tpu.matmul %592, %582, %cst_260 {dimension_numbers = #tpu.dot_dimension_numbers<[1], [0], [0], [1], [0, 0, 1, 1], [], []>} : vector<8x8xf32>, vector<8x16xf32>, vector<8x16xf32> -> vector<8x16xf32>
    %c16_261 = arith.constant 16 : index
    %c48_262 = arith.constant 48 : index
    %594 = vector.load %arg32[%c16_261, %c48_262] : memref<32x64xf32, #tpu.memory_space<vmem>>, vector<8x16xf32>
    tpu.vector_store %arg32[%c16_261, %c48_262], %593 {strides = array<i32>} : memref<32x64xf32, #tpu.memory_space<vmem>>, vector<8x16xf32>,
    %595 = vector.extract_strided_slice %379 {offsets = [24, 0], sizes = [8, 64], strides = [1, 1]} : vector<32x64xf32> to vector<8x64xf32>
    %596 = vector.extract_strided_slice %380 {offsets = [24, 0], sizes = [8, 64], strides = [1, 1]} : vector<32x64xf32> to vector<8x64xf32>
    %597 = vector.extract_strided_slice %381 {offsets = [24, 0], sizes = [8, 64], strides = [1, 1]} : vector<32x64xf32> to vector<8x64xf32>
    %598 = vector.extract_strided_slice %595 {offsets = [0, 0], sizes = [8, 16], strides = [1, 1]} : vector<8x64xf32> to vector<8x16xf32>
    %cst_263 = arith.constant 2.500000e-01 : f32
    %599 = vector.broadcast %cst_263 : f32 to vector<8x16xf32>
    %600 = arith.mulf %598, %599 : vector<8x16xf32>
    %601 = vector.extract_strided_slice %596 {offsets = [0, 0], sizes = [8, 16], strides = [1, 1]} : vector<8x64xf32> to vector<8x16xf32>
    %602 = vector.extract_strided_slice %597 {offsets = [0, 0], sizes = [8, 16], strides = [1, 1]} : vector<8x64xf32> to vector<8x16xf32>
    %cst_264 = arith.constant dense<0.000000e+00> : vector<8x8xf32>
    %603 = tpu.matmul %600, %601, %cst_264 {dimension_numbers = #tpu.dot_dimension_numbers<[1], [1], [0], [0], [0, 0, 1, 0], [], []>} : vector<8x16xf32>, vector<8x16xf32>, vector<8x8xf32> -> vector<8x8xf32>
    %cst_265 = arith.constant dense<0xFF800000> : vector<8xf32>
    %604 = vector.multi_reduction <maximumf>, %603, %cst_265 [1] : vector<8x8xf32> to vector<8xf32>
    %605 = vector.shape_cast %604 : vector<8xf32> to vector<8x1xf32>
    %606 = vector.broadcast %605 : vector<8x1xf32> to vector<8x8xf32>
    %607 = arith.subf %603, %606 : vector<8x8xf32>
    %608 = math.exp %607 : vector<8x8xf32>
    %cst_266 = arith.constant dense<0.000000e+00> : vector<8xf32>
    %609 = vector.multi_reduction <add>, %608, %cst_266 [1] : vector<8x8xf32> to vector<8xf32>
    %610 = vector.shape_cast %609 : vector<8xf32> to vector<8x1xf32>
    %611 = vector.broadcast %610 : vector<8x1xf32> to vector<8x8xf32>
    %612 = arith.divf %608, %611 : vector<8x8xf32>
    %cst_267 = arith.constant dense<0.000000e+00> : vector<8x16xf32>
    %613 = tpu.matmul %612, %602, %cst_267 {dimension_numbers = #tpu.dot_dimension_numbers<[1], [0], [0], [1], [0, 0, 1, 1], [], []>} : vector<8x8xf32>, vector<8x16xf32>, vector<8x16xf32> -> vector<8x16xf32>
    %c24_268 = arith.constant 24 : index
    %c0_269 = arith.constant 0 : index
    %614 = vector.load %arg32[%c24_268, %c0_269] : memref<32x64xf32, #tpu.memory_space<vmem>>, vector<8x16xf32>
    tpu.vector_store %arg32[%c24_268, %c0_269], %613 {strides = array<i32>} : memref<32x64xf32, #tpu.memory_space<vmem>>, vector<8x16xf32>,
    %615 = vector.extract_strided_slice %595 {offsets = [0, 16], sizes = [8, 16], strides = [1, 1]} : vector<8x64xf32> to vector<8x16xf32>
    %cst_270 = arith.constant 2.500000e-01 : f32
    %616 = vector.broadcast %cst_270 : f32 to vector<8x16xf32>
    %617 = arith.mulf %615, %616 : vector<8x16xf32>
    %618 = vector.extract_strided_slice %596 {offsets = [0, 16], sizes = [8, 16], strides = [1, 1]} : vector<8x64xf32> to vector<8x16xf32>
    %619 = vector.extract_strided_slice %597 {offsets = [0, 16], sizes = [8, 16], strides = [1, 1]} : vector<8x64xf32> to vector<8x16xf32>
    %cst_271 = arith.constant dense<0.000000e+00> : vector<8x8xf32>
    %620 = tpu.matmul %617, %618, %cst_271 {dimension_numbers = #tpu.dot_dimension_numbers<[1], [1], [0], [0], [0, 0, 1, 0], [], []>} : vector<8x16xf32>, vector<8x16xf32>, vector<8x8xf32> -> vector<8x8xf32>
    %cst_272 = arith.constant dense<0xFF800000> : vector<8xf32>
    %621 = vector.multi_reduction <maximumf>, %620, %cst_272 [1] : vector<8x8xf32> to vector<8xf32>
    %622 = vector.shape_cast %621 : vector<8xf32> to vector<8x1xf32>
    %623 = vector.broadcast %622 : vector<8x1xf32> to vector<8x8xf32>
    %624 = arith.subf %620, %623 : vector<8x8xf32>
    %625 = math.exp %624 : vector<8x8xf32>
    %cst_273 = arith.constant dense<0.000000e+00> : vector<8xf32>
    %626 = vector.multi_reduction <add>, %625, %cst_273 [1] : vector<8x8xf32> to vector<8xf32>
    %627 = vector.shape_cast %626 : vector<8xf32> to vector<8x1xf32>
    %628 = vector.broadcast %627 : vector<8x1xf32> to vector<8x8xf32>
    %629 = arith.divf %625, %628 : vector<8x8xf32>
    %cst_274 = arith.constant dense<0.000000e+00> : vector<8x16xf32>
    %630 = tpu.matmul %629, %619, %cst_274 {dimension_numbers = #tpu.dot_dimension_numbers<[1], [0], [0], [1], [0, 0, 1, 1], [], []>} : vector<8x8xf32>, vector<8x16xf32>, vector<8x16xf32> -> vector<8x16xf32>
    %c24_275 = arith.constant 24 : index
    %c16_276 = arith.constant 16 : index
    %631 = vector.load %arg32[%c24_275, %c16_276] : memref<32x64xf32, #tpu.memory_space<vmem>>, vector<8x16xf32>
    tpu.vector_store %arg32[%c24_275, %c16_276], %630 {strides = array<i32>} : memref<32x64xf32, #tpu.memory_space<vmem>>, vector<8x16xf32>,
    %632 = vector.extract_strided_slice %595 {offsets = [0, 32], sizes = [8, 16], strides = [1, 1]} : vector<8x64xf32> to vector<8x16xf32>
    %cst_277 = arith.constant 2.500000e-01 : f32
    %633 = vector.broadcast %cst_277 : f32 to vector<8x16xf32>
    %634 = arith.mulf %632, %633 : vector<8x16xf32>
    %635 = vector.extract_strided_slice %596 {offsets = [0, 32], sizes = [8, 16], strides = [1, 1]} : vector<8x64xf32> to vector<8x16xf32>
    %636 = vector.extract_strided_slice %597 {offsets = [0, 32], sizes = [8, 16], strides = [1, 1]} : vector<8x64xf32> to vector<8x16xf32>
    %cst_278 = arith.constant dense<0.000000e+00> : vector<8x8xf32>
    %637 = tpu.matmul %634, %635, %cst_278 {dimension_numbers = #tpu.dot_dimension_numbers<[1], [1], [0], [0], [0, 0, 1, 0], [], []>} : vector<8x16xf32>, vector<8x16xf32>, vector<8x8xf32> -> vector<8x8xf32>
    %cst_279 = arith.constant dense<0xFF800000> : vector<8xf32>
    %638 = vector.multi_reduction <maximumf>, %637, %cst_279 [1] : vector<8x8xf32> to vector<8xf32>
    %639 = vector.shape_cast %638 : vector<8xf32> to vector<8x1xf32>
    %640 = vector.broadcast %639 : vector<8x1xf32> to vector<8x8xf32>
    %641 = arith.subf %637, %640 : vector<8x8xf32>
    %642 = math.exp %641 : vector<8x8xf32>
    %cst_280 = arith.constant dense<0.000000e+00> : vector<8xf32>
    %643 = vector.multi_reduction <add>, %642, %cst_280 [1] : vector<8x8xf32> to vector<8xf32>
    %644 = vector.shape_cast %643 : vector<8xf32> to vector<8x1xf32>
    %645 = vector.broadcast %644 : vector<8x1xf32> to vector<8x8xf32>
    %646 = arith.divf %642, %645 : vector<8x8xf32>
    %cst_281 = arith.constant dense<0.000000e+00> : vector<8x16xf32>
    %647 = tpu.matmul %646, %636, %cst_281 {dimension_numbers = #tpu.dot_dimension_numbers<[1], [0], [0], [1], [0, 0, 1, 1], [], []>} : vector<8x8xf32>, vector<8x16xf32>, vector<8x16xf32> -> vector<8x16xf32>
    %c24_282 = arith.constant 24 : index
    %c32_283 = arith.constant 32 : index
    %648 = vector.load %arg32[%c24_282, %c32_283] : memref<32x64xf32, #tpu.memory_space<vmem>>, vector<8x16xf32>
    tpu.vector_store %arg32[%c24_282, %c32_283], %647 {strides = array<i32>} : memref<32x64xf32, #tpu.memory_space<vmem>>, vector<8x16xf32>,
    %649 = vector.extract_strided_slice %595 {offsets = [0, 48], sizes = [8, 16], strides = [1, 1]} : vector<8x64xf32> to vector<8x16xf32>
    %cst_284 = arith.constant 2.500000e-01 : f32
    %650 = vector.broadcast %cst_284 : f32 to vector<8x16xf32>
    %651 = arith.mulf %649, %650 : vector<8x16xf32>
    %652 = vector.extract_strided_slice %596 {offsets = [0, 48], sizes = [8, 16], strides = [1, 1]} : vector<8x64xf32> to vector<8x16xf32>
    %653 = vector.extract_strided_slice %597 {offsets = [0, 48], sizes = [8, 16], strides = [1, 1]} : vector<8x64xf32> to vector<8x16xf32>
    %cst_285 = arith.constant dense<0.000000e+00> : vector<8x8xf32>
    %654 = tpu.matmul %651, %652, %cst_285 {dimension_numbers = #tpu.dot_dimension_numbers<[1], [1], [0], [0], [0, 0, 1, 0], [], []>} : vector<8x16xf32>, vector<8x16xf32>, vector<8x8xf32> -> vector<8x8xf32>
    %cst_286 = arith.constant dense<0xFF800000> : vector<8xf32>
    %655 = vector.multi_reduction <maximumf>, %654, %cst_286 [1] : vector<8x8xf32> to vector<8xf32>
    %656 = vector.shape_cast %655 : vector<8xf32> to vector<8x1xf32>
    %657 = vector.broadcast %656 : vector<8x1xf32> to vector<8x8xf32>
    %658 = arith.subf %654, %657 : vector<8x8xf32>
    %659 = math.exp %658 : vector<8x8xf32>
    %cst_287 = arith.constant dense<0.000000e+00> : vector<8xf32>
    %660 = vector.multi_reduction <add>, %659, %cst_287 [1] : vector<8x8xf32> to vector<8xf32>
    %661 = vector.shape_cast %660 : vector<8xf32> to vector<8x1xf32>
    %662 = vector.broadcast %661 : vector<8x1xf32> to vector<8x8xf32>
    %663 = arith.divf %659, %662 : vector<8x8xf32>
    %cst_288 = arith.constant dense<0.000000e+00> : vector<8x16xf32>
    %664 = tpu.matmul %663, %653, %cst_288 {dimension_numbers = #tpu.dot_dimension_numbers<[1], [0], [0], [1], [0, 0, 1, 1], [], []>} : vector<8x8xf32>, vector<8x16xf32>, vector<8x16xf32> -> vector<8x16xf32>
    %c24_289 = arith.constant 24 : index
    %c48_290 = arith.constant 48 : index
    %665 = vector.load %arg32[%c24_289, %c48_290] : memref<32x64xf32, #tpu.memory_space<vmem>>, vector<8x16xf32>
    tpu.vector_store %arg32[%c24_289, %c48_290], %664 {strides = array<i32>} : memref<32x64xf32, #tpu.memory_space<vmem>>, vector<8x16xf32>,
    %c0_291 = arith.constant 0 : index
    %c0_292 = arith.constant 0 : index
    %666 = vector.load %arg32[%c0_291, %c0_292] : memref<32x64xf32, #tpu.memory_space<vmem>>, vector<32x64xf32>
    %cst_293 = arith.constant dense<0.000000e+00> : vector<32x64xf32>
    %667 = tpu.matmul %666, %366, %cst_293 {dimension_numbers = #tpu.dot_dimension_numbers<[1], [0], [0], [1], [0, 0, 1, 1], [], []>} : vector<32x64xf32>, vector<64x64xf32>, vector<32x64xf32> -> vector<32x64xf32>
    %668 = vector.broadcast %367 : vector<1x64xf32> to vector<32x64xf32>
    %669 = arith.addf %667, %668 : vector<32x64xf32>
    %670 = arith.addf %363, %669 : vector<32x64xf32>
    %cst_294 = arith.constant dense<0.000000e+00> : vector<32xf32>
    %671 = vector.multi_reduction <add>, %670, %cst_294 [1] : vector<32x64xf32> to vector<32xf32>
    %672 = vector.shape_cast %671 : vector<32xf32> to vector<32x1xf32>
    %cst_295 = arith.constant 6.400000e+01 : f32
    %673 = vector.broadcast %cst_295 : f32 to vector<32x1xf32>
    %674 = arith.divf %672, %673 : vector<32x1xf32>
    %675 = vector.broadcast %674 : vector<32x1xf32> to vector<32x64xf32>
    %676 = arith.subf %670, %675 : vector<32x64xf32>
    %677 = arith.mulf %676, %676 : vector<32x64xf32>
    %cst_296 = arith.constant dense<0.000000e+00> : vector<32xf32>
    %678 = vector.multi_reduction <add>, %677, %cst_296 [1] : vector<32x64xf32> to vector<32xf32>
    %679 = vector.shape_cast %678 : vector<32xf32> to vector<32x1xf32>
    %cst_297 = arith.constant 6.400000e+01 : f32
    %680 = vector.broadcast %cst_297 : f32 to vector<32x1xf32>
    %681 = arith.divf %679, %680 : vector<32x1xf32>
    %cst_298 = arith.constant 9.99999974E-6 : f32
    %682 = vector.broadcast %cst_298 : f32 to vector<32x1xf32>
    %683 = arith.addf %681, %682 : vector<32x1xf32>
    %684 = math.rsqrt %683 : vector<32x1xf32>
    %685 = vector.broadcast %684 : vector<32x1xf32> to vector<32x64xf32>
    %686 = arith.mulf %676, %685 : vector<32x64xf32>
    %687 = vector.broadcast %372 : vector<1x64xf32> to vector<32x64xf32>
    %688 = arith.mulf %686, %687 : vector<32x64xf32>
    %689 = vector.broadcast %373 : vector<1x64xf32> to vector<32x64xf32>
    %690 = arith.addf %688, %689 : vector<32x64xf32>
    %cst_299 = arith.constant dense<0.000000e+00> : vector<32x64xf32>
    %691 = tpu.matmul %690, %368, %cst_299 {dimension_numbers = #tpu.dot_dimension_numbers<[1], [0], [0], [1], [0, 0, 1, 1], [], []>} : vector<32x64xf32>, vector<64x64xf32>, vector<32x64xf32> -> vector<32x64xf32>
    %692 = vector.broadcast %369 : vector<1x64xf32> to vector<32x64xf32>
    %693 = arith.addf %691, %692 : vector<32x64xf32>
    %cst_300 = arith.constant 0.000000e+00 : f32
    %694 = vector.broadcast %cst_300 : f32 to vector<32x64xf32>
    %695 = arith.maximumf %693, %694 : vector<32x64xf32>
    %cst_301 = arith.constant dense<0.000000e+00> : vector<32x64xf32>
    %696 = tpu.matmul %695, %370, %cst_301 {dimension_numbers = #tpu.dot_dimension_numbers<[1], [0], [0], [1], [0, 0, 1, 1], [], []>} : vector<32x64xf32>, vector<64x64xf32>, vector<32x64xf32> -> vector<32x64xf32>
    %697 = vector.broadcast %371 : vector<1x64xf32> to vector<32x64xf32>
    %698 = arith.addf %696, %697 : vector<32x64xf32>
    %699 = arith.addf %690, %698 : vector<32x64xf32>
    %cst_302 = arith.constant dense<0.000000e+00> : vector<32xf32>
    %700 = vector.multi_reduction <add>, %699, %cst_302 [1] : vector<32x64xf32> to vector<32xf32>
    %701 = vector.shape_cast %700 : vector<32xf32> to vector<32x1xf32>
    %cst_303 = arith.constant 6.400000e+01 : f32
    %702 = vector.broadcast %cst_303 : f32 to vector<32x1xf32>
    %703 = arith.divf %701, %702 : vector<32x1xf32>
    %704 = vector.broadcast %703 : vector<32x1xf32> to vector<32x64xf32>
    %705 = arith.subf %699, %704 : vector<32x64xf32>
    %706 = arith.mulf %705, %705 : vector<32x64xf32>
    %cst_304 = arith.constant dense<0.000000e+00> : vector<32xf32>
    %707 = vector.multi_reduction <add>, %706, %cst_304 [1] : vector<32x64xf32> to vector<32xf32>
    %708 = vector.shape_cast %707 : vector<32xf32> to vector<32x1xf32>
    %cst_305 = arith.constant 6.400000e+01 : f32
    %709 = vector.broadcast %cst_305 : f32 to vector<32x1xf32>
    %710 = arith.divf %708, %709 : vector<32x1xf32>
    %cst_306 = arith.constant 9.99999974E-6 : f32
    %711 = vector.broadcast %cst_306 : f32 to vector<32x1xf32>
    %712 = arith.addf %710, %711 : vector<32x1xf32>
    %713 = math.rsqrt %712 : vector<32x1xf32>
    %714 = vector.broadcast %713 : vector<32x1xf32> to vector<32x64xf32>
    %715 = arith.mulf %705, %714 : vector<32x64xf32>
    %716 = vector.broadcast %374 : vector<1x64xf32> to vector<32x64xf32>
    %717 = arith.mulf %715, %716 : vector<32x64xf32>
    %718 = vector.broadcast %375 : vector<1x64xf32> to vector<32x64xf32>
    %719 = arith.addf %717, %718 : vector<32x64xf32>
    %c0_307 = arith.constant 0 : index
    %c0_308 = arith.constant 0 : index
    %720 = vector.load %arg28[%c0_307, %c0_308] : memref<4x32xf32, #tpu.memory_space<vmem>>, vector<4x32xf32>
    %cst_309 = arith.constant dense<0.000000e+00> : vector<4x64xf32>
    %721 = tpu.matmul %720, %719, %cst_309 {dimension_numbers = #tpu.dot_dimension_numbers<[1], [0], [0], [1], [0, 0, 1, 1], [], []>} : vector<4x32xf32>, vector<32x64xf32>, vector<4x64xf32> -> vector<4x64xf32>
    %c0_310 = arith.constant 0 : index
    %c0_311 = arith.constant 0 : index
    %722 = vector.load %arg29[%c0_310, %c0_311] : memref<64x10xf32, #tpu.memory_space<vmem>>, vector<64x10xf32>
    %cst_312 = arith.constant dense<0.000000e+00> : vector<4x10xf32>
    %723 = tpu.matmul %721, %722, %cst_312 {dimension_numbers = #tpu.dot_dimension_numbers<[1], [0], [0], [1], [0, 0, 1, 1], [], []>} : vector<4x64xf32>, vector<64x10xf32>, vector<4x10xf32> -> vector<4x10xf32>
    %c0_313 = arith.constant 0 : index
    %c0_314 = arith.constant 0 : index
    %724 = vector.load %arg30[%c0_313, %c0_314] : memref<1x10xf32, #tpu.memory_space<vmem>>, vector<1x10xf32>
    %725 = vector.broadcast %724 : vector<1x10xf32> to vector<4x10xf32>
    %726 = arith.addf %723, %725 : vector<4x10xf32>
    %c0_315 = arith.constant 0 : index
    %c0_316 = arith.constant 0 : index
    %727 = vector.load %arg31[%c0_315, %c0_316] : memref<4x10xf32, #tpu.memory_space<vmem>>, vector<4x10xf32>
    tpu.vector_store %arg31[%c0_315, %c0_316], %726 {strides = array<i32>} : memref<4x10xf32, #tpu.memory_space<vmem>>, vector<4x10xf32>,
    return
  }
  func.func @transform_0(%arg0: i32) -> (i32, i32) {
    %c0_i32 = arith.constant 0 : i32
    %c0_i32_0 = arith.constant 0 : i32
    %c0_i32_1 = arith.constant 0 : i32
    return %c0_i32, %c0_i32_0 : i32, i32
  }
  func.func @transform_1(%arg0: i32) -> (i32, i32) {
    %c0_i32 = arith.constant 0 : i32
    %c0_i32_0 = arith.constant 0 : i32
    %c0_i32_1 = arith.constant 0 : i32
    return %c0_i32, %c0_i32_0 : i32, i32
  }
  func.func @transform_2(%arg0: i32) -> (i32, i32) {
    %c0_i32 = arith.constant 0 : i32
    %c0_i32_0 = arith.constant 0 : i32
    %c0_i32_1 = arith.constant 0 : i32
    return %c0_i32, %c0_i32_0 : i32, i32
  }
  func.func @transform_3(%arg0: i32) -> (i32, i32) {
    %c0_i32 = arith.constant 0 : i32
    %c0_i32_0 = arith.constant 0 : i32
    %c0_i32_1 = arith.constant 0 : i32
    return %c0_i32, %c0_i32_0 : i32, i32
  }
  func.func @transform_4(%arg0: i32) -> (i32, i32) {
    %c0_i32 = arith.constant 0 : i32
    %c0_i32_0 = arith.constant 0 : i32
    %c0_i32_1 = arith.constant 0 : i32
    return %c0_i32, %c0_i32_0 : i32, i32
  }
  func.func @transform_5(%arg0: i32) -> (i32, i32) {
    %c0_i32 = arith.constant 0 : i32
    %c0_i32_0 = arith.constant 0 : i32
    %c0_i32_1 = arith.constant 0 : i32
    return %c0_i32, %c0_i32_0 : i32, i32
  }
  func.func @transform_6(%arg0: i32) -> (i32, i32) {
    %c0_i32 = arith.constant 0 : i32
    %c0_i32_0 = arith.constant 0 : i32
    %c0_i32_1 = arith.constant 0 : i32
    return %c0_i32, %c0_i32_0 : i32, i32
  }
  func.func @transform_7(%arg0: i32) -> (i32, i32) {
    %c0_i32 = arith.constant 0 : i32
    %c0_i32_0 = arith.constant 0 : i32
    %c0_i32_1 = arith.constant 0 : i32
    return %c0_i32, %c0_i32_0 : i32, i32
  }
  func.func @transform_8(%arg0: i32) -> (i32, i32) {
    %c0_i32 = arith.constant 0 : i32
    %c0_i32_0 = arith.constant 0 : i32
    %c0_i32_1 = arith.constant 0 : i32
    return %c0_i32, %c0_i32_0 : i32, i32
  }
  func.func @transform_9(%arg0: i32) -> (i32, i32) {
    %c0_i32 = arith.constant 0 : i32
    %c0_i32_0 = arith.constant 0 : i32
    %c0_i32_1 = arith.constant 0 : i32
    return %c0_i32, %c0_i32_0 : i32, i32
  }
  func.func @transform_10(%arg0: i32) -> (i32, i32) {
    %c0_i32 = arith.constant 0 : i32
    %c0_i32_0 = arith.constant 0 : i32
    %c0_i32_1 = arith.constant 0 : i32
    return %c0_i32, %c0_i32_0 : i32, i32
  }
  func.func @transform_11(%arg0: i32) -> (i32, i32) {
    %c0_i32 = arith.constant 0 : i32
    %c0_i32_0 = arith.constant 0 : i32
    %c0_i32_1 = arith.constant 0 : i32
    return %c0_i32, %c0_i32_0 : i32, i32
  }
  func.func @transform_12(%arg0: i32) -> (i32, i32) {
    %c0_i32 = arith.constant 0 : i32
    %c0_i32_0 = arith.constant 0 : i32
    %c0_i32_1 = arith.constant 0 : i32
    return %c0_i32, %c0_i32_0 : i32, i32
  }
  func.func @transform_13(%arg0: i32) -> (i32, i32) {
    %c0_i32 = arith.constant 0 : i32
    %c0_i32_0 = arith.constant 0 : i32
    %c0_i32_1 = arith.constant 0 : i32
    return %c0_i32, %c0_i32_0 : i32, i32
  }
  func.func @transform_14(%arg0: i32) -> (i32, i32) {
    %c0_i32 = arith.constant 0 : i32
    %c0_i32_0 = arith.constant 0 : i32
    %c0_i32_1 = arith.constant 0 : i32
    return %c0_i32, %c0_i32_0 : i32, i32
  }
  func.func @transform_15(%arg0: i32) -> (i32, i32) {
    %c0_i32 = arith.constant 0 : i32
    %c0_i32_0 = arith.constant 0 : i32
    %c0_i32_1 = arith.constant 0 : i32
    return %c0_i32, %c0_i32_0 : i32, i32
  }
  func.func @transform_16(%arg0: i32) -> (i32, i32) {
    %c0_i32 = arith.constant 0 : i32
    %c0_i32_0 = arith.constant 0 : i32
    %c0_i32_1 = arith.constant 0 : i32
    return %c0_i32, %c0_i32_0 : i32, i32
  }
  func.func @transform_17(%arg0: i32) -> (i32, i32) {
    %c0_i32 = arith.constant 0 : i32
    %c0_i32_0 = arith.constant 0 : i32
    %c0_i32_1 = arith.constant 0 : i32
    return %c0_i32, %c0_i32_0 : i32, i32
  }
  func.func @transform_18(%arg0: i32) -> (i32, i32) {
    %c0_i32 = arith.constant 0 : i32
    %c0_i32_0 = arith.constant 0 : i32
    %c0_i32_1 = arith.constant 0 : i32
    return %c0_i32, %c0_i32_0 : i32, i32
  }
  func.func @transform_19(%arg0: i32) -> (i32, i32) {
    %c0_i32 = arith.constant 0 : i32
    %c0_i32_0 = arith.constant 0 : i32
    %c0_i32_1 = arith.constant 0 : i32
    return %c0_i32, %c0_i32_0 : i32, i32
  }
  func.func @transform_20(%arg0: i32) -> (i32, i32) {
    %c0_i32 = arith.constant 0 : i32
    %c0_i32_0 = arith.constant 0 : i32
    %c0_i32_1 = arith.constant 0 : i32
    return %c0_i32, %c0_i32_0 : i32, i32
  }
  func.func @transform_21(%arg0: i32) -> (i32, i32) {
    %c0_i32 = arith.constant 0 : i32
    %c0_i32_0 = arith.constant 0 : i32
    %c0_i32_1 = arith.constant 0 : i32
    return %c0_i32, %c0_i32_0 : i32, i32
  }
  func.func @transform_22(%arg0: i32) -> (i32, i32) {
    %c0_i32 = arith.constant 0 : i32
    %c0_i32_0 = arith.constant 0 : i32
    %c0_i32_1 = arith.constant 0 : i32
    return %c0_i32, %c0_i32_0 : i32, i32
  }
  func.func @transform_23(%arg0: i32) -> (i32, i32) {
    %c0_i32 = arith.constant 0 : i32
    %c0_i32_0 = arith.constant 0 : i32
    %c0_i32_1 = arith.constant 0 : i32
    return %c0_i32, %c0_i32_0 : i32, i32
  }
  func.func @transform_24(%arg0: i32) -> (i32, i32) {
    %c0_i32 = arith.constant 0 : i32
    %c0_i32_0 = arith.constant 0 : i32
    %c0_i32_1 = arith.constant 0 : i32
    return %c0_i32, %c0_i32_0 : i32, i32
  }
  func.func @transform_25(%arg0: i32) -> (i32, i32) {
    %c0_i32 = arith.constant 0 : i32
    %c0_i32_0 = arith.constant 0 : i32
    %c0_i32_1 = arith.constant 0 : i32
    return %c0_i32, %c0_i32_0 : i32, i32
  }
  func.func @transform_26(%arg0: i32) -> (i32, i32) {
    %c0_i32 = arith.constant 0 : i32
    %c0_i32_0 = arith.constant 0 : i32
    %c0_i32_1 = arith.constant 0 : i32
    return %c0_i32, %c0_i32_0 : i32, i32
  }
  func.func @transform_27(%arg0: i32) -> (i32, i32) {
    %c0_i32 = arith.constant 0 : i32
    %c0_i32_0 = arith.constant 0 : i32
    %c0_i32_1 = arith.constant 0 : i32
    return %c0_i32, %c0_i32_0 : i32, i32
  }
  func.func @transform_28(%arg0: i32) -> (i32, i32) {
    %c0_i32 = arith.constant 0 : i32
    %c0_i32_0 = arith.constant 0 : i32
    %c0_i32_1 = arith.constant 0 : i32
    return %c0_i32, %c0_i32_0 : i32, i32
  }
  func.func @transform_29(%arg0: i32) -> (i32, i32) {
    %c0_i32 = arith.constant 0 : i32
    %c0_i32_0 = arith.constant 0 : i32
    %c0_i32_1 = arith.constant 0 : i32
    return %c0_i32, %c0_i32_0 : i32, i32
  }
  func.func @transform_30(%arg0: i32) -> (i32, i32) {
    %c0_i32 = arith.constant 0 : i32
    %c0_i32_0 = arith.constant 0 : i32
    %c0_i32_1 = arith.constant 0 : i32
    return %c0_i32, %c0_i32_0 : i32, i32
  }
}

</mosaic_0001>

<llo_original>
// kernel: tpu_custom_call.1
$region0: #{tpu_custom_call.1}
  #allocation0 [shape = 'u32[]', space=smem, size = 0x4, offset = 0x4, fixed_abs, tag = 'smem constant byte address 0x4 - core index']
  #allocation1 [shape = 'u32[72,128]{1,0:T(1,128)}', space=vmem, size = 0x9000, scoped, tag = 'internal scratch']
  #allocation2 [shape = 'f32[32,64]{1,0:T(8,128)}', space=vmem, size = 0x4000, scoped, tag = 'scratch operand']
  %s0 = inlined_call_operand.smem [shape: u32[31], index: -1, kind: input, shape index: {}]
  %s1 = sld [smem:[%s0]]
  %s2 = scalar_lea.smem %s0, 1
  %s3 = sld [smem:[%s2]]
  %s4 = scalar_lea.smem %s0, 2
  %s5 = sld [smem:[%s4]]
  %s6 = scalar_lea.smem %s0, 3
  %s7 = sld [smem:[%s6]]
  %s8 = scalar_lea.smem %s0, 4
  %s9 = sld [smem:[%s8]]
  %s10 = scalar_lea.smem %s0, 5
  %s11 = sld [smem:[%s10]]
  %s12 = scalar_lea.smem %s0, 6
  %s13 = sld [smem:[%s12]]
  %s14 = scalar_lea.smem %s0, 7
  %s15 = sld [smem:[%s14]]
  %s16 = scalar_lea.smem %s0, 8
  %s17 = sld [smem:[%s16]]
  %s18 = scalar_lea.smem %s0, 9
  %s19 = sld [smem:[%s18]]
  %s20 = scalar_lea.smem %s0, 10
  %s21 = sld [smem:[%s20]]
  %s22 = scalar_lea.smem %s0, 11
  %s23 = sld [smem:[%s22]]
  %s24 = scalar_lea.smem %s0, 12
  %s25 = sld [smem:[%s24]]
  %s26 = scalar_lea.smem %s0, 13
  %s27 = sld [smem:[%s26]]
  %s28 = scalar_lea.smem %s0, 14
  %s29 = sld [smem:[%s28]]
  %s30 = scalar_lea.smem %s0, 15
  %s31 = sld [smem:[%s30]]
  %s32 = scalar_lea.smem %s0, 16
  %s33 = sld [smem:[%s32]]
  %s34 = scalar_lea.smem %s0, 17
  %s35 = sld [smem:[%s34]]
  %s36 = scalar_lea.smem %s0, 18
  %s37 = sld [smem:[%s36]]
  %s38 = scalar_lea.smem %s0, 19
  %s39 = sld [smem:[%s38]]
  %s40 = scalar_lea.smem %s0, 20
  %s41 = sld [smem:[%s40]]
  %s42 = scalar_lea.smem %s0, 21
  %s43 = sld [smem:[%s42]]
  %s44 = scalar_lea.smem %s0, 22
  %s45 = sld [smem:[%s44]]
  %s46 = scalar_lea.smem %s0, 23
  %s47 = sld [smem:[%s46]]
  %s48 = scalar_lea.smem %s0, 24
  %s49 = sld [smem:[%s48]]
  %s50 = scalar_lea.smem %s0, 25
  %s51 = sld [smem:[%s50]]
  %s52 = scalar_lea.smem %s0, 26
  %s53 = sld [smem:[%s52]]
  %s54 = scalar_lea.smem %s0, 27
  %s55 = sld [smem:[%s54]]
  %s56 = scalar_lea.smem %s0, 28
  %s57 = sld [smem:[%s56]]
  %s58 = scalar_lea.smem %s0, 29
  %s59 = sld [smem:[%s58]]
  %s60 = scalar_lea.smem %s0, 30
  %s61 = sld [smem:[%s60]]
  %s62 = sld [smem:[#allocation0]]
  $region166: #{tpu_custom_call.1} parent=0
    _
  %s64 = ssub.s32 1, %s62
  %s65 = scalar_select 0, %s64, %s62
  $region1: #{tpu_custom_call.1} parent=0
    #allocation3 [shape = 'u8[16384]{0}', space=vmem, size = 0x4000, scoped, tag = 'input window, operand 0, single buffered']
    #allocation4 [shape = 's32[1]{0}', space=sflag, size = 0x4, scoped, tag = 'scoped memory for tpu_custom_call.1']
    #allocation5 [shape = 's32[1]{0}', space=sflag, size = 0x4, scoped, tag = 'scoped memory for tpu_custom_call.1']
    #allocation6 [shape = 'u8[16384]{0}', space=vmem, size = 0x4000, scoped, tag = 'input window, operand 1, single buffered']
    #allocation7 [shape = 's32[1]{0}', space=sflag, size = 0x4, scoped, tag = 'scoped memory for tpu_custom_call.1']
    #allocation8 [shape = 'u8[65536]{0}', space=vmem, size = 0x10000, scoped, tag = 'input window, operand 3, single buffered']
    #allocation9 [shape = 'u8[32768]{0}', space=vmem, size = 0x8000, scoped, tag = 'input window, operand 7, single buffered']
    #allocation10 [shape = 's32[1]{0}', space=sflag, size = 0x4, scoped, tag = 'scoped memory for tpu_custom_call.1']
    #allocation11 [shape = 'u8[32768]{0}', space=vmem, size = 0x8000, scoped, tag = 'input window, operand 9, single buffered']
    #allocation12 [shape = 'u8[65536]{0}', space=vmem, size = 0x10000, scoped, tag = 'input window, operand 15, single buffered']
    #allocation13 [shape = 's32[1]{0}', space=sflag, size = 0x4, scoped, tag = 'scoped memory for tpu_custom_call.1']
    #allocation14 [shape = 'u8[32768]{0}', space=vmem, size = 0x8000, scoped, tag = 'input window, operand 17, single buffered']
    #allocation15 [shape = 'u8[32768]{0}', space=vmem, size = 0x8000, scoped, tag = 'input window, operand 19, single buffered']
    #allocation16 [shape = 's32[1]{0}', space=sflag, size = 0x4, scoped, tag = 'scoped memory for tpu_custom_call.1']
    #allocation17 [shape = 'u8[32768]{0}', space=vmem, size = 0x8000, scoped, tag = 'input window, operand 21, single buffered']
    #allocation18 [shape = 'u8[2048]{0}', space=vmem, size = 0x800, scoped, tag = 'output window, operand 0, single buffered']
    %66 = vsyncpa [#allocation4], 0
    %67 = vsyncpa [#allocation7], 0
    %68 = vsyncpa [#allocation10], 0
    %69 = vsyncpa [#allocation13], 0
    %70 = vsyncpa [#allocation16], 0
    %71 = vsyncpa [#allocation5], 0
    // Predicated region
    $region2: #{tpu_custom_call.1} parent=1 // pred_check
      _
    $region3: #{tpu_custom_call.1} parent=1 // pred_check_branch
      %73 = sbr.rel (0) target = $region5
    $region4: #{tpu_custom_call.1} parent=1 // pred_region
      %75 = vsyncadd [#allocation4], 0
      %s76 = sshll.u32 %s1, 4
      %s77 = int_to_ptr.hbm [resolvable:$true] %s76
      %s78 = sshll.u32 [#allocation3], 4
      %s79 = int_to_ptr.vmem [resolvable:$true] %s78
      %84 = dma.hbm_to_vmem [thread:$0]  %s77, 512, %s79, [#allocation4], 128, 128, 8
    $region5: #{tpu_custom_call.1} parent=1 // pred_fallthru
      _
    // Predicated region
    $region6: #{tpu_custom_call.1} parent=1 // pred_check
      _
    $region7: #{tpu_custom_call.1} parent=1 // pred_check_branch
      %86 = sbr.rel (0) target = $region9
    $region8: #{tpu_custom_call.1} parent=1 // pred_region
      %88 = vsyncadd [#allocation7], 0
      %s89 = sshll.u32 %s3, 4
      %s90 = int_to_ptr.hbm [resolvable:$true] %s89
      %s91 = sshll.u32 [#allocation6], 4
      %s92 = int_to_ptr.vmem [resolvable:$true] %s91
      %97 = dma.hbm_to_vmem [thread:$0]  %s90, 512, %s92, [#allocation7], 128, 128, 8
    $region9: #{tpu_custom_call.1} parent=1 // pred_fallthru
      _
    // Predicated region
    $region10: #{tpu_custom_call.1} parent=1 // pred_check
      _
    $region11: #{tpu_custom_call.1} parent=1 // pred_check_branch
      %99 = sbr.rel (0) target = $region13
    $region12: #{tpu_custom_call.1} parent=1 // pred_region
      _
    $region13: #{tpu_custom_call.1} parent=1 // pred_fallthru
      _
    // Predicated region
    $region14: #{tpu_custom_call.1} parent=1 // pred_check
      _
    $region15: #{tpu_custom_call.1} parent=1 // pred_check_branch
      %101 = sbr.rel (0) target = $region17
    $region16: #{tpu_custom_call.1} parent=1 // pred_region
      %103 = vsyncadd [#allocation7], 0
      %s104 = sshll.u32 %s7, 4
      %s105 = int_to_ptr.hbm [resolvable:$true] %s104
      %s106 = sshll.u32 [#allocation8], 4
      %s107 = int_to_ptr.vmem [resolvable:$true] %s106
      %112 = dma.hbm_to_vmem [thread:$0]  %s105, 2048, %s107, [#allocation7], 256, 256, 16
    $region17: #{tpu_custom_call.1} parent=1 // pred_fallthru
      _
    // Predicated region
    $region18: #{tpu_custom_call.1} parent=1 // pred_check
      _
    $region19: #{tpu_custom_call.1} parent=1 // pred_check_branch
      %114 = sbr.rel (0) target = $region21
    $region20: #{tpu_custom_call.1} parent=1 // pred_region
      _
    $region21: #{tpu_custom_call.1} parent=1 // pred_fallthru
      _
    // Predicated region
    $region22: #{tpu_custom_call.1} parent=1 // pred_check
      _
    $region23: #{tpu_custom_call.1} parent=1 // pred_check_branch
      %116 = sbr.rel (0) target = $region25
    $region24: #{tpu_custom_call.1} parent=1 // pred_region
      _
    $region25: #{tpu_custom_call.1} parent=1 // pred_fallthru
      _
    // Predicated region
    $region26: #{tpu_custom_call.1} parent=1 // pred_check
      _
    $region27: #{tpu_custom_call.1} parent=1 // pred_check_branch
      %118 = sbr.rel (0) target = $region29
    $region28: #{tpu_custom_call.1} parent=1 // pred_region
      _
    $region29: #{tpu_custom_call.1} parent=1 // pred_fallthru
      _
    // Predicated region
    $region30: #{tpu_custom_call.1} parent=1 // pred_check
      _
    $region31: #{tpu_custom_call.1} parent=1 // pred_check_branch
      %120 = sbr.rel (0) target = $region33
    $region32: #{tpu_custom_call.1} parent=1 // pred_region
      %122 = vsyncadd [#allocation10], 0
      %s123 = sshll.u32 %s15, 4
      %s124 = int_to_ptr.hbm [resolvable:$true] %s123
      %s125 = sshll.u32 [#allocation9], 4
      %s126 = int_to_ptr.vmem [resolvable:$true] %s125
      %131 = dma.hbm_to_vmem [thread:$0]  %s124, 1024, %s126, [#allocation10], 128, 128, 8
    $region33: #{tpu_custom_call.1} parent=1 // pred_fallthru
      _
    // Predicated region
    $region34: #{tpu_custom_call.1} parent=1 // pred_check
      _
    $region35: #{tpu_custom_call.1} parent=1 // pred_check_branch
      %133 = sbr.rel (0) target = $region37
    $region36: #{tpu_custom_call.1} parent=1 // pred_region
      _
    $region37: #{tpu_custom_call.1} parent=1 // pred_fallthru
      _
    // Predicated region
    $region38: #{tpu_custom_call.1} parent=1 // pred_check
      _
    $region39: #{tpu_custom_call.1} parent=1 // pred_check_branch
      %135 = sbr.rel (0) target = $region41
    $region40: #{tpu_custom_call.1} parent=1 // pred_region
      %137 = vsyncadd [#allocation10], 0
      %s138 = sshll.u32 %s19, 4
      %s139 = int_to_ptr.hbm [resolvable:$true] %s138
      %s140 = sshll.u32 [#allocation11], 4
      %s141 = int_to_ptr.vmem [resolvable:$true] %s140
      %146 = dma.hbm_to_vmem [thread:$0]  %s139, 1024, %s141, [#allocation10], 128, 128, 8
    $region41: #{tpu_custom_call.1} parent=1 // pred_fallthru
      _
    // Predicated region
    $region42: #{tpu_custom_call.1} parent=1 // pred_check
      _
    $region43: #{tpu_custom_call.1} parent=1 // pred_check_branch
      %148 = sbr.rel (0) target = $region45
    $region44: #{tpu_custom_call.1} parent=1 // pred_region
      _
    $region45: #{tpu_custom_call.1} parent=1 // pred_fallthru
      _
    // Predicated region
    $region46: #{tpu_custom_call.1} parent=1 // pred_check
      _
    $region47: #{tpu_custom_call.1} parent=1 // pred_check_branch
      %150 = sbr.rel (0) target = $region49
    $region48: #{tpu_custom_call.1} parent=1 // pred_region
      _
    $region49: #{tpu_custom_call.1} parent=1 // pred_fallthru
      _
    // Predicated region
    $region50: #{tpu_custom_call.1} parent=1 // pred_check
      _
    $region51: #{tpu_custom_call.1} parent=1 // pred_check_branch
      %152 = sbr.rel (0) target = $region53
    $region52: #{tpu_custom_call.1} parent=1 // pred_region
      _
    $region53: #{tpu_custom_call.1} parent=1 // pred_fallthru
      _
    // Predicated region
    $region54: #{tpu_custom_call.1} parent=1 // pred_check
      _
    $region55: #{tpu_custom_call.1} parent=1 // pred_check_branch
      %154 = sbr.rel (0) target = $region57
    $region56: #{tpu_custom_call.1} parent=1 // pred_region
      _
    $region57: #{tpu_custom_call.1} parent=1 // pred_fallthru
      _
    // Predicated region
    $region58: #{tpu_custom_call.1} parent=1 // pred_check
      _
    $region59: #{tpu_custom_call.1} parent=1 // pred_check_branch
      %156 = sbr.rel (0) target = $region61
    $region60: #{tpu_custom_call.1} parent=1 // pred_region
      _
    $region61: #{tpu_custom_call.1} parent=1 // pred_fallthru
      _
    // Predicated region
    $region62: #{tpu_custom_call.1} parent=1 // pred_check
      _
    $region63: #{tpu_custom_call.1} parent=1 // pred_check_branch
      %158 = sbr.rel (0) target = $region65
    $region64: #{tpu_custom_call.1} parent=1 // pred_region
      %160 = vsyncadd [#allocation13], 0
      %s161 = sshll.u32 %s31, 4
      %s162 = int_to_ptr.hbm [resolvable:$true] %s161
      %s163 = sshll.u32 [#allocation12], 4
      %s164 = int_to_ptr.vmem [resolvable:$true] %s163
      %169 = dma.hbm_to_vmem [thread:$0]  %s162, 2048, %s164, [#allocation13], 256, 256, 16
    $region65: #{tpu_custom_call.1} parent=1 // pred_fallthru
      _
    // Predicated region
    $region66: #{tpu_custom_call.1} parent=1 // pred_check
      _
    $region67: #{tpu_custom_call.1} parent=1 // pred_check_branch
      %171 = sbr.rel (0) target = $region69
    $region68: #{tpu_custom_call.1} parent=1 // pred_region
      _
    $region69: #{tpu_custom_call.1} parent=1 // pred_fallthru
      _
    // Predicated region
    $region70: #{tpu_custom_call.1} parent=1 // pred_check
      _
    $region71: #{tpu_custom_call.1} parent=1 // pred_check_branch
      %173 = sbr.rel (0) target = $region73
    $region72: #{tpu_custom_call.1} parent=1 // pred_region
      %175 = vsyncadd [#allocation13], 0
      %s176 = sshll.u32 %s35, 4
      %s177 = int_to_ptr.hbm [resolvable:$true] %s176
      %s178 = sshll.u32 [#allocation14], 4
      %s179 = int_to_ptr.vmem [resolvable:$true] %s178
      %184 = dma.hbm_to_vmem [thread:$0]  %s177, 1024, %s179, [#allocation13], 128, 128, 8
    $region73: #{tpu_custom_call.1} parent=1 // pred_fallthru
      _
    // Predicated region
    $region74: #{tpu_custom_call.1} parent=1 // pred_check
      _
    $region75: #{tpu_custom_call.1} parent=1 // pred_check_branch
      %186 = sbr.rel (0) target = $region77
    $region76: #{tpu_custom_call.1} parent=1 // pred_region
      _
    $region77: #{tpu_custom_call.1} parent=1 // pred_fallthru
      _
    // Predicated region
    $region78: #{tpu_custom_call.1} parent=1 // pred_check
      _
    $region79: #{tpu_custom_call.1} parent=1 // pred_check_branch
      %188 = sbr.rel (0) target = $region81
    $region80: #{tpu_custom_call.1} parent=1 // pred_region
      %190 = vsyncadd [#allocation16], 0
      %s191 = sshll.u32 %s39, 4
      %s192 = int_to_ptr.hbm [resolvable:$true] %s191
      %s193 = sshll.u32 [#allocation15], 4
      %s194 = int_to_ptr.vmem [resolvable:$true] %s193
      %199 = dma.hbm_to_vmem [thread:$0]  %s192, 1024, %s194, [#allocation16], 128, 128, 8
    $region81: #{tpu_custom_call.1} parent=1 // pred_fallthru
      _
    // Predicated region
    $region82: #{tpu_custom_call.1} parent=1 // pred_check
      _
    $region83: #{tpu_custom_call.1} parent=1 // pred_check_branch
      %201 = sbr.rel (0) target = $region85
    $region84: #{tpu_custom_call.1} parent=1 // pred_region
      _
    $region85: #{tpu_custom_call.1} parent=1 // pred_fallthru
      _
    // Predicated region
    $region86: #{tpu_custom_call.1} parent=1 // pred_check
      _
    $region87: #{tpu_custom_call.1} parent=1 // pred_check_branch
      %203 = sbr.rel (0) target = $region89
    $region88: #{tpu_custom_call.1} parent=1 // pred_region
      %205 = vsyncadd [#allocation16], 0
      %s206 = sshll.u32 %s43, 4
      %s207 = int_to_ptr.hbm [resolvable:$true] %s206
      %s208 = sshll.u32 [#allocation17], 4
      %s209 = int_to_ptr.vmem [resolvable:$true] %s208
      %214 = dma.hbm_to_vmem [thread:$0]  %s207, 1024, %s209, [#allocation16], 128, 128, 8
    $region89: #{tpu_custom_call.1} parent=1 // pred_fallthru
      _
    // Predicated region
    $region90: #{tpu_custom_call.1} parent=1 // pred_check
      _
    $region91: #{tpu_custom_call.1} parent=1 // pred_check_branch
      %216 = sbr.rel (0) target = $region93
    $region92: #{tpu_custom_call.1} parent=1 // pred_region
      _
    $region93: #{tpu_custom_call.1} parent=1 // pred_fallthru
      _
    // Predicated region
    $region94: #{tpu_custom_call.1} parent=1 // pred_check
      _
    $region95: #{tpu_custom_call.1} parent=1 // pred_check_branch
      %218 = sbr.rel (0) target = $region97
    $region96: #{tpu_custom_call.1} parent=1 // pred_region
      _
    $region97: #{tpu_custom_call.1} parent=1 // pred_fallthru
      _
    // Predicated region
    $region98: #{tpu_custom_call.1} parent=1 // pred_check
      _
    $region99: #{tpu_custom_call.1} parent=1 // pred_check_branch
      %220 = sbr.rel (0) target = $region101
    $region100: #{tpu_custom_call.1} parent=1 // pred_region
      _
    $region101: #{tpu_custom_call.1} parent=1 // pred_fallthru
      _
    // Predicated region
    $region102: #{tpu_custom_call.1} parent=1 // pred_check
      _
    $region103: #{tpu_custom_call.1} parent=1 // pred_check_branch
      %222 = sbr.rel (0) target = $region105
    $region104: #{tpu_custom_call.1} parent=1 // pred_region
      _
    $region105: #{tpu_custom_call.1} parent=1 // pred_fallthru
      _
    // Predicated region
    $region106: #{tpu_custom_call.1} parent=1 // pred_check
      _
    $region107: #{tpu_custom_call.1} parent=1 // pred_check_branch
      %224 = sbr.rel (0) target = $region109
    $region108: #{tpu_custom_call.1} parent=1 // pred_region
      _
    $region109: #{tpu_custom_call.1} parent=1 // pred_fallthru
      _
    // Predicated region
    $region110: #{tpu_custom_call.1} parent=1 // pred_check
      _
    $region111: #{tpu_custom_call.1} parent=1 // pred_check_branch
      %226 = sbr.rel (0) target = $region113
    $region112: #{tpu_custom_call.1} parent=1 // pred_region
      _
    $region113: #{tpu_custom_call.1} parent=1 // pred_fallthru
      _
    // Predicated region
    $region114: #{tpu_custom_call.1} parent=1 // pred_check
      _
    $region115: #{tpu_custom_call.1} parent=1 // pred_check_branch
      %228 = sbr.rel (0) target = $region117
    $region116: #{tpu_custom_call.1} parent=1 // pred_region
      _
    $region117: #{tpu_custom_call.1} parent=1 // pred_fallthru
      _
    // Predicated region
    $region118: #{tpu_custom_call.1} parent=1 // pred_check
      _
    $region119: #{tpu_custom_call.1} parent=1 // pred_check_branch
      %230 = sbr.rel (0) target = $region121
    $region120: #{tpu_custom_call.1} parent=1 // pred_region
      _
    $region121: #{tpu_custom_call.1} parent=1 // pred_fallthru
      _
    // Predicated region
    $region122: #{tpu_custom_call.1} parent=1 // pred_check
      _
    $region123: #{tpu_custom_call.1} parent=1 // pred_check_branch
      %232 = sbr.rel (0) target = $region125
    $region124: #{tpu_custom_call.1} parent=1 // pred_region
      %234 = dma.done [#allocation4], 512
    $region125: #{tpu_custom_call.1} parent=1 // pred_fallthru
      _
    // Predicated region
    $region126: #{tpu_custom_call.1} parent=1 // pred_check
      _
    $region127: #{tpu_custom_call.1} parent=1 // pred_check_branch
      %236 = sbr.rel (0) target = $region129
    $region128: #{tpu_custom_call.1} parent=1 // pred_region
      %238 = dma.done [#allocation7], 512
    $region129: #{tpu_custom_call.1} parent=1 // pred_fallthru
      _
    // Predicated region
    $region130: #{tpu_custom_call.1} parent=1 // pred_check
      _
    $region131: #{tpu_custom_call.1} parent=1 // pred_check_branch
      %240 = sbr.rel (0) target = $region133
    $region132: #{tpu_custom_call.1} parent=1 // pred_region
      %242 = dma.done [#allocation7], 2048
    $region133: #{tpu_custom_call.1} parent=1 // pred_fallthru
      _
    // Predicated region
    $region134: #{tpu_custom_call.1} parent=1 // pred_check
      _
    $region135: #{tpu_custom_call.1} parent=1 // pred_check_branch
      %244 = sbr.rel (0) target = $region137
    $region136: #{tpu_custom_call.1} parent=1 // pred_region
      %246 = dma.done [#allocation10], 1024
    $region137: #{tpu_custom_call.1} parent=1 // pred_fallthru
      _
    // Predicated region
    $region138: #{tpu_custom_call.1} parent=1 // pred_check
      _
    $region139: #{tpu_custom_call.1} parent=1 // pred_check_branch
      %248 = sbr.rel (0) target = $region141
    $region140: #{tpu_custom_call.1} parent=1 // pred_region
      %250 = dma.done [#allocation10], 1024
    $region141: #{tpu_custom_call.1} parent=1 // pred_fallthru
      _
    // Predicated region
    $region142: #{tpu_custom_call.1} parent=1 // pred_check
      _
    $region143: #{tpu_custom_call.1} parent=1 // pred_check_branch
      %252 = sbr.rel (0) target = $region145
    $region144: #{tpu_custom_call.1} parent=1 // pred_region
      %254 = dma.done [#allocation13], 2048
    $region145: #{tpu_custom_call.1} parent=1 // pred_fallthru
      _
    // Predicated region
    $region146: #{tpu_custom_call.1} parent=1 // pred_check
      _
    $region147: #{tpu_custom_call.1} parent=1 // pred_check_branch
      %256 = sbr.rel (0) target = $region149
    $region148: #{tpu_custom_call.1} parent=1 // pred_region
      %258 = dma.done [#allocation13], 1024
    $region149: #{tpu_custom_call.1} parent=1 // pred_fallthru
      _
    // Predicated region
    $region150: #{tpu_custom_call.1} parent=1 // pred_check
      _
    $region151: #{tpu_custom_call.1} parent=1 // pred_check_branch
      %260 = sbr.rel (0) target = $region153
    $region152: #{tpu_custom_call.1} parent=1 // pred_region
      %262 = dma.done [#allocation16], 1024
    $region153: #{tpu_custom_call.1} parent=1 // pred_fallthru
      _
    // Predicated region
    $region154: #{tpu_custom_call.1} parent=1 // pred_check
      _
    $region155: #{tpu_custom_call.1} parent=1 // pred_check_branch
      %264 = sbr.rel (0) target = $region157
    $region156: #{tpu_custom_call.1} parent=1 // pred_region
      %266 = dma.done [#allocation16], 1024
    $region157: #{tpu_custom_call.1} parent=1 // pred_fallthru
      _
    %v267 = vld [vmem:[#allocation3] sm:$0xff]
    %v268 = vld [vmem:[#allocation3 + $0x8] sm:$0xff]
    %v269 = vld [vmem:[#allocation3 + $0x10] sm:$0xff]
    %v270 = vld [vmem:[#allocation3 + $0x18] sm:$0xff]
    %v271 = vld [vmem:[#allocation6] sm:$0xff]
    %v272 = vld [vmem:[#allocation6 + $0x8] sm:$0xff]
    %v273 = vld [vmem:[#allocation6 + $0x10] sm:$0xff]
    %v274 = vld [vmem:[#allocation6 + $0x18] sm:$0xff]
    %v275 = vld [vmem:[%s5] sm:$0x1]
    %v277 = vperm.slane %v275, 0
    %vm279 = vcmask 261120
    %v281 = vsel %vm279, %v267, 0
    %v284 = vsel %vm279, %v268, 0
    %v287 = vsel %vm279, %v269, 0
    %v290 = vsel %vm279, %v270, 0
    %292 = vmatpush.msra.mxu0 0.0
    %293 = vmatpush.msra.mxu0 0.0
    %294 = vmatpush.msra.mxu0 0.0
    %295 = vmatpush.msra.mxu0 0.0
    %296 = vmatpush.msra.mxu0 0.0
    %297 = vmatpush.msra.mxu0 0.0
    %298 = vmatpush.msra.mxu0 0.0
    %299 = vmatpush.msra.mxu0 0.0
    %300 = vmatpush.msra.mxu0 0.0
    %301 = vmatpush.msra.mxu0 0.0
    %302 = vmatpush.msra.mxu0 0.0
    %303 = vmatpush.msra.mxu0 0.0
    %304 = vmatpush.msra.mxu0 %v274
    %305 = vmatpush.msra.mxu0 %v273
    %306 = vmatpush.msra.mxu0 %v272
    %307 = vmatpush.msra.mxu0 %v271
    %308 = vmatmul.f32.gmra.mxu0 %v281
    %v309 = vpop.f32.mrf.mxu0
    %v310 = vadd.f32 %v277, %v309
    %311 = vmatmul.f32.gmra.mxu0 %v284
    %v312 = vpop.f32.mrf.mxu0
    %v313 = vadd.f32 %v277, %v312
    %314 = vmatmul.f32.gmra.mxu0 %v287
    %v315 = vpop.f32.mrf.mxu0
    %v316 = vadd.f32 %v277, %v315
    %317 = vmatmul.f32.gmra.mxu0 %v290
    %v318 = vpop.f32.mrf.mxu0
    %v319 = vadd.f32 %v277, %v318
    %320 = vdwg.mxu0
    %v321 = vmax.f32 %v310, 0.0
    %v322 = vmax.f32 %v313, 0.0
    %v323 = vmax.f32 %v316, 0.0
    %v324 = vmax.f32 %v319, 0.0
    %v325 = vld [vmem:[#allocation8] sm:$0xff]
    %v326 = vld [vmem:[#allocation8 + $0x8] sm:$0xff]
    %v327 = vld [vmem:[#allocation8 + $0x10] sm:$0xff]
    %v328 = vld [vmem:[#allocation8 + $0x18] sm:$0xff]
    %v329 = vld [vmem:[#allocation8 + $0x20] sm:$0xff]
    %v330 = vld [vmem:[#allocation8 + $0x28] sm:$0xff]
    %v331 = vld [vmem:[#allocation8 + $0x30] sm:$0xff]
    %v332 = vld [vmem:[#allocation8 + $0x38] sm:$0xff]
    %v333 = vld [vmem:[#allocation8 + $0x40] sm:$0xff]
    %v334 = vld [vmem:[#allocation8 + $0x48] sm:$0xff]
    %v335 = vld [vmem:[#allocation8 + $0x50] sm:$0xff]
    %v336 = vld [vmem:[#allocation8 + $0x58] sm:$0xff]
    %v337 = vld [vmem:[#allocation8 + $0x60] sm:$0xff]
    %v338 = vld [vmem:[#allocation8 + $0x68] sm:$0xff]
    %v339 = vld [vmem:[#allocation8 + $0x70] sm:$0xff]
    %v340 = vld [vmem:[#allocation8 + $0x78] sm:$0xff]
    %v341 = vld [vmem:[%s9] sm:$0x3]
    %v342 = vld [vmem:[%s11] sm:$0xff]
    %v343 = vld [vmem:[%s11 + $0x8] sm:$0xff]
    %v344 = vld [vmem:[%s11 + $0x10] sm:$0xff]
    %v345 = vld [vmem:[%s11 + $0x18] sm:$0xff]
    %v346 = vld [vmem:[%s11 + $0x20] sm:$0xff]
    %v347 = vld [vmem:[%s11 + $0x28] sm:$0xff]
    %v348 = vld [vmem:[%s11 + $0x30] sm:$0xff]
    %v349 = vld [vmem:[%s11 + $0x38] sm:$0xff]
    %v350 = vld [vmem:[%s13] sm:$0x1]
    %v351 = vld [vmem:[#allocation9] sm:$0xff]
    %v352 = vld [vmem:[#allocation9 + $0x8] sm:$0xff]
    %v353 = vld [vmem:[#allocation9 + $0x10] sm:$0xff]
    %v354 = vld [vmem:[#allocation9 + $0x18] sm:$0xff]
    %v355 = vld [vmem:[#allocation9 + $0x20] sm:$0xff]
    %v356 = vld [vmem:[#allocation9 + $0x28] sm:$0xff]
    %v357 = vld [vmem:[#allocation9 + $0x30] sm:$0xff]
    %v358 = vld [vmem:[#allocation9 + $0x38] sm:$0xff]
    %v359 = vld [vmem:[%s17] sm:$0x1]
    %v360 = vld [vmem:[#allocation11] sm:$0xff]
    %v361 = vld [vmem:[#allocation11 + $0x8] sm:$0xff]
    %v362 = vld [vmem:[#allocation11 + $0x10] sm:$0xff]
    %v363 = vld [vmem:[#allocation11 + $0x18] sm:$0xff]
    %v364 = vld [vmem:[#allocation11 + $0x20] sm:$0xff]
    %v365 = vld [vmem:[#allocation11 + $0x28] sm:$0xff]
    %v366 = vld [vmem:[#allocation11 + $0x30] sm:$0xff]
    %v367 = vld [vmem:[#allocation11 + $0x38] sm:$0xff]
    %v368 = vld [vmem:[%s21] sm:$0x1]
    %v369 = vld [vmem:[%s23] sm:$0x1]
    %v370 = vld [vmem:[%s25] sm:$0x1]
    %v371 = vld [vmem:[%s27] sm:$0x1]
    %v372 = vld [vmem:[%s29] sm:$0x1]
    %v374 = vperm.slane %v341, 0
    %v375 = vperm.slane %v341, 1
    %vm378 = vcmask 523264
    %v380 = vsel %vm378, %v321, 0
    %v383 = vsel %vm378, %v322, 0
    %v386 = vsel %vm378, %v323, 0
    %v389 = vsel %vm378, %v324, 0
    %391 = vmatpush.msra.mxu0 0.0
    %392 = vmatpush.msra.mxu0 0.0
    %393 = vmatpush.msra.mxu0 0.0
    %394 = vmatpush.msra.mxu0 0.0
    %395 = vmatpush.msra.mxu0 0.0
    %396 = vmatpush.msra.mxu0 0.0
    %397 = vmatpush.msra.mxu0 0.0
    %398 = vmatpush.msra.mxu0 0.0
    %399 = vmatpush.msra.mxu0 %v339
    %400 = vmatpush.msra.mxu0 %v337
    %401 = vmatpush.msra.mxu0 %v335
    %402 = vmatpush.msra.mxu0 %v333
    %403 = vmatpush.msra.mxu0 %v331
    %404 = vmatpush.msra.mxu0 %v329
    %405 = vmatpush.msra.mxu0 %v327
    %406 = vmatpush.msra.mxu0 %v325
    %407 = vmatmul.f32.gmra.mxu0 %v380
    %v408 = vpop.f32.mrf.mxu0
    %v409 = vadd.f32 %v374, %v408
    %410 = vmatmul.f32.gmra.mxu0 %v383
    %v411 = vpop.f32.mrf.mxu0
    %v412 = vadd.f32 %v374, %v411
    %413 = vmatmul.f32.gmra.mxu0 %v386
    %v414 = vpop.f32.mrf.mxu0
    %v415 = vadd.f32 %v374, %v414
    %416 = vmatmul.f32.gmra.mxu0 %v389
    %v417 = vpop.f32.mrf.mxu0
    %v418 = vadd.f32 %v374, %v417
    %419 = vdwg.mxu0
    %420 = vmatpush.msra.mxu0 0.0
    %421 = vmatpush.msra.mxu0 0.0
    %422 = vmatpush.msra.mxu0 0.0
    %423 = vmatpush.msra.mxu0 0.0
    %424 = vmatpush.msra.mxu0 0.0
    %425 = vmatpush.msra.mxu0 0.0
    %426 = vmatpush.msra.mxu0 0.0
    %427 = vmatpush.msra.mxu0 0.0
    %428 = vmatpush.msra.mxu0 %v340
    %429 = vmatpush.msra.mxu0 %v338
    %430 = vmatpush.msra.mxu0 %v336
    %431 = vmatpush.msra.mxu0 %v334
    %432 = vmatpush.msra.mxu0 %v332
    %433 = vmatpush.msra.mxu0 %v330
    %434 = vmatpush.msra.mxu0 %v328
    %435 = vmatpush.msra.mxu0 %v326
    %436 = vmatmul.f32.gmra.mxu0 %v380
    %v437 = vpop.f32.mrf.mxu0
    %v438 = vadd.f32 %v375, %v437
    %439 = vmatmul.f32.gmra.mxu0 %v383
    %v440 = vpop.f32.mrf.mxu0
    %v441 = vadd.f32 %v375, %v440
    %442 = vmatmul.f32.gmra.mxu0 %v386
    %v443 = vpop.f32.mrf.mxu0
    %v444 = vadd.f32 %v375, %v443
    %445 = vmatmul.f32.gmra.mxu0 %v389
    %v446 = vpop.f32.mrf.mxu0
    %v447 = vadd.f32 %v375, %v446
    %448 = vdwg.mxu0
    %v449 = vmul.f32 %v409, 0.25
    %451 = vrot.lane.b32.xlu0 %v409, 64
    %v452 = vpop.permute.xlu0 %451
    %vm453 = vcmask 130048
    %v455 = vsel %vm453, %v449, 0
    %v457 = vsel %vm453, %v452, 0
    %459 = vmatpush.xpose.msra.mxu0 0.0
    %460 = vmatpush.xpose.msra.mxu0 0.0
    %461 = vmatpush.xpose.msra.mxu0 0.0
    %462 = vmatpush.xpose.msra.mxu0 0.0
    %463 = vmatpush.xpose.msra.mxu0 0.0
    %464 = vmatpush.xpose.msra.mxu0 0.0
    %465 = vmatpush.xpose.msra.mxu0 0.0
    %466 = vmatpush.xpose.msra.mxu0 0.0
    %467 = vmatpush.xpose.msra.mxu0 0.0
    %468 = vmatpush.xpose.msra.mxu0 0.0
    %469 = vmatpush.xpose.msra.mxu0 0.0
    %470 = vmatpush.xpose.msra.mxu0 0.0
    %471 = vmatpush.xpose.msra.mxu0 0.0
    %472 = vmatpush.xpose.msra.mxu0 0.0
    %473 = vmatpush.xpose.msra.mxu0 0.0
    %474 = vmatpush.xpose.msra.mxu0 %v457
    %475 = vmatmul.f32.gmra.mxu0 %v455
    %v476 = vpop.f32.mrf.mxu0
    %v477 = vadd.f32 0.0, %v476
    %478 = vdwg.mxu0
    %vm479 = vcmask 64512
    %v480 = vsel %vm479, %v477, -inf
    %481 = vmax.xlane.f32.xlu0 %v480
    %v482 = vpop.xlane.xlu0 %481
    %v483 = vsub.f32 %v477, %v482
    %v484 = vmul.f32 %v483, 1.442695
    %v485 = vpow.pop %v484
    %v486 = vsel %vm479, %v485, 0.0
    %487 = vadd.xlane.f32.xlu0 %v486
    %v488 = vpop.xlane.xlu0 %487
    %v489 = vrcp.pop %v488
    %v490 = vmul.f32 %v488, %v489
    %v491 = vsub.f32 1.0, %v490
    %v492 = vmul.f32 %v489, %v491
    %v493 = vadd.f32 %v489, %v492
    %vm494 = vweird.f32 %v488
    %vm495 = vweird.f32 %v489
    %vm496 = vmor %vm494, %vm495
    %v497 = vsel %vm496, %v489, %v493
    %v498 = vand.u32 2147483647, %v488
    %vm499 = vcmp.eq.f32.partialorder %v498, 8.507059e+37
    %v500 = vand.u32 %v488, 2147483648
    %v501 = vor.u32 1.1754944e-38, %v500
    %v502 = vsel %vm499, %v501, %v497
    %v503 = vmul.f32 %v485, %v502
    %v505 = vsel %vm479, %v503, 0
    %507 = vmatpush.msra.mxu0 0.0
    %508 = vmatpush.msra.mxu0 0.0
    %509 = vmatpush.msra.mxu0 0.0
    %510 = vmatpush.msra.mxu0 0.0
    %511 = vmatpush.msra.mxu0 0.0
    %512 = vmatpush.msra.mxu0 0.0
    %513 = vmatpush.msra.mxu0 0.0
    %514 = vmatpush.msra.mxu0 0.0
    %515 = vmatpush.msra.mxu0 0.0
    %516 = vmatpush.msra.mxu0 0.0
    %517 = vmatpush.msra.mxu0 0.0
    %518 = vmatpush.msra.mxu0 0.0
    %519 = vmatpush.msra.mxu0 0.0
    %520 = vmatpush.msra.mxu0 0.0
    %521 = vmatpush.msra.mxu0 0.0
    %522 = vmatpush.msra.mxu0 %v438
    %523 = vmatmul.f32.gmra.mxu0 %v505
    %v524 = vpop.f32.mrf.mxu0
    %v525 = vadd.f32 0.0, %v524
    %526 = vdwg.mxu0
    %527 = vst.msk [vmem:[#allocation2] sm:$0xff] %vm453, %v525
    %528 = vrot.lane.b32.xlu0 %v449, 112
    %v529 = vpop.permute.xlu0 %528
    %530 = vrot.lane.b32.xlu0 %v409, 48
    %v531 = vpop.permute.xlu0 %530
    %v532 = vsel %vm453, %v529, 0
    %v534 = vsel %vm453, %v531, 0
    %536 = vmatpush.xpose.msra.mxu0 0.0
    %537 = vmatpush.xpose.msra.mxu0 0.0
    %538 = vmatpush.xpose.msra.mxu0 0.0
    %539 = vmatpush.xpose.msra.mxu0 0.0
    %540 = vmatpush.xpose.msra.mxu0 0.0
    %541 = vmatpush.xpose.msra.mxu0 0.0
    %542 = vmatpush.xpose.msra.mxu0 0.0
    %543 = vmatpush.xpose.msra.mxu0 0.0
    %544 = vmatpush.xpose.msra.mxu0 0.0
    %545 = vmatpush.xpose.msra.mxu0 0.0
    %546 = vmatpush.xpose.msra.mxu0 0.0
    %547 = vmatpush.xpose.msra.mxu0 0.0
    %548 = vmatpush.xpose.msra.mxu0 0.0
    %549 = vmatpush.xpose.msra.mxu0 0.0
    %550 = vmatpush.xpose.msra.mxu0 0.0
    %551 = vmatpush.xpose.msra.mxu0 %v534
    %552 = vmatmul.f32.gmra.mxu0 %v532
    %v553 = vpop.f32.mrf.mxu0
    %v554 = vadd.f32 0.0, %v553
    %555 = vdwg.mxu0
    %v556 = vsel %vm479, %v554, -inf
    %557 = vmax.xlane.f32.xlu0 %v556
    %v558 = vpop.xlane.xlu0 %557
    %v559 = vsub.f32 %v554, %v558
    %v560 = vmul.f32 %v559, 1.442695
    %v561 = vpow.pop %v560
    %v562 = vsel %vm479, %v561, 0.0
    %563 = vadd.xlane.f32.xlu0 %v562
    %v564 = vpop.xlane.xlu0 %563
    %v565 = vrcp.pop %v564
    %v566 = vmul.f32 %v564, %v565
    %v567 = vsub.f32 1.0, %v566
    %v568 = vmul.f32 %v565, %v567
    %v569 = vadd.f32 %v565, %v568
    %vm570 = vweird.f32 %v564
    %vm571 = vweird.f32 %v565
    %vm572 = vmor %vm570, %vm571
    %v573 = vsel %vm572, %v565, %v569
    %v574 = vand.u32 2147483647, %v564
    %vm575 = vcmp.eq.f32.partialorder %v574, 8.507059e+37
    %v576 = vand.u32 %v564, 2147483648
    %v577 = vor.u32 1.1754944e-38, %v576
    %v578 = vsel %vm575, %v577, %v573
    %v579 = vmul.f32 %v561, %v578
    %581 = vrot.lane.b32.xlu0 %v438, 112
    %v582 = vpop.permute.xlu0 %581
    %v585 = vsel %vm479, %v579, 0
    %587 = vmatpush.msra.mxu0 0.0
    %588 = vmatpush.msra.mxu0 0.0
    %589 = vmatpush.msra.mxu0 0.0
    %590 = vmatpush.msra.mxu0 0.0
    %591 = vmatpush.msra.mxu0 0.0
    %592 = vmatpush.msra.mxu0 0.0
    %593 = vmatpush.msra.mxu0 0.0
    %594 = vmatpush.msra.mxu0 0.0
    %595 = vmatpush.msra.mxu0 0.0
    %596 = vmatpush.msra.mxu0 0.0
    %597 = vmatpush.msra.mxu0 0.0
    %598 = vmatpush.msra.mxu0 0.0
    %599 = vmatpush.msra.mxu0 0.0
    %600 = vmatpush.msra.mxu0 0.0
    %601 = vmatpush.msra.mxu0 0.0
    %602 = vmatpush.msra.mxu0 %v582
    %603 = vmatmul.f32.gmra.mxu0 %v585
    %v604 = vpop.f32.mrf.mxu0
    %v605 = vadd.f32 0.0, %v604
    %606 = vdwg.mxu0
    %608 = vrot.lane.b32.xlu0 %v605, 16
    %v609 = vpop.permute.xlu0 %608
    %vm611 = vcmask 261248
    %612 = vst.msk [vmem:[#allocation2] sm:$0xff] %vm611, %v609
    %613 = vrot.lane.b32.xlu0 %v449, 96
    %v614 = vpop.permute.xlu0 %613
    %615 = vrot.lane.b32.xlu0 %v409, 32
    %v616 = vpop.permute.xlu0 %615
    %v617 = vsel %vm453, %v614, 0
    %v619 = vsel %vm453, %v616, 0
    %621 = vmatpush.xpose.msra.mxu0 0.0
    %622 = vmatpush.xpose.msra.mxu0 0.0
    %623 = vmatpush.xpose.msra.mxu0 0.0
    %624 = vmatpush.xpose.msra.mxu0 0.0
    %625 = vmatpush.xpose.msra.mxu0 0.0
    %626 = vmatpush.xpose.msra.mxu0 0.0
    %627 = vmatpush.xpose.msra.mxu0 0.0
    %628 = vmatpush.xpose.msra.mxu0 0.0
    %629 = vmatpush.xpose.msra.mxu0 0.0
    %630 = vmatpush.xpose.msra.mxu0 0.0
    %631 = vmatpush.xpose.msra.mxu0 0.0
    %632 = vmatpush.xpose.msra.mxu0 0.0
    %633 = vmatpush.xpose.msra.mxu0 0.0
    %634 = vmatpush.xpose.msra.mxu0 0.0
    %635 = vmatpush.xpose.msra.mxu0 0.0
    %636 = vmatpush.xpose.msra.mxu0 %v619
    %637 = vmatmul.f32.gmra.mxu0 %v617
    %v638 = vpop.f32.mrf.mxu0
    %v639 = vadd.f32 0.0, %v638
    %640 = vdwg.mxu0
    %v641 = vsel %vm479, %v639, -inf
    %642 = vmax.xlane.f32.xlu0 %v641
    %v643 = vpop.xlane.xlu0 %642
    %v644 = vsub.f32 %v639, %v643
    %v645 = vmul.f32 %v644, 1.442695
    %v646 = vpow.pop %v645
    %v647 = vsel %vm479, %v646, 0.0
    %648 = vadd.xlane.f32.xlu0 %v647
    %v649 = vpop.xlane.xlu0 %648
    %v650 = vrcp.pop %v649
    %v651 = vmul.f32 %v649, %v650
    %v652 = vsub.f32 1.0, %v651
    %v653 = vmul.f32 %v650, %v652
    %v654 = vadd.f32 %v650, %v653
    %vm655 = vweird.f32 %v649
    %vm656 = vweird.f32 %v650
    %vm657 = vmor %vm655, %vm656
    %v658 = vsel %vm657, %v650, %v654
    %v659 = vand.u32 2147483647, %v649
    %vm660 = vcmp.eq.f32.partialorder %v659, 8.507059e+37
    %v661 = vand.u32 %v649, 2147483648
    %v662 = vor.u32 1.1754944e-38, %v661
    %v663 = vsel %vm660, %v662, %v658
    %v664 = vmul.f32 %v646, %v663
    %665 = vrot.lane.b32.xlu0 %v438, 96
    %v666 = vpop.permute.xlu0 %665
    %v669 = vsel %vm479, %v664, 0
    %671 = vmatpush.msra.mxu0 0.0
    %672 = vmatpush.msra.mxu0 0.0
    %673 = vmatpush.msra.mxu0 0.0
    %674 = vmatpush.msra.mxu0 0.0
    %675 = vmatpush.msra.mxu0 0.0
    %676 = vmatpush.msra.mxu0 0.0
    %677 = vmatpush.msra.mxu0 0.0
    %678 = vmatpush.msra.mxu0 0.0
    %679 = vmatpush.msra.mxu0 0.0
    %680 = vmatpush.msra.mxu0 0.0
    %681 = vmatpush.msra.mxu0 0.0
    %682 = vmatpush.msra.mxu0 0.0
    %683 = vmatpush.msra.mxu0 0.0
    %684 = vmatpush.msra.mxu0 0.0
    %685 = vmatpush.msra.mxu0 0.0
    %686 = vmatpush.msra.mxu0 %v666
    %687 = vmatmul.f32.gmra.mxu0 %v669
    %v688 = vpop.f32.mrf.mxu0
    %v689 = vadd.f32 0.0, %v688
    %690 = vdwg.mxu0
    %692 = vrot.lane.b32.xlu0 %v689, 32
    %v693 = vpop.permute.xlu0 %692
    %vm695 = vcmask 392448
    %696 = vst.msk [vmem:[#allocation2] sm:$0xff] %vm695, %v693
    %697 = vrot.lane.b32.xlu0 %v449, 80
    %v698 = vpop.permute.xlu0 %697
    %699 = vrot.lane.b32.xlu0 %v409, 16
    %v700 = vpop.permute.xlu0 %699
    %v701 = vsel %vm453, %v698, 0
    %v703 = vsel %vm453, %v700, 0
    %705 = vmatpush.xpose.msra.mxu0 0.0
    %706 = vmatpush.xpose.msra.mxu0 0.0
    %707 = vmatpush.xpose.msra.mxu0 0.0
    %708 = vmatpush.xpose.msra.mxu0 0.0
    %709 = vmatpush.xpose.msra.mxu0 0.0
    %710 = vmatpush.xpose.msra.mxu0 0.0
    %711 = vmatpush.xpose.msra.mxu0 0.0
    %712 = vmatpush.xpose.msra.mxu0 0.0
    %713 = vmatpush.xpose.msra.mxu0 0.0
    %714 = vmatpush.xpose.msra.mxu0 0.0
    %715 = vmatpush.xpose.msra.mxu0 0.0
    %716 = vmatpush.xpose.msra.mxu0 0.0
    %717 = vmatpush.xpose.msra.mxu0 0.0
    %718 = vmatpush.xpose.msra.mxu0 0.0
    %719 = vmatpush.xpose.msra.mxu0 0.0
    %720 = vmatpush.xpose.msra.mxu0 %v703
    %721 = vmatmul.f32.gmra.mxu0 %v701
    %v722 = vpop.f32.mrf.mxu0
    %v723 = vadd.f32 0.0, %v722
    %724 = vdwg.mxu0
    %v725 = vsel %vm479, %v723, -inf
    %726 = vmax.xlane.f32.xlu0 %v725
    %v727 = vpop.xlane.xlu0 %726
    %v728 = vsub.f32 %v723, %v727
    %v729 = vmul.f32 %v728, 1.442695
    %v730 = vpow.pop %v729
    %v731 = vsel %vm479, %v730, 0.0
    %732 = vadd.xlane.f32.xlu0 %v731
    %v733 = vpop.xlane.xlu0 %732
    %v734 = vrcp.pop %v733
    %v735 = vmul.f32 %v733, %v734
    %v736 = vsub.f32 1.0, %v735
    %v737 = vmul.f32 %v734, %v736
    %v738 = vadd.f32 %v734, %v737
    %vm739 = vweird.f32 %v733
    %vm740 = vweird.f32 %v734
    %vm741 = vmor %vm739, %vm740
    %v742 = vsel %vm741, %v734, %v738
    %v743 = vand.u32 2147483647, %v733
    %vm744 = vcmp.eq.f32.partialorder %v743, 8.507059e+37
    %v745 = vand.u32 %v733, 2147483648
    %v746 = vor.u32 1.1754944e-38, %v745
    %v747 = vsel %vm744, %v746, %v742
    %v748 = vmul.f32 %v730, %v747
    %749 = vrot.lane.b32.xlu0 %v438, 80
    %v750 = vpop.permute.xlu0 %749
    %v753 = vsel %vm479, %v748, 0
    %755 = vmatpush.msra.mxu0 0.0
    %756 = vmatpush.msra.mxu0 0.0
    %757 = vmatpush.msra.mxu0 0.0
    %758 = vmatpush.msra.mxu0 0.0
    %759 = vmatpush.msra.mxu0 0.0
    %760 = vmatpush.msra.mxu0 0.0
    %761 = vmatpush.msra.mxu0 0.0
    %762 = vmatpush.msra.mxu0 0.0
    %763 = vmatpush.msra.mxu0 0.0
    %764 = vmatpush.msra.mxu0 0.0
    %765 = vmatpush.msra.mxu0 0.0
    %766 = vmatpush.msra.mxu0 0.0
    %767 = vmatpush.msra.mxu0 0.0
    %768 = vmatpush.msra.mxu0 0.0
    %769 = vmatpush.msra.mxu0 0.0
    %770 = vmatpush.msra.mxu0 %v750
    %771 = vmatmul.f32.gmra.mxu0 %v753
    %v772 = vpop.f32.mrf.mxu0
    %v773 = vadd.f32 0.0, %v772
    %774 = vdwg.mxu0
    %776 = vrot.lane.b32.xlu0 %v773, 48
    %v777 = vpop.permute.xlu0 %776
    %vm779 = vcmask 523648
    %780 = vst.msk [vmem:[#allocation2] sm:$0xff] %vm779, %v777
    %v781 = vmul.f32 %v412, 0.25
    %783 = vrot.lane.b32.xlu0 %v412, 64
    %v784 = vpop.permute.xlu0 %783
    %v786 = vsel %vm453, %v781, 0
    %v788 = vsel %vm453, %v784, 0
    %790 = vmatpush.xpose.msra.mxu0 0.0
    %791 = vmatpush.xpose.msra.mxu0 0.0
    %792 = vmatpush.xpose.msra.mxu0 0.0
    %793 = vmatpush.xpose.msra.mxu0 0.0
    %794 = vmatpush.xpose.msra.mxu0 0.0
    %795 = vmatpush.xpose.msra.mxu0 0.0
    %796 = vmatpush.xpose.msra.mxu0 0.0
    %797 = vmatpush.xpose.msra.mxu0 0.0
    %798 = vmatpush.xpose.msra.mxu0 0.0
    %799 = vmatpush.xpose.msra.mxu0 0.0
    %800 = vmatpush.xpose.msra.mxu0 0.0
    %801 = vmatpush.xpose.msra.mxu0 0.0
    %802 = vmatpush.xpose.msra.mxu0 0.0
    %803 = vmatpush.xpose.msra.mxu0 0.0
    %804 = vmatpush.xpose.msra.mxu0 0.0
    %805 = vmatpush.xpose.msra.mxu0 %v788
    %806 = vmatmul.f32.gmra.mxu0 %v786
    %v807 = vpop.f32.mrf.mxu0
    %v808 = vadd.f32 0.0, %v807
    %809 = vdwg.mxu0
    %v810 = vsel %vm479, %v808, -inf
    %811 = vmax.xlane.f32.xlu0 %v810
    %v812 = vpop.xlane.xlu0 %811
    %v813 = vsub.f32 %v808, %v812
    %v814 = vmul.f32 %v813, 1.442695
    %v815 = vpow.pop %v814
    %v816 = vsel %vm479, %v815, 0.0
    %817 = vadd.xlane.f32.xlu0 %v816
    %v818 = vpop.xlane.xlu0 %817
    %v819 = vrcp.pop %v818
    %v820 = vmul.f32 %v818, %v819
    %v821 = vsub.f32 1.0, %v820
    %v822 = vmul.f32 %v819, %v821
    %v823 = vadd.f32 %v819, %v822
    %vm824 = vweird.f32 %v818
    %vm825 = vweird.f32 %v819
    %vm826 = vmor %vm824, %vm825
    %v827 = vsel %vm826, %v819, %v823
    %v828 = vand.u32 2147483647, %v818
    %vm829 = vcmp.eq.f32.partialorder %v828, 8.507059e+37
    %v830 = vand.u32 %v818, 2147483648
    %v831 = vor.u32 1.1754944e-38, %v830
    %v832 = vsel %vm829, %v831, %v827
    %v833 = vmul.f32 %v815, %v832
    %v835 = vsel %vm479, %v833, 0
    %837 = vmatpush.msra.mxu0 0.0
    %838 = vmatpush.msra.mxu0 0.0
    %839 = vmatpush.msra.mxu0 0.0
    %840 = vmatpush.msra.mxu0 0.0
    %841 = vmatpush.msra.mxu0 0.0
    %842 = vmatpush.msra.mxu0 0.0
    %843 = vmatpush.msra.mxu0 0.0
    %844 = vmatpush.msra.mxu0 0.0
    %845 = vmatpush.msra.mxu0 0.0
    %846 = vmatpush.msra.mxu0 0.0
    %847 = vmatpush.msra.mxu0 0.0
    %848 = vmatpush.msra.mxu0 0.0
    %849 = vmatpush.msra.mxu0 0.0
    %850 = vmatpush.msra.mxu0 0.0
    %851 = vmatpush.msra.mxu0 0.0
    %852 = vmatpush.msra.mxu0 %v441
    %853 = vmatmul.f32.gmra.mxu0 %v835
    %v854 = vpop.f32.mrf.mxu0
    %v855 = vadd.f32 0.0, %v854
    %856 = vdwg.mxu0
    %857 = vst.msk [vmem:[#allocation2 + $0x8] sm:$0xff] %vm453, %v855
    %858 = vrot.lane.b32.xlu0 %v781, 112
    %v859 = vpop.permute.xlu0 %858
    %860 = vrot.lane.b32.xlu0 %v412, 48
    %v861 = vpop.permute.xlu0 %860
    %v862 = vsel %vm453, %v859, 0
    %v864 = vsel %vm453, %v861, 0
    %866 = vmatpush.xpose.msra.mxu0 0.0
    %867 = vmatpush.xpose.msra.mxu0 0.0
    %868 = vmatpush.xpose.msra.mxu0 0.0
    %869 = vmatpush.xpose.msra.mxu0 0.0
    %870 = vmatpush.xpose.msra.mxu0 0.0
    %871 = vmatpush.xpose.msra.mxu0 0.0
    %872 = vmatpush.xpose.msra.mxu0 0.0
    %873 = vmatpush.xpose.msra.mxu0 0.0
    %874 = vmatpush.xpose.msra.mxu0 0.0
    %875 = vmatpush.xpose.msra.mxu0 0.0
    %876 = vmatpush.xpose.msra.mxu0 0.0
    %877 = vmatpush.xpose.msra.mxu0 0.0
    %878 = vmatpush.xpose.msra.mxu0 0.0
    %879 = vmatpush.xpose.msra.mxu0 0.0
    %880 = vmatpush.xpose.msra.mxu0 0.0
    %881 = vmatpush.xpose.msra.mxu0 %v864
    %882 = vmatmul.f32.gmra.mxu0 %v862
    %v883 = vpop.f32.mrf.mxu0
    %v884 = vadd.f32 0.0, %v883
    %885 = vdwg.mxu0
    %v886 = vsel %vm479, %v884, -inf
    %887 = vmax.xlane.f32.xlu0 %v886
    %v888 = vpop.xlane.xlu0 %887
    %v889 = vsub.f32 %v884, %v888
    %v890 = vmul.f32 %v889, 1.442695
    %v891 = vpow.pop %v890
    %v892 = vsel %vm479, %v891, 0.0
    %893 = vadd.xlane.f32.xlu0 %v892
    %v894 = vpop.xlane.xlu0 %893
    %v895 = vrcp.pop %v894
    %v896 = vmul.f32 %v894, %v895
    %v897 = vsub.f32 1.0, %v896
    %v898 = vmul.f32 %v895, %v897
    %v899 = vadd.f32 %v895, %v898
    %vm900 = vweird.f32 %v894
    %vm901 = vweird.f32 %v895
    %vm902 = vmor %vm900, %vm901
    %v903 = vsel %vm902, %v895, %v899
    %v904 = vand.u32 2147483647, %v894
    %vm905 = vcmp.eq.f32.partialorder %v904, 8.507059e+37
    %v906 = vand.u32 %v894, 2147483648
    %v907 = vor.u32 1.1754944e-38, %v906
    %v908 = vsel %vm905, %v907, %v903
    %v909 = vmul.f32 %v891, %v908
    %911 = vrot.lane.b32.xlu0 %v441, 112
    %v912 = vpop.permute.xlu0 %911
    %v915 = vsel %vm479, %v909, 0
    %917 = vmatpush.msra.mxu0 0.0
    %918 = vmatpush.msra.mxu0 0.0
    %919 = vmatpush.msra.mxu0 0.0
    %920 = vmatpush.msra.mxu0 0.0
    %921 = vmatpush.msra.mxu0 0.0
    %922 = vmatpush.msra.mxu0 0.0
    %923 = vmatpush.msra.mxu0 0.0
    %924 = vmatpush.msra.mxu0 0.0
    %925 = vmatpush.msra.mxu0 0.0
    %926 = vmatpush.msra.mxu0 0.0
    %927 = vmatpush.msra.mxu0 0.0
    %928 = vmatpush.msra.mxu0 0.0
    %929 = vmatpush.msra.mxu0 0.0
    %930 = vmatpush.msra.mxu0 0.0
    %931 = vmatpush.msra.mxu0 0.0
    %932 = vmatpush.msra.mxu0 %v912
    %933 = vmatmul.f32.gmra.mxu0 %v915
    %v934 = vpop.f32.mrf.mxu0
    %v935 = vadd.f32 0.0, %v934
    %936 = vdwg.mxu0
    %938 = vrot.lane.b32.xlu0 %v935, 16
    %v939 = vpop.permute.xlu0 %938
    %941 = vst.msk [vmem:[#allocation2 + $0x8] sm:$0xff] %vm611, %v939
    %942 = vrot.lane.b32.xlu0 %v781, 96
    %v943 = vpop.permute.xlu0 %942
    %944 = vrot.lane.b32.xlu0 %v412, 32
    %v945 = vpop.permute.xlu0 %944
    %v946 = vsel %vm453, %v943, 0
    %v948 = vsel %vm453, %v945, 0
    %950 = vmatpush.xpose.msra.mxu0 0.0
    %951 = vmatpush.xpose.msra.mxu0 0.0
    %952 = vmatpush.xpose.msra.mxu0 0.0
    %953 = vmatpush.xpose.msra.mxu0 0.0
    %954 = vmatpush.xpose.msra.mxu0 0.0
    %955 = vmatpush.xpose.msra.mxu0 0.0
    %956 = vmatpush.xpose.msra.mxu0 0.0
    %957 = vmatpush.xpose.msra.mxu0 0.0
    %958 = vmatpush.xpose.msra.mxu0 0.0
    %959 = vmatpush.xpose.msra.mxu0 0.0
    %960 = vmatpush.xpose.msra.mxu0 0.0
    %961 = vmatpush.xpose.msra.mxu0 0.0
    %962 = vmatpush.xpose.msra.mxu0 0.0
    %963 = vmatpush.xpose.msra.mxu0 0.0
    %964 = vmatpush.xpose.msra.mxu0 0.0
    %965 = vmatpush.xpose.msra.mxu0 %v948
    %966 = vmatmul.f32.gmra.mxu0 %v946
    %v967 = vpop.f32.mrf.mxu0
    %v968 = vadd.f32 0.0, %v967
    %969 = vdwg.mxu0
    %v970 = vsel %vm479, %v968, -inf
    %971 = vmax.xlane.f32.xlu0 %v970
    %v972 = vpop.xlane.xlu0 %971
    %v973 = vsub.f32 %v968, %v972
    %v974 = vmul.f32 %v973, 1.442695
    %v975 = vpow.pop %v974
    %v976 = vsel %vm479, %v975, 0.0
    %977 = vadd.xlane.f32.xlu0 %v976
    %v978 = vpop.xlane.xlu0 %977
    %v979 = vrcp.pop %v978
    %v980 = vmul.f32 %v978, %v979
    %v981 = vsub.f32 1.0, %v980
    %v982 = vmul.f32 %v979, %v981
    %v983 = vadd.f32 %v979, %v982
    %vm984 = vweird.f32 %v978
    %vm985 = vweird.f32 %v979
    %vm986 = vmor %vm984, %vm985
    %v987 = vsel %vm986, %v979, %v983
    %v988 = vand.u32 2147483647, %v978
    %vm989 = vcmp.eq.f32.partialorder %v988, 8.507059e+37
    %v990 = vand.u32 %v978, 2147483648
    %v991 = vor.u32 1.1754944e-38, %v990
    %v992 = vsel %vm989, %v991, %v987
    %v993 = vmul.f32 %v975, %v992
    %994 = vrot.lane.b32.xlu0 %v441, 96
    %v995 = vpop.permute.xlu0 %994
    %v998 = vsel %vm479, %v993, 0
    %1000 = vmatpush.msra.mxu0 0.0
    %1001 = vmatpush.msra.mxu0 0.0
    %1002 = vmatpush.msra.mxu0 0.0
    %1003 = vmatpush.msra.mxu0 0.0
    %1004 = vmatpush.msra.mxu0 0.0
    %1005 = vmatpush.msra.mxu0 0.0
    %1006 = vmatpush.msra.mxu0 0.0
    %1007 = vmatpush.msra.mxu0 0.0
    %1008 = vmatpush.msra.mxu0 0.0
    %1009 = vmatpush.msra.mxu0 0.0
    %1010 = vmatpush.msra.mxu0 0.0
    %1011 = vmatpush.msra.mxu0 0.0
    %1012 = vmatpush.msra.mxu0 0.0
    %1013 = vmatpush.msra.mxu0 0.0
    %1014 = vmatpush.msra.mxu0 0.0
    %1015 = vmatpush.msra.mxu0 %v995
    %1016 = vmatmul.f32.gmra.mxu0 %v998
    %v1017 = vpop.f32.mrf.mxu0
    %v1018 = vadd.f32 0.0, %v1017
    %1019 = vdwg.mxu0
    %1021 = vrot.lane.b32.xlu0 %v1018, 32
    %v1022 = vpop.permute.xlu0 %1021
    %1024 = vst.msk [vmem:[#allocation2 + $0x8] sm:$0xff] %vm695, %v1022
    %1025 = vrot.lane.b32.xlu0 %v781, 80
    %v1026 = vpop.permute.xlu0 %1025
    %1027 = vrot.lane.b32.xlu0 %v412, 16
    %v1028 = vpop.permute.xlu0 %1027
    %v1029 = vsel %vm453, %v1026, 0
    %v1031 = vsel %vm453, %v1028, 0
    %1033 = vmatpush.xpose.msra.mxu0 0.0
    %1034 = vmatpush.xpose.msra.mxu0 0.0
    %1035 = vmatpush.xpose.msra.mxu0 0.0
    %1036 = vmatpush.xpose.msra.mxu0 0.0
    %1037 = vmatpush.xpose.msra.mxu0 0.0
    %1038 = vmatpush.xpose.msra.mxu0 0.0
    %1039 = vmatpush.xpose.msra.mxu0 0.0
    %1040 = vmatpush.xpose.msra.mxu0 0.0
    %1041 = vmatpush.xpose.msra.mxu0 0.0
    %1042 = vmatpush.xpose.msra.mxu0 0.0
    %1043 = vmatpush.xpose.msra.mxu0 0.0
    %1044 = vmatpush.xpose.msra.mxu0 0.0
    %1045 = vmatpush.xpose.msra.mxu0 0.0
    %1046 = vmatpush.xpose.msra.mxu0 0.0
    %1047 = vmatpush.xpose.msra.mxu0 0.0
    %1048 = vmatpush.xpose.msra.mxu0 %v1031
    %1049 = vmatmul.f32.gmra.mxu0 %v1029
    %v1050 = vpop.f32.mrf.mxu0
    %v1051 = vadd.f32 0.0, %v1050
    %1052 = vdwg.mxu0
    %v1053 = vsel %vm479, %v1051, -inf
    %1054 = vmax.xlane.f32.xlu0 %v1053
    %v1055 = vpop.xlane.xlu0 %1054
    %v1056 = vsub.f32 %v1051, %v1055
    %v1057 = vmul.f32 %v1056, 1.442695
    %v1058 = vpow.pop %v1057
    %v1059 = vsel %vm479, %v1058, 0.0
    %1060 = vadd.xlane.f32.xlu0 %v1059
    %v1061 = vpop.xlane.xlu0 %1060
    %v1062 = vrcp.pop %v1061
    %v1063 = vmul.f32 %v1061, %v1062
    %v1064 = vsub.f32 1.0, %v1063
    %v1065 = vmul.f32 %v1062, %v1064
    %v1066 = vadd.f32 %v1062, %v1065
    %vm1067 = vweird.f32 %v1061
    %vm1068 = vweird.f32 %v1062
    %vm1069 = vmor %vm1067, %vm1068
    %v1070 = vsel %vm1069, %v1062, %v1066
    %v1071 = vand.u32 2147483647, %v1061
    %vm1072 = vcmp.eq.f32.partialorder %v1071, 8.507059e+37
    %v1073 = vand.u32 %v1061, 2147483648
    %v1074 = vor.u32 1.1754944e-38, %v1073
    %v1075 = vsel %vm1072, %v1074, %v1070
    %v1076 = vmul.f32 %v1058, %v1075
    %1077 = vrot.lane.b32.xlu0 %v441, 80
    %v1078 = vpop.permute.xlu0 %1077
    %v1081 = vsel %vm479, %v1076, 0
    %1083 = vmatpush.msra.mxu0 0.0
    %1084 = vmatpush.msra.mxu0 0.0
    %1085 = vmatpush.msra.mxu0 0.0
    %1086 = vmatpush.msra.mxu0 0.0
    %1087 = vmatpush.msra.mxu0 0.0
    %1088 = vmatpush.msra.mxu0 0.0
    %1089 = vmatpush.msra.mxu0 0.0
    %1090 = vmatpush.msra.mxu0 0.0
    %1091 = vmatpush.msra.mxu0 0.0
    %1092 = vmatpush.msra.mxu0 0.0
    %1093 = vmatpush.msra.mxu0 0.0
    %1094 = vmatpush.msra.mxu0 0.0
    %1095 = vmatpush.msra.mxu0 0.0
    %1096 = vmatpush.msra.mxu0 0.0
    %1097 = vmatpush.msra.mxu0 0.0
    %1098 = vmatpush.msra.mxu0 %v1078
    %1099 = vmatmul.f32.gmra.mxu0 %v1081
    %v1100 = vpop.f32.mrf.mxu0
    %v1101 = vadd.f32 0.0, %v1100
    %1102 = vdwg.mxu0
    %1104 = vrot.lane.b32.xlu0 %v1101, 48
    %v1105 = vpop.permute.xlu0 %1104
    %1107 = vst.msk [vmem:[#allocation2 + $0x8] sm:$0xff] %vm779, %v1105
    %v1108 = vmul.f32 %v415, 0.25
    %1110 = vrot.lane.b32.xlu0 %v415, 64
    %v1111 = vpop.permute.xlu0 %1110
    %v1113 = vsel %vm453, %v1108, 0
    %v1115 = vsel %vm453, %v1111, 0
    %1117 = vmatpush.xpose.msra.mxu0 0.0
    %1118 = vmatpush.xpose.msra.mxu0 0.0
    %1119 = vmatpush.xpose.msra.mxu0 0.0
    %1120 = vmatpush.xpose.msra.mxu0 0.0
    %1121 = vmatpush.xpose.msra.mxu0 0.0
    %1122 = vmatpush.xpose.msra.mxu0 0.0
    %1123 = vmatpush.xpose.msra.mxu0 0.0
    %1124 = vmatpush.xpose.msra.mxu0 0.0
    %1125 = vmatpush.xpose.msra.mxu0 0.0
    %1126 = vmatpush.xpose.msra.mxu0 0.0
    %1127 = vmatpush.xpose.msra.mxu0 0.0
    %1128 = vmatpush.xpose.msra.mxu0 0.0
    %1129 = vmatpush.xpose.msra.mxu0 0.0
    %1130 = vmatpush.xpose.msra.mxu0 0.0
    %1131 = vmatpush.xpose.msra.mxu0 0.0
    %1132 = vmatpush.xpose.msra.mxu0 %v1115
    %1133 = vmatmul.f32.gmra.mxu0 %v1113
    %v1134 = vpop.f32.mrf.mxu0
    %v1135 = vadd.f32 0.0, %v1134
    %1136 = vdwg.mxu0
    %v1137 = vsel %vm479, %v1135, -inf
    %1138 = vmax.xlane.f32.xlu0 %v1137
    %v1139 = vpop.xlane.xlu0 %1138
    %v1140 = vsub.f32 %v1135, %v1139
    %v1141 = vmul.f32 %v1140, 1.442695
    %v1142 = vpow.pop %v1141
    %v1143 = vsel %vm479, %v1142, 0.0
    %1144 = vadd.xlane.f32.xlu0 %v1143
    %v1145 = vpop.xlane.xlu0 %1144
    %v1146 = vrcp.pop %v1145
    %v1147 = vmul.f32 %v1145, %v1146
    %v1148 = vsub.f32 1.0, %v1147
    %v1149 = vmul.f32 %v1146, %v1148
    %v1150 = vadd.f32 %v1146, %v1149
    %vm1151 = vweird.f32 %v1145
    %vm1152 = vweird.f32 %v1146
    %vm1153 = vmor %vm1151, %vm1152
    %v1154 = vsel %vm1153, %v1146, %v1150
    %v1155 = vand.u32 2147483647, %v1145
    %vm1156 = vcmp.eq.f32.partialorder %v1155, 8.507059e+37
    %v1157 = vand.u32 %v1145, 2147483648
    %v1158 = vor.u32 1.1754944e-38, %v1157
    %v1159 = vsel %vm1156, %v1158, %v1154
    %v1160 = vmul.f32 %v1142, %v1159
    %v1162 = vsel %vm479, %v1160, 0
    %1164 = vmatpush.msra.mxu0 0.0
    %1165 = vmatpush.msra.mxu0 0.0
    %1166 = vmatpush.msra.mxu0 0.0
    %1167 = vmatpush.msra.mxu0 0.0
    %1168 = vmatpush.msra.mxu0 0.0
    %1169 = vmatpush.msra.mxu0 0.0
    %1170 = vmatpush.msra.mxu0 0.0
    %1171 = vmatpush.msra.mxu0 0.0
    %1172 = vmatpush.msra.mxu0 0.0
    %1173 = vmatpush.msra.mxu0 0.0
    %1174 = vmatpush.msra.mxu0 0.0
    %1175 = vmatpush.msra.mxu0 0.0
    %1176 = vmatpush.msra.mxu0 0.0
    %1177 = vmatpush.msra.mxu0 0.0
    %1178 = vmatpush.msra.mxu0 0.0
    %1179 = vmatpush.msra.mxu0 %v444
    %1180 = vmatmul.f32.gmra.mxu0 %v1162
    %v1181 = vpop.f32.mrf.mxu0
    %v1182 = vadd.f32 0.0, %v1181
    %1183 = vdwg.mxu0
    %1184 = vst.msk [vmem:[#allocation2 + $0x10] sm:$0xff] %vm453, %v1182
    %1185 = vrot.lane.b32.xlu0 %v1108, 112
    %v1186 = vpop.permute.xlu0 %1185
    %1187 = vrot.lane.b32.xlu0 %v415, 48
    %v1188 = vpop.permute.xlu0 %1187
    %v1189 = vsel %vm453, %v1186, 0
    %v1191 = vsel %vm453, %v1188, 0
    %1193 = vmatpush.xpose.msra.mxu0 0.0
    %1194 = vmatpush.xpose.msra.mxu0 0.0
    %1195 = vmatpush.xpose.msra.mxu0 0.0
    %1196 = vmatpush.xpose.msra.mxu0 0.0
    %1197 = vmatpush.xpose.msra.mxu0 0.0
    %1198 = vmatpush.xpose.msra.mxu0 0.0
    %1199 = vmatpush.xpose.msra.mxu0 0.0
    %1200 = vmatpush.xpose.msra.mxu0 0.0
    %1201 = vmatpush.xpose.msra.mxu0 0.0
    %1202 = vmatpush.xpose.msra.mxu0 0.0
    %1203 = vmatpush.xpose.msra.mxu0 0.0
    %1204 = vmatpush.xpose.msra.mxu0 0.0
    %1205 = vmatpush.xpose.msra.mxu0 0.0
    %1206 = vmatpush.xpose.msra.mxu0 0.0
    %1207 = vmatpush.xpose.msra.mxu0 0.0
    %1208 = vmatpush.xpose.msra.mxu0 %v1191
    %1209 = vmatmul.f32.gmra.mxu0 %v1189
    %v1210 = vpop.f32.mrf.mxu0
    %v1211 = vadd.f32 0.0, %v1210
    %1212 = vdwg.mxu0
    %v1213 = vsel %vm479, %v1211, -inf
    %1214 = vmax.xlane.f32.xlu0 %v1213
    %v1215 = vpop.xlane.xlu0 %1214
    %v1216 = vsub.f32 %v1211, %v1215
    %v1217 = vmul.f32 %v1216, 1.442695
    %v1218 = vpow.pop %v1217
    %v1219 = vsel %vm479, %v1218, 0.0
    %1220 = vadd.xlane.f32.xlu0 %v1219
    %v1221 = vpop.xlane.xlu0 %1220
    %v1222 = vrcp.pop %v1221
    %v1223 = vmul.f32 %v1221, %v1222
    %v1224 = vsub.f32 1.0, %v1223
    %v1225 = vmul.f32 %v1222, %v1224
    %v1226 = vadd.f32 %v1222, %v1225
    %vm1227 = vweird.f32 %v1221
    %vm1228 = vweird.f32 %v1222
    %vm1229 = vmor %vm1227, %vm1228
    %v1230 = vsel %vm1229, %v1222, %v1226
    %v1231 = vand.u32 2147483647, %v1221
    %vm1232 = vcmp.eq.f32.partialorder %v1231, 8.507059e+37
    %v1233 = vand.u32 %v1221, 2147483648
    %v1234 = vor.u32 1.1754944e-38, %v1233
    %v1235 = vsel %vm1232, %v1234, %v1230
    %v1236 = vmul.f32 %v1218, %v1235
    %1238 = vrot.lane.b32.xlu0 %v444, 112
    %v1239 = vpop.permute.xlu0 %1238
    %v1242 = vsel %vm479, %v1236, 0
    %1244 = vmatpush.msra.mxu0 0.0
    %1245 = vmatpush.msra.mxu0 0.0
    %1246 = vmatpush.msra.mxu0 0.0
    %1247 = vmatpush.msra.mxu0 0.0
    %1248 = vmatpush.msra.mxu0 0.0
    %1249 = vmatpush.msra.mxu0 0.0
    %1250 = vmatpush.msra.mxu0 0.0
    %1251 = vmatpush.msra.mxu0 0.0
    %1252 = vmatpush.msra.mxu0 0.0
    %1253 = vmatpush.msra.mxu0 0.0
    %1254 = vmatpush.msra.mxu0 0.0
    %1255 = vmatpush.msra.mxu0 0.0
    %1256 = vmatpush.msra.mxu0 0.0
    %1257 = vmatpush.msra.mxu0 0.0
    %1258 = vmatpush.msra.mxu0 0.0
    %1259 = vmatpush.msra.mxu0 %v1239
    %1260 = vmatmul.f32.gmra.mxu0 %v1242
    %v1261 = vpop.f32.mrf.mxu0
    %v1262 = vadd.f32 0.0, %v1261
    %1263 = vdwg.mxu0
    %1265 = vrot.lane.b32.xlu0 %v1262, 16
    %v1266 = vpop.permute.xlu0 %1265
    %1268 = vst.msk [vmem:[#allocation2 + $0x10] sm:$0xff] %vm611, %v1266
    %1269 = vrot.lane.b32.xlu0 %v1108, 96
    %v1270 = vpop.permute.xlu0 %1269
    %1271 = vrot.lane.b32.xlu0 %v415, 32
    %v1272 = vpop.permute.xlu0 %1271
    %v1273 = vsel %vm453, %v1270, 0
    %v1275 = vsel %vm453, %v1272, 0
    %1277 = vmatpush.xpose.msra.mxu0 0.0
    %1278 = vmatpush.xpose.msra.mxu0 0.0
    %1279 = vmatpush.xpose.msra.mxu0 0.0
    %1280 = vmatpush.xpose.msra.mxu0 0.0
    %1281 = vmatpush.xpose.msra.mxu0 0.0
    %1282 = vmatpush.xpose.msra.mxu0 0.0
    %1283 = vmatpush.xpose.msra.mxu0 0.0
    %1284 = vmatpush.xpose.msra.mxu0 0.0
    %1285 = vmatpush.xpose.msra.mxu0 0.0
    %1286 = vmatpush.xpose.msra.mxu0 0.0
    %1287 = vmatpush.xpose.msra.mxu0 0.0
    %1288 = vmatpush.xpose.msra.mxu0 0.0
    %1289 = vmatpush.xpose.msra.mxu0 0.0
    %1290 = vmatpush.xpose.msra.mxu0 0.0
    %1291 = vmatpush.xpose.msra.mxu0 0.0
    %1292 = vmatpush.xpose.msra.mxu0 %v1275
    %1293 = vmatmul.f32.gmra.mxu0 %v1273
    %v1294 = vpop.f32.mrf.mxu0
    %v1295 = vadd.f32 0.0, %v1294
    %1296 = vdwg.mxu0
    %v1297 = vsel %vm479, %v1295, -inf
    %1298 = vmax.xlane.f32.xlu0 %v1297
    %v1299 = vpop.xlane.xlu0 %1298
    %v1300 = vsub.f32 %v1295, %v1299
    %v1301 = vmul.f32 %v1300, 1.442695
    %v1302 = vpow.pop %v1301
    %v1303 = vsel %vm479, %v1302, 0.0
    %1304 = vadd.xlane.f32.xlu0 %v1303
    %v1305 = vpop.xlane.xlu0 %1304
    %v1306 = vrcp.pop %v1305
    %v1307 = vmul.f32 %v1305, %v1306
    %v1308 = vsub.f32 1.0, %v1307
    %v1309 = vmul.f32 %v1306, %v1308
    %v1310 = vadd.f32 %v1306, %v1309
    %vm1311 = vweird.f32 %v1305
    %vm1312 = vweird.f32 %v1306
    %vm1313 = vmor %vm1311, %vm1312
    %v1314 = vsel %vm1313, %v1306, %v1310
    %v1315 = vand.u32 2147483647, %v1305
    %vm1316 = vcmp.eq.f32.partialorder %v1315, 8.507059e+37
    %v1317 = vand.u32 %v1305, 2147483648
    %v1318 = vor.u32 1.1754944e-38, %v1317
    %v1319 = vsel %vm1316, %v1318, %v1314
    %v1320 = vmul.f32 %v1302, %v1319
    %1321 = vrot.lane.b32.xlu0 %v444, 96
    %v1322 = vpop.permute.xlu0 %1321
    %v1325 = vsel %vm479, %v1320, 0
    %1327 = vmatpush.msra.mxu0 0.0
    %1328 = vmatpush.msra.mxu0 0.0
    %1329 = vmatpush.msra.mxu0 0.0
    %1330 = vmatpush.msra.mxu0 0.0
    %1331 = vmatpush.msra.mxu0 0.0
    %1332 = vmatpush.msra.mxu0 0.0
    %1333 = vmatpush.msra.mxu0 0.0
    %1334 = vmatpush.msra.mxu0 0.0
    %1335 = vmatpush.msra.mxu0 0.0
    %1336 = vmatpush.msra.mxu0 0.0
    %1337 = vmatpush.msra.mxu0 0.0
    %1338 = vmatpush.msra.mxu0 0.0
    %1339 = vmatpush.msra.mxu0 0.0
    %1340 = vmatpush.msra.mxu0 0.0
    %1341 = vmatpush.msra.mxu0 0.0
    %1342 = vmatpush.msra.mxu0 %v1322
    %1343 = vmatmul.f32.gmra.mxu0 %v1325
    %v1344 = vpop.f32.mrf.mxu0
    %v1345 = vadd.f32 0.0, %v1344
    %1346 = vdwg.mxu0
    %1348 = vrot.lane.b32.xlu0 %v1345, 32
    %v1349 = vpop.permute.xlu0 %1348
    %1351 = vst.msk [vmem:[#allocation2 + $0x10] sm:$0xff] %vm695, %v1349
    %1352 = vrot.lane.b32.xlu0 %v1108, 80
    %v1353 = vpop.permute.xlu0 %1352
    %1354 = vrot.lane.b32.xlu0 %v415, 16
    %v1355 = vpop.permute.xlu0 %1354
    %v1356 = vsel %vm453, %v1353, 0
    %v1358 = vsel %vm453, %v1355, 0
    %1360 = vmatpush.xpose.msra.mxu0 0.0
    %1361 = vmatpush.xpose.msra.mxu0 0.0
    %1362 = vmatpush.xpose.msra.mxu0 0.0
    %1363 = vmatpush.xpose.msra.mxu0 0.0
    %1364 = vmatpush.xpose.msra.mxu0 0.0
    %1365 = vmatpush.xpose.msra.mxu0 0.0
    %1366 = vmatpush.xpose.msra.mxu0 0.0
    %1367 = vmatpush.xpose.msra.mxu0 0.0
    %1368 = vmatpush.xpose.msra.mxu0 0.0
    %1369 = vmatpush.xpose.msra.mxu0 0.0
    %1370 = vmatpush.xpose.msra.mxu0 0.0
    %1371 = vmatpush.xpose.msra.mxu0 0.0
    %1372 = vmatpush.xpose.msra.mxu0 0.0
    %1373 = vmatpush.xpose.msra.mxu0 0.0
    %1374 = vmatpush.xpose.msra.mxu0 0.0
    %1375 = vmatpush.xpose.msra.mxu0 %v1358
    %1376 = vmatmul.f32.gmra.mxu0 %v1356
    %v1377 = vpop.f32.mrf.mxu0
    %v1378 = vadd.f32 0.0, %v1377
    %1379 = vdwg.mxu0
    %v1380 = vsel %vm479, %v1378, -inf
    %1381 = vmax.xlane.f32.xlu0 %v1380
    %v1382 = vpop.xlane.xlu0 %1381
    %v1383 = vsub.f32 %v1378, %v1382
    %v1384 = vmul.f32 %v1383, 1.442695
    %v1385 = vpow.pop %v1384
    %v1386 = vsel %vm479, %v1385, 0.0
    %1387 = vadd.xlane.f32.xlu0 %v1386
    %v1388 = vpop.xlane.xlu0 %1387
    %v1389 = vrcp.pop %v1388
    %v1390 = vmul.f32 %v1388, %v1389
    %v1391 = vsub.f32 1.0, %v1390
    %v1392 = vmul.f32 %v1389, %v1391
    %v1393 = vadd.f32 %v1389, %v1392
    %vm1394 = vweird.f32 %v1388
    %vm1395 = vweird.f32 %v1389
    %vm1396 = vmor %vm1394, %vm1395
    %v1397 = vsel %vm1396, %v1389, %v1393
    %v1398 = vand.u32 2147483647, %v1388
    %vm1399 = vcmp.eq.f32.partialorder %v1398, 8.507059e+37
    %v1400 = vand.u32 %v1388, 2147483648
    %v1401 = vor.u32 1.1754944e-38, %v1400
    %v1402 = vsel %vm1399, %v1401, %v1397
    %v1403 = vmul.f32 %v1385, %v1402
    %1404 = vrot.lane.b32.xlu0 %v444, 80
    %v1405 = vpop.permute.xlu0 %1404
    %v1408 = vsel %vm479, %v1403, 0
    %1410 = vmatpush.msra.mxu0 0.0
    %1411 = vmatpush.msra.mxu0 0.0
    %1412 = vmatpush.msra.mxu0 0.0
    %1413 = vmatpush.msra.mxu0 0.0
    %1414 = vmatpush.msra.mxu0 0.0
    %1415 = vmatpush.msra.mxu0 0.0
    %1416 = vmatpush.msra.mxu0 0.0
    %1417 = vmatpush.msra.mxu0 0.0
    %1418 = vmatpush.msra.mxu0 0.0
    %1419 = vmatpush.msra.mxu0 0.0
    %1420 = vmatpush.msra.mxu0 0.0
    %1421 = vmatpush.msra.mxu0 0.0
    %1422 = vmatpush.msra.mxu0 0.0
    %1423 = vmatpush.msra.mxu0 0.0
    %1424 = vmatpush.msra.mxu0 0.0
    %1425 = vmatpush.msra.mxu0 %v1405
    %1426 = vmatmul.f32.gmra.mxu0 %v1408
    %v1427 = vpop.f32.mrf.mxu0
    %v1428 = vadd.f32 0.0, %v1427
    %1429 = vdwg.mxu0
    %1431 = vrot.lane.b32.xlu0 %v1428, 48
    %v1432 = vpop.permute.xlu0 %1431
    %1434 = vst.msk [vmem:[#allocation2 + $0x10] sm:$0xff] %vm779, %v1432
    %v1435 = vmul.f32 %v418, 0.25
    %1437 = vrot.lane.b32.xlu0 %v418, 64
    %v1438 = vpop.permute.xlu0 %1437
    %v1440 = vsel %vm453, %v1435, 0
    %v1442 = vsel %vm453, %v1438, 0
    %1444 = vmatpush.xpose.msra.mxu0 0.0
    %1445 = vmatpush.xpose.msra.mxu0 0.0
    %1446 = vmatpush.xpose.msra.mxu0 0.0
    %1447 = vmatpush.xpose.msra.mxu0 0.0
    %1448 = vmatpush.xpose.msra.mxu0 0.0
    %1449 = vmatpush.xpose.msra.mxu0 0.0
    %1450 = vmatpush.xpose.msra.mxu0 0.0
    %1451 = vmatpush.xpose.msra.mxu0 0.0
    %1452 = vmatpush.xpose.msra.mxu0 0.0
    %1453 = vmatpush.xpose.msra.mxu0 0.0
    %1454 = vmatpush.xpose.msra.mxu0 0.0
    %1455 = vmatpush.xpose.msra.mxu0 0.0
    %1456 = vmatpush.xpose.msra.mxu0 0.0
    %1457 = vmatpush.xpose.msra.mxu0 0.0
    %1458 = vmatpush.xpose.msra.mxu0 0.0
    %1459 = vmatpush.xpose.msra.mxu0 %v1442
    %1460 = vmatmul.f32.gmra.mxu0 %v1440
    %v1461 = vpop.f32.mrf.mxu0
    %v1462 = vadd.f32 0.0, %v1461
    %1463 = vdwg.mxu0
    %v1464 = vsel %vm479, %v1462, -inf
    %1465 = vmax.xlane.f32.xlu0 %v1464
    %v1466 = vpop.xlane.xlu0 %1465
    %v1467 = vsub.f32 %v1462, %v1466
    %v1468 = vmul.f32 %v1467, 1.442695
    %v1469 = vpow.pop %v1468
    %v1470 = vsel %vm479, %v1469, 0.0
    %1471 = vadd.xlane.f32.xlu0 %v1470
    %v1472 = vpop.xlane.xlu0 %1471
    %v1473 = vrcp.pop %v1472
    %v1474 = vmul.f32 %v1472, %v1473
    %v1475 = vsub.f32 1.0, %v1474
    %v1476 = vmul.f32 %v1473, %v1475
    %v1477 = vadd.f32 %v1473, %v1476
    %vm1478 = vweird.f32 %v1472
    %vm1479 = vweird.f32 %v1473
    %vm1480 = vmor %vm1478, %vm1479
    %v1481 = vsel %vm1480, %v1473, %v1477
    %v1482 = vand.u32 2147483647, %v1472
    %vm1483 = vcmp.eq.f32.partialorder %v1482, 8.507059e+37
    %v1484 = vand.u32 %v1472, 2147483648
    %v1485 = vor.u32 1.1754944e-38, %v1484
    %v1486 = vsel %vm1483, %v1485, %v1481
    %v1487 = vmul.f32 %v1469, %v1486
    %v1489 = vsel %vm479, %v1487, 0
    %1491 = vmatpush.msra.mxu0 0.0
    %1492 = vmatpush.msra.mxu0 0.0
    %1493 = vmatpush.msra.mxu0 0.0
    %1494 = vmatpush.msra.mxu0 0.0
    %1495 = vmatpush.msra.mxu0 0.0
    %1496 = vmatpush.msra.mxu0 0.0
    %1497 = vmatpush.msra.mxu0 0.0
    %1498 = vmatpush.msra.mxu0 0.0
    %1499 = vmatpush.msra.mxu0 0.0
    %1500 = vmatpush.msra.mxu0 0.0
    %1501 = vmatpush.msra.mxu0 0.0
    %1502 = vmatpush.msra.mxu0 0.0
    %1503 = vmatpush.msra.mxu0 0.0
    %1504 = vmatpush.msra.mxu0 0.0
    %1505 = vmatpush.msra.mxu0 0.0
    %1506 = vmatpush.msra.mxu0 %v447
    %1507 = vmatmul.f32.gmra.mxu0 %v1489
    %v1508 = vpop.f32.mrf.mxu0
    %v1509 = vadd.f32 0.0, %v1508
    %1510 = vdwg.mxu0
    %1511 = vst.msk [vmem:[#allocation2 + $0x18] sm:$0xff] %vm453, %v1509
    %1512 = vrot.lane.b32.xlu0 %v1435, 112
    %v1513 = vpop.permute.xlu0 %1512
    %1514 = vrot.lane.b32.xlu0 %v418, 48
    %v1515 = vpop.permute.xlu0 %1514
    %v1516 = vsel %vm453, %v1513, 0
    %v1518 = vsel %vm453, %v1515, 0
    %1520 = vmatpush.xpose.msra.mxu0 0.0
    %1521 = vmatpush.xpose.msra.mxu0 0.0
    %1522 = vmatpush.xpose.msra.mxu0 0.0
    %1523 = vmatpush.xpose.msra.mxu0 0.0
    %1524 = vmatpush.xpose.msra.mxu0 0.0
    %1525 = vmatpush.xpose.msra.mxu0 0.0
    %1526 = vmatpush.xpose.msra.mxu0 0.0
    %1527 = vmatpush.xpose.msra.mxu0 0.0
    %1528 = vmatpush.xpose.msra.mxu0 0.0
    %1529 = vmatpush.xpose.msra.mxu0 0.0
    %1530 = vmatpush.xpose.msra.mxu0 0.0
    %1531 = vmatpush.xpose.msra.mxu0 0.0
    %1532 = vmatpush.xpose.msra.mxu0 0.0
    %1533 = vmatpush.xpose.msra.mxu0 0.0
    %1534 = vmatpush.xpose.msra.mxu0 0.0
    %1535 = vmatpush.xpose.msra.mxu0 %v1518
    %1536 = vmatmul.f32.gmra.mxu0 %v1516
    %v1537 = vpop.f32.mrf.mxu0
    %v1538 = vadd.f32 0.0, %v1537
    %1539 = vdwg.mxu0
    %v1540 = vsel %vm479, %v1538, -inf
    %1541 = vmax.xlane.f32.xlu0 %v1540
    %v1542 = vpop.xlane.xlu0 %1541
    %v1543 = vsub.f32 %v1538, %v1542
    %v1544 = vmul.f32 %v1543, 1.442695
    %v1545 = vpow.pop %v1544
    %v1546 = vsel %vm479, %v1545, 0.0
    %1547 = vadd.xlane.f32.xlu0 %v1546
    %v1548 = vpop.xlane.xlu0 %1547
    %v1549 = vrcp.pop %v1548
    %v1550 = vmul.f32 %v1548, %v1549
    %v1551 = vsub.f32 1.0, %v1550
    %v1552 = vmul.f32 %v1549, %v1551
    %v1553 = vadd.f32 %v1549, %v1552
    %vm1554 = vweird.f32 %v1548
    %vm1555 = vweird.f32 %v1549
    %vm1556 = vmor %vm1554, %vm1555
    %v1557 = vsel %vm1556, %v1549, %v1553
    %v1558 = vand.u32 2147483647, %v1548
    %vm1559 = vcmp.eq.f32.partialorder %v1558, 8.507059e+37
    %v1560 = vand.u32 %v1548, 2147483648
    %v1561 = vor.u32 1.1754944e-38, %v1560
    %v1562 = vsel %vm1559, %v1561, %v1557
    %v1563 = vmul.f32 %v1545, %v1562
    %1565 = vrot.lane.b32.xlu0 %v447, 112
    %v1566 = vpop.permute.xlu0 %1565
    %v1569 = vsel %vm479, %v1563, 0
    %1571 = vmatpush.msra.mxu0 0.0
    %1572 = vmatpush.msra.mxu0 0.0
    %1573 = vmatpush.msra.mxu0 0.0
    %1574 = vmatpush.msra.mxu0 0.0
    %1575 = vmatpush.msra.mxu0 0.0
    %1576 = vmatpush.msra.mxu0 0.0
    %1577 = vmatpush.msra.mxu0 0.0
    %1578 = vmatpush.msra.mxu0 0.0
    %1579 = vmatpush.msra.mxu0 0.0
    %1580 = vmatpush.msra.mxu0 0.0
    %1581 = vmatpush.msra.mxu0 0.0
    %1582 = vmatpush.msra.mxu0 0.0
    %1583 = vmatpush.msra.mxu0 0.0
    %1584 = vmatpush.msra.mxu0 0.0
    %1585 = vmatpush.msra.mxu0 0.0
    %1586 = vmatpush.msra.mxu0 %v1566
    %1587 = vmatmul.f32.gmra.mxu0 %v1569
    %v1588 = vpop.f32.mrf.mxu0
    %v1589 = vadd.f32 0.0, %v1588
    %1590 = vdwg.mxu0
    %1592 = vrot.lane.b32.xlu0 %v1589, 16
    %v1593 = vpop.permute.xlu0 %1592
    %1595 = vst.msk [vmem:[#allocation2 + $0x18] sm:$0xff] %vm611, %v1593
    %1596 = vrot.lane.b32.xlu0 %v1435, 96
    %v1597 = vpop.permute.xlu0 %1596
    %1598 = vrot.lane.b32.xlu0 %v418, 32
    %v1599 = vpop.permute.xlu0 %1598
    %v1600 = vsel %vm453, %v1597, 0
    %v1602 = vsel %vm453, %v1599, 0
    %1604 = vmatpush.xpose.msra.mxu0 0.0
    %1605 = vmatpush.xpose.msra.mxu0 0.0
    %1606 = vmatpush.xpose.msra.mxu0 0.0
    %1607 = vmatpush.xpose.msra.mxu0 0.0
    %1608 = vmatpush.xpose.msra.mxu0 0.0
    %1609 = vmatpush.xpose.msra.mxu0 0.0
    %1610 = vmatpush.xpose.msra.mxu0 0.0
    %1611 = vmatpush.xpose.msra.mxu0 0.0
    %1612 = vmatpush.xpose.msra.mxu0 0.0
    %1613 = vmatpush.xpose.msra.mxu0 0.0
    %1614 = vmatpush.xpose.msra.mxu0 0.0
    %1615 = vmatpush.xpose.msra.mxu0 0.0
    %1616 = vmatpush.xpose.msra.mxu0 0.0
    %1617 = vmatpush.xpose.msra.mxu0 0.0
    %1618 = vmatpush.xpose.msra.mxu0 0.0
    %1619 = vmatpush.xpose.msra.mxu0 %v1602
    %1620 = vmatmul.f32.gmra.mxu0 %v1600
    %v1621 = vpop.f32.mrf.mxu0
    %v1622 = vadd.f32 0.0, %v1621
    %1623 = vdwg.mxu0
    %v1624 = vsel %vm479, %v1622, -inf
    %1625 = vmax.xlane.f32.xlu0 %v1624
    %v1626 = vpop.xlane.xlu0 %1625
    %v1627 = vsub.f32 %v1622, %v1626
    %v1628 = vmul.f32 %v1627, 1.442695
    %v1629 = vpow.pop %v1628
    %v1630 = vsel %vm479, %v1629, 0.0
    %1631 = vadd.xlane.f32.xlu0 %v1630
    %v1632 = vpop.xlane.xlu0 %1631
    %v1633 = vrcp.pop %v1632
    %v1634 = vmul.f32 %v1632, %v1633
    %v1635 = vsub.f32 1.0, %v1634
    %v1636 = vmul.f32 %v1633, %v1635
    %v1637 = vadd.f32 %v1633, %v1636
    %vm1638 = vweird.f32 %v1632
    %vm1639 = vweird.f32 %v1633
    %vm1640 = vmor %vm1638, %vm1639
    %v1641 = vsel %vm1640, %v1633, %v1637
    %v1642 = vand.u32 2147483647, %v1632
    %vm1643 = vcmp.eq.f32.partialorder %v1642, 8.507059e+37
    %v1644 = vand.u32 %v1632, 2147483648
    %v1645 = vor.u32 1.1754944e-38, %v1644
    %v1646 = vsel %vm1643, %v1645, %v1641
    %v1647 = vmul.f32 %v1629, %v1646
    %1648 = vrot.lane.b32.xlu0 %v447, 96
    %v1649 = vpop.permute.xlu0 %1648
    %v1652 = vsel %vm479, %v1647, 0
    %1654 = vmatpush.msra.mxu0 0.0
    %1655 = vmatpush.msra.mxu0 0.0
    %1656 = vmatpush.msra.mxu0 0.0
    %1657 = vmatpush.msra.mxu0 0.0
    %1658 = vmatpush.msra.mxu0 0.0
    %1659 = vmatpush.msra.mxu0 0.0
    %1660 = vmatpush.msra.mxu0 0.0
    %1661 = vmatpush.msra.mxu0 0.0
    %1662 = vmatpush.msra.mxu0 0.0
    %1663 = vmatpush.msra.mxu0 0.0
    %1664 = vmatpush.msra.mxu0 0.0
    %1665 = vmatpush.msra.mxu0 0.0
    %1666 = vmatpush.msra.mxu0 0.0
    %1667 = vmatpush.msra.mxu0 0.0
    %1668 = vmatpush.msra.mxu0 0.0
    %1669 = vmatpush.msra.mxu0 %v1649
    %1670 = vmatmul.f32.gmra.mxu0 %v1652
    %v1671 = vpop.f32.mrf.mxu0
    %v1672 = vadd.f32 0.0, %v1671
    %1673 = vdwg.mxu0
    %1675 = vrot.lane.b32.xlu0 %v1672, 32
    %v1676 = vpop.permute.xlu0 %1675
    %1678 = vst.msk [vmem:[#allocation2 + $0x18] sm:$0xff] %vm695, %v1676
    %1679 = vrot.lane.b32.xlu0 %v1435, 80
    %v1680 = vpop.permute.xlu0 %1679
    %1681 = vrot.lane.b32.xlu0 %v418, 16
    %v1682 = vpop.permute.xlu0 %1681
    %v1683 = vsel %vm453, %v1680, 0
    %v1685 = vsel %vm453, %v1682, 0
    %1687 = vmatpush.xpose.msra.mxu0 0.0
    %1688 = vmatpush.xpose.msra.mxu0 0.0
    %1689 = vmatpush.xpose.msra.mxu0 0.0
    %1690 = vmatpush.xpose.msra.mxu0 0.0
    %1691 = vmatpush.xpose.msra.mxu0 0.0
    %1692 = vmatpush.xpose.msra.mxu0 0.0
    %1693 = vmatpush.xpose.msra.mxu0 0.0
    %1694 = vmatpush.xpose.msra.mxu0 0.0
    %1695 = vmatpush.xpose.msra.mxu0 0.0
    %1696 = vmatpush.xpose.msra.mxu0 0.0
    %1697 = vmatpush.xpose.msra.mxu0 0.0
    %1698 = vmatpush.xpose.msra.mxu0 0.0
    %1699 = vmatpush.xpose.msra.mxu0 0.0
    %1700 = vmatpush.xpose.msra.mxu0 0.0
    %1701 = vmatpush.xpose.msra.mxu0 0.0
    %1702 = vmatpush.xpose.msra.mxu0 %v1685
    %1703 = vmatmul.f32.gmra.mxu0 %v1683
    %v1704 = vpop.f32.mrf.mxu0
    %v1705 = vadd.f32 0.0, %v1704
    %1706 = vdwg.mxu0
    %v1707 = vsel %vm479, %v1705, -inf
    %1708 = vmax.xlane.f32.xlu0 %v1707
    %v1709 = vpop.xlane.xlu0 %1708
    %v1710 = vsub.f32 %v1705, %v1709
    %v1711 = vmul.f32 %v1710, 1.442695
    %v1712 = vpow.pop %v1711
    %v1713 = vsel %vm479, %v1712, 0.0
    %1714 = vadd.xlane.f32.xlu0 %v1713
    %v1715 = vpop.xlane.xlu0 %1714
    %v1716 = vrcp.pop %v1715
    %v1717 = vmul.f32 %v1715, %v1716
    %v1718 = vsub.f32 1.0, %v1717
    %v1719 = vmul.f32 %v1716, %v1718
    %v1720 = vadd.f32 %v1716, %v1719
    %vm1721 = vweird.f32 %v1715
    %vm1722 = vweird.f32 %v1716
    %vm1723 = vmor %vm1721, %vm1722
    %v1724 = vsel %vm1723, %v1716, %v1720
    %v1725 = vand.u32 2147483647, %v1715
    %vm1726 = vcmp.eq.f32.partialorder %v1725, 8.507059e+37
    %v1727 = vand.u32 %v1715, 2147483648
    %v1728 = vor.u32 1.1754944e-38, %v1727
    %v1729 = vsel %vm1726, %v1728, %v1724
    %v1730 = vmul.f32 %v1712, %v1729
    %1731 = vrot.lane.b32.xlu0 %v447, 80
    %v1732 = vpop.permute.xlu0 %1731
    %v1735 = vsel %vm479, %v1730, 0
    %1737 = vmatpush.msra.mxu0 0.0
    %1738 = vmatpush.msra.mxu0 0.0
    %1739 = vmatpush.msra.mxu0 0.0
    %1740 = vmatpush.msra.mxu0 0.0
    %1741 = vmatpush.msra.mxu0 0.0
    %1742 = vmatpush.msra.mxu0 0.0
    %1743 = vmatpush.msra.mxu0 0.0
    %1744 = vmatpush.msra.mxu0 0.0
    %1745 = vmatpush.msra.mxu0 0.0
    %1746 = vmatpush.msra.mxu0 0.0
    %1747 = vmatpush.msra.mxu0 0.0
    %1748 = vmatpush.msra.mxu0 0.0
    %1749 = vmatpush.msra.mxu0 0.0
    %1750 = vmatpush.msra.mxu0 0.0
    %1751 = vmatpush.msra.mxu0 0.0
    %1752 = vmatpush.msra.mxu0 %v1732
    %1753 = vmatmul.f32.gmra.mxu0 %v1735
    %v1754 = vpop.f32.mrf.mxu0
    %v1755 = vadd.f32 0.0, %v1754
    %1756 = vdwg.mxu0
    %1758 = vrot.lane.b32.xlu0 %v1755, 48
    %v1759 = vpop.permute.xlu0 %1758
    %1761 = vst.msk [vmem:[#allocation2 + $0x18] sm:$0xff] %vm779, %v1759
    %v1762 = vld [vmem:[#allocation2] sm:$0xff]
    %v1763 = vld [vmem:[#allocation2 + $0x8] sm:$0xff]
    %v1764 = vld [vmem:[#allocation2 + $0x10] sm:$0xff]
    %v1765 = vld [vmem:[#allocation2 + $0x18] sm:$0xff]
    %v1767 = vperm.slane %v350, 0
    %v1770 = vsel %vm378, %v1762, 0
    %v1773 = vsel %vm378, %v1763, 0
    %v1776 = vsel %vm378, %v1764, 0
    %v1779 = vsel %vm378, %v1765, 0
    %1781 = vmatpush.msra.mxu0 0.0
    %1782 = vmatpush.msra.mxu0 0.0
    %1783 = vmatpush.msra.mxu0 0.0
    %1784 = vmatpush.msra.mxu0 0.0
    %1785 = vmatpush.msra.mxu0 0.0
    %1786 = vmatpush.msra.mxu0 0.0
    %1787 = vmatpush.msra.mxu0 0.0
    %1788 = vmatpush.msra.mxu0 0.0
    %1789 = vmatpush.msra.mxu0 %v349
    %1790 = vmatpush.msra.mxu0 %v348
    %1791 = vmatpush.msra.mxu0 %v347
    %1792 = vmatpush.msra.mxu0 %v346
    %1793 = vmatpush.msra.mxu0 %v345
    %1794 = vmatpush.msra.mxu0 %v344
    %1795 = vmatpush.msra.mxu0 %v343
    %1796 = vmatpush.msra.mxu0 %v342
    %1797 = vmatmul.f32.gmra.mxu0 %v1770
    %v1798 = vpop.f32.mrf.mxu0
    %v1799 = vadd.f32 %v1767, %v1798
    %1800 = vmatmul.f32.gmra.mxu0 %v1773
    %v1801 = vpop.f32.mrf.mxu0
    %v1802 = vadd.f32 %v1767, %v1801
    %1803 = vmatmul.f32.gmra.mxu0 %v1776
    %v1804 = vpop.f32.mrf.mxu0
    %v1805 = vadd.f32 %v1767, %v1804
    %1806 = vmatmul.f32.gmra.mxu0 %v1779
    %v1807 = vpop.f32.mrf.mxu0
    %v1808 = vadd.f32 %v1767, %v1807
    %1809 = vdwg.mxu0
    %v1810 = vadd.f32 %v321, %v1799
    %v1811 = vadd.f32 %v322, %v1802
    %v1812 = vadd.f32 %v323, %v1805
    %v1813 = vadd.f32 %v324, %v1808
    %v1814 = vsel %vm378, %v1810, 0.0
    %1815 = vadd.xlane.f32.xlu0 %v1814
    %v1816 = vpop.xlane.xlu0 %1815
    %v1817 = vsel %vm378, %v1811, 0.0
    %1818 = vadd.xlane.f32.xlu0 %v1817
    %v1819 = vpop.xlane.xlu0 %1818
    %v1820 = vsel %vm378, %v1812, 0.0
    %1821 = vadd.xlane.f32.xlu0 %v1820
    %v1822 = vpop.xlane.xlu0 %1821
    %v1823 = vsel %vm378, %v1813, 0.0
    %1824 = vadd.xlane.f32.xlu0 %v1823
    %v1825 = vpop.xlane.xlu0 %1824
    %v1826 = vrcp.pop 64.0
    %v1827 = vmul.f32 64.0, %v1826
    %v1828 = vsub.f32 1.0, %v1827
    %v1829 = vmul.f32 %v1826, %v1828
    %v1830 = vadd.f32 %v1826, %v1829
    %vm1831 = vweird.f32 %v1826
    %v1832 = vsel %vm1831, %v1826, %v1830
    %v1833 = vmul.f32 %v1816, %v1832
    %v1834 = vmul.f32 %v1819, %v1832
    %v1835 = vmul.f32 %v1822, %v1832
    %v1836 = vmul.f32 %v1825, %v1832
    %v1837 = vsub.f32 %v1810, %v1833
    %v1838 = vsub.f32 %v1811, %v1834
    %v1839 = vsub.f32 %v1812, %v1835
    %v1840 = vsub.f32 %v1813, %v1836
    %v1841 = vmul.f32 %v1837, %v1837
    %v1842 = vmul.f32 %v1838, %v1838
    %v1843 = vmul.f32 %v1839, %v1839
    %v1844 = vmul.f32 %v1840, %v1840
    %v1845 = vsel %vm378, %v1841, 0.0
    %1846 = vadd.xlane.f32.xlu0 %v1845
    %v1847 = vpop.xlane.xlu0 %1846
    %v1848 = vsel %vm378, %v1842, 0.0
    %1849 = vadd.xlane.f32.xlu0 %v1848
    %v1850 = vpop.xlane.xlu0 %1849
    %v1851 = vsel %vm378, %v1843, 0.0
    %1852 = vadd.xlane.f32.xlu0 %v1851
    %v1853 = vpop.xlane.xlu0 %1852
    %v1854 = vsel %vm378, %v1844, 0.0
    %1855 = vadd.xlane.f32.xlu0 %v1854
    %v1856 = vpop.xlane.xlu0 %1855
    %v1857 = vmul.f32 %v1847, %v1832
    %v1858 = vmul.f32 %v1850, %v1832
    %v1859 = vmul.f32 %v1853, %v1832
    %v1860 = vmul.f32 %v1856, %v1832
    %v1861 = vadd.f32 %v1857, 1e-05
    %v1862 = vadd.f32 %v1858, 1e-05
    %v1863 = vadd.f32 %v1859, 1e-05
    %v1864 = vadd.f32 %v1860, 1e-05
    %v1865 = vrsqrt.pop %v1861
    %v1866 = vmul.f32 %v1865, %v1861
    %v1867 = vmul.f32 %v1866, %v1865
    %v1868 = vmul.f32 0.5, %v1867
    %v1869 = vsub.f32 1.5, %v1868
    %v1870 = vmul.f32 %v1865, %v1869
    %vm1871 = vweird.f32 %v1861
    %vm1872 = vweird.f32 %v1865
    %vm1873 = vmor %vm1871, %vm1872
    %v1874 = vsel %vm1873, %v1865, %v1870
    %v1875 = vrsqrt.pop %v1862
    %v1876 = vmul.f32 %v1875, %v1862
    %v1877 = vmul.f32 %v1876, %v1875
    %v1878 = vmul.f32 0.5, %v1877
    %v1879 = vsub.f32 1.5, %v1878
    %v1880 = vmul.f32 %v1875, %v1879
    %vm1881 = vweird.f32 %v1862
    %vm1882 = vweird.f32 %v1875
    %vm1883 = vmor %vm1881, %vm1882
    %v1884 = vsel %vm1883, %v1875, %v1880
    %v1885 = vrsqrt.pop %v1863
    %v1886 = vmul.f32 %v1885, %v1863
    %v1887 = vmul.f32 %v1886, %v1885
    %v1888 = vmul.f32 0.5, %v1887
    %v1889 = vsub.f32 1.5, %v1888
    %v1890 = vmul.f32 %v1885, %v1889
    %vm1891 = vweird.f32 %v1863
    %vm1892 = vweird.f32 %v1885
    %vm1893 = vmor %vm1891, %vm1892
    %v1894 = vsel %vm1893, %v1885, %v1890
    %v1895 = vrsqrt.pop %v1864
    %v1896 = vmul.f32 %v1895, %v1864
    %v1897 = vmul.f32 %v1896, %v1895
    %v1898 = vmul.f32 0.5, %v1897
    %v1899 = vsub.f32 1.5, %v1898
    %v1900 = vmul.f32 %v1895, %v1899
    %vm1901 = vweird.f32 %v1864
    %vm1902 = vweird.f32 %v1895
    %vm1903 = vmor %vm1901, %vm1902
    %v1904 = vsel %vm1903, %v1895, %v1900
    %v1905 = vmul.f32 %v1837, %v1874
    %v1906 = vmul.f32 %v1838, %v1884
    %v1907 = vmul.f32 %v1839, %v1894
    %v1908 = vmul.f32 %v1840, %v1904
    %v1910 = vperm.slane %v369, 0
    %v1912 = vmul.f32 %v1905, %v1910
    %v1913 = vmul.f32 %v1906, %v1910
    %v1914 = vmul.f32 %v1907, %v1910
    %v1915 = vmul.f32 %v1908, %v1910
    %v1917 = vperm.slane %v370, 0
    %v1919 = vadd.f32 %v1912, %v1917
    %v1920 = vadd.f32 %v1913, %v1917
    %v1921 = vadd.f32 %v1914, %v1917
    %v1922 = vadd.f32 %v1915, %v1917
    %v1924 = vperm.slane %v359, 0
    %v1927 = vsel %vm378, %v1919, 0
    %v1930 = vsel %vm378, %v1920, 0
    %v1933 = vsel %vm378, %v1921, 0
    %v1936 = vsel %vm378, %v1922, 0
    %1938 = vmatpush.msra.mxu0 0.0
    %1939 = vmatpush.msra.mxu0 0.0
    %1940 = vmatpush.msra.mxu0 0.0
    %1941 = vmatpush.msra.mxu0 0.0
    %1942 = vmatpush.msra.mxu0 0.0
    %1943 = vmatpush.msra.mxu0 0.0
    %1944 = vmatpush.msra.mxu0 0.0
    %1945 = vmatpush.msra.mxu0 0.0
    %1946 = vmatpush.msra.mxu0 %v358
    %1947 = vmatpush.msra.mxu0 %v357
    %1948 = vmatpush.msra.mxu0 %v356
    %1949 = vmatpush.msra.mxu0 %v355
    %1950 = vmatpush.msra.mxu0 %v354
    %1951 = vmatpush.msra.mxu0 %v353
    %1952 = vmatpush.msra.mxu0 %v352
    %1953 = vmatpush.msra.mxu0 %v351
    %1954 = vmatmul.f32.gmra.mxu0 %v1927
    %v1955 = vpop.f32.mrf.mxu0
    %v1956 = vadd.f32 %v1924, %v1955
    %1957 = vmatmul.f32.gmra.mxu0 %v1930
    %v1958 = vpop.f32.mrf.mxu0
    %v1959 = vadd.f32 %v1924, %v1958
    %1960 = vmatmul.f32.gmra.mxu0 %v1933
    %v1961 = vpop.f32.mrf.mxu0
    %v1962 = vadd.f32 %v1924, %v1961
    %1963 = vmatmul.f32.gmra.mxu0 %v1936
    %v1964 = vpop.f32.mrf.mxu0
    %v1965 = vadd.f32 %v1924, %v1964
    %1966 = vdwg.mxu0
    %v1967 = vmax.f32 %v1956, 0.0
    %v1968 = vmax.f32 %v1959, 0.0
    %v1969 = vmax.f32 %v1962, 0.0
    %v1970 = vmax.f32 %v1965, 0.0
    %v1972 = vperm.slane %v368, 0
    %v1975 = vsel %vm378, %v1967, 0
    %v1978 = vsel %vm378, %v1968, 0
    %v1981 = vsel %vm378, %v1969, 0
    %v1984 = vsel %vm378, %v1970, 0
    %1986 = vmatpush.msra.mxu0 0.0
    %1987 = vmatpush.msra.mxu0 0.0
    %1988 = vmatpush.msra.mxu0 0.0
    %1989 = vmatpush.msra.mxu0 0.0
    %1990 = vmatpush.msra.mxu0 0.0
    %1991 = vmatpush.msra.mxu0 0.0
    %1992 = vmatpush.msra.mxu0 0.0
    %1993 = vmatpush.msra.mxu0 0.0
    %1994 = vmatpush.msra.mxu0 %v367
    %1995 = vmatpush.msra.mxu0 %v366
    %1996 = vmatpush.msra.mxu0 %v365
    %1997 = vmatpush.msra.mxu0 %v364
    %1998 = vmatpush.msra.mxu0 %v363
    %1999 = vmatpush.msra.mxu0 %v362
    %2000 = vmatpush.msra.mxu0 %v361
    %2001 = vmatpush.msra.mxu0 %v360
    %2002 = vmatmul.f32.gmra.mxu0 %v1975
    %v2003 = vpop.f32.mrf.mxu0
    %v2004 = vadd.f32 %v1972, %v2003
    %2005 = vmatmul.f32.gmra.mxu0 %v1978
    %v2006 = vpop.f32.mrf.mxu0
    %v2007 = vadd.f32 %v1972, %v2006
    %2008 = vmatmul.f32.gmra.mxu0 %v1981
    %v2009 = vpop.f32.mrf.mxu0
    %v2010 = vadd.f32 %v1972, %v2009
    %2011 = vmatmul.f32.gmra.mxu0 %v1984
    %v2012 = vpop.f32.mrf.mxu0
    %v2013 = vadd.f32 %v1972, %v2012
    %2014 = vdwg.mxu0
    %v2015 = vadd.f32 %v1919, %v2004
    %v2016 = vadd.f32 %v1920, %v2007
    %v2017 = vadd.f32 %v1921, %v2010
    %v2018 = vadd.f32 %v1922, %v2013
    %v2019 = vsel %vm378, %v2015, 0.0
    %2020 = vadd.xlane.f32.xlu0 %v2019
    %v2021 = vpop.xlane.xlu0 %2020
    %v2022 = vsel %vm378, %v2016, 0.0
    %2023 = vadd.xlane.f32.xlu0 %v2022
    %v2024 = vpop.xlane.xlu0 %2023
    %v2025 = vsel %vm378, %v2017, 0.0
    %2026 = vadd.xlane.f32.xlu0 %v2025
    %v2027 = vpop.xlane.xlu0 %2026
    %v2028 = vsel %vm378, %v2018, 0.0
    %2029 = vadd.xlane.f32.xlu0 %v2028
    %v2030 = vpop.xlane.xlu0 %2029
    %v2031 = vmul.f32 %v2021, %v1832
    %v2032 = vmul.f32 %v2024, %v1832
    %v2033 = vmul.f32 %v2027, %v1832
    %v2034 = vmul.f32 %v2030, %v1832
    %v2035 = vsub.f32 %v2015, %v2031
    %v2036 = vsub.f32 %v2016, %v2032
    %v2037 = vsub.f32 %v2017, %v2033
    %v2038 = vsub.f32 %v2018, %v2034
    %v2039 = vmul.f32 %v2035, %v2035
    %v2040 = vmul.f32 %v2036, %v2036
    %v2041 = vmul.f32 %v2037, %v2037
    %v2042 = vmul.f32 %v2038, %v2038
    %v2043 = vsel %vm378, %v2039, 0.0
    %2044 = vadd.xlane.f32.xlu0 %v2043
    %v2045 = vpop.xlane.xlu0 %2044
    %v2046 = vsel %vm378, %v2040, 0.0
    %2047 = vadd.xlane.f32.xlu0 %v2046
    %v2048 = vpop.xlane.xlu0 %2047
    %v2049 = vsel %vm378, %v2041, 0.0
    %2050 = vadd.xlane.f32.xlu0 %v2049
    %v2051 = vpop.xlane.xlu0 %2050
    %v2052 = vsel %vm378, %v2042, 0.0
    %2053 = vadd.xlane.f32.xlu0 %v2052
    %v2054 = vpop.xlane.xlu0 %2053
    %v2055 = vmul.f32 %v2045, %v1832
    %v2056 = vmul.f32 %v2048, %v1832
    %v2057 = vmul.f32 %v2051, %v1832
    %v2058 = vmul.f32 %v2054, %v1832
    %v2059 = vadd.f32 %v2055, 1e-05
    %v2060 = vadd.f32 %v2056, 1e-05
    %v2061 = vadd.f32 %v2057, 1e-05
    %v2062 = vadd.f32 %v2058, 1e-05
    %v2063 = vrsqrt.pop %v2059
    %v2064 = vmul.f32 %v2063, %v2059
    %v2065 = vmul.f32 %v2064, %v2063
    %v2066 = vmul.f32 0.5, %v2065
    %v2067 = vsub.f32 1.5, %v2066
    %v2068 = vmul.f32 %v2063, %v2067
    %vm2069 = vweird.f32 %v2059
    %vm2070 = vweird.f32 %v2063
    %vm2071 = vmor %vm2069, %vm2070
    %v2072 = vsel %vm2071, %v2063, %v2068
    %v2073 = vrsqrt.pop %v2060
    %v2074 = vmul.f32 %v2073, %v2060
    %v2075 = vmul.f32 %v2074, %v2073
    %v2076 = vmul.f32 0.5, %v2075
    %v2077 = vsub.f32 1.5, %v2076
    %v2078 = vmul.f32 %v2073, %v2077
    %vm2079 = vweird.f32 %v2060
    %vm2080 = vweird.f32 %v2073
    %vm2081 = vmor %vm2079, %vm2080
    %v2082 = vsel %vm2081, %v2073, %v2078
    %v2083 = vrsqrt.pop %v2061
    %v2084 = vmul.f32 %v2083, %v2061
    %v2085 = vmul.f32 %v2084, %v2083
    %v2086 = vmul.f32 0.5, %v2085
    %v2087 = vsub.f32 1.5, %v2086
    %v2088 = vmul.f32 %v2083, %v2087
    %vm2089 = vweird.f32 %v2061
    %vm2090 = vweird.f32 %v2083
    %vm2091 = vmor %vm2089, %vm2090
    %v2092 = vsel %vm2091, %v2083, %v2088
    %v2093 = vrsqrt.pop %v2062
    %v2094 = vmul.f32 %v2093, %v2062
    %v2095 = vmul.f32 %v2094, %v2093
    %v2096 = vmul.f32 0.5, %v2095
    %v2097 = vsub.f32 1.5, %v2096
    %v2098 = vmul.f32 %v2093, %v2097
    %vm2099 = vweird.f32 %v2062
    %vm2100 = vweird.f32 %v2093
    %vm2101 = vmor %vm2099, %vm2100
    %v2102 = vsel %vm2101, %v2093, %v2098
    %v2103 = vmul.f32 %v2035, %v2072
    %v2104 = vmul.f32 %v2036, %v2082
    %v2105 = vmul.f32 %v2037, %v2092
    %v2106 = vmul.f32 %v2038, %v2102
    %v2108 = vperm.slane %v371, 0
    %v2110 = vmul.f32 %v2103, %v2108
    %v2111 = vmul.f32 %v2104, %v2108
    %v2112 = vmul.f32 %v2105, %v2108
    %v2113 = vmul.f32 %v2106, %v2108
    %v2115 = vperm.slane %v372, 0
    %v2117 = vadd.f32 %v2110, %v2115
    %v2118 = vadd.f32 %v2111, %v2115
    %v2119 = vadd.f32 %v2112, %v2115
    %v2120 = vadd.f32 %v2113, %v2115
    %v2121 = vld [vmem:[#allocation12] sm:$0xff]
    %v2122 = vld [vmem:[#allocation12 + $0x8] sm:$0xff]
    %v2123 = vld [vmem:[#allocation12 + $0x10] sm:$0xff]
    %v2124 = vld [vmem:[#allocation12 + $0x18] sm:$0xff]
    %v2125 = vld [vmem:[#allocation12 + $0x20] sm:$0xff]
    %v2126 = vld [vmem:[#allocation12 + $0x28] sm:$0xff]
    %v2127 = vld [vmem:[#allocation12 + $0x30] sm:$0xff]
    %v2128 = vld [vmem:[#allocation12 + $0x38] sm:$0xff]
    %v2129 = vld [vmem:[#allocation12 + $0x40] sm:$0xff]
    %v2130 = vld [vmem:[#allocation12 + $0x48] sm:$0xff]
    %v2131 = vld [vmem:[#allocation12 + $0x50] sm:$0xff]
    %v2132 = vld [vmem:[#allocation12 + $0x58] sm:$0xff]
    %v2133 = vld [vmem:[#allocation12 + $0x60] sm:$0xff]
    %v2134 = vld [vmem:[#allocation12 + $0x68] sm:$0xff]
    %v2135 = vld [vmem:[#allocation12 + $0x70] sm:$0xff]
    %v2136 = vld [vmem:[#allocation12 + $0x78] sm:$0xff]
    %v2137 = vld [vmem:[%s33] sm:$0x3]
    %v2138 = vld [vmem:[#allocation14] sm:$0xff]
    %v2139 = vld [vmem:[#allocation14 + $0x8] sm:$0xff]
    %v2140 = vld [vmem:[#allocation14 + $0x10] sm:$0xff]
    %v2141 = vld [vmem:[#allocation14 + $0x18] sm:$0xff]
    %v2142 = vld [vmem:[#allocation14 + $0x20] sm:$0xff]
    %v2143 = vld [vmem:[#allocation14 + $0x28] sm:$0xff]
    %v2144 = vld [vmem:[#allocation14 + $0x30] sm:$0xff]
    %v2145 = vld [vmem:[#allocation14 + $0x38] sm:$0xff]
    %v2146 = vld [vmem:[%s37] sm:$0x1]
    %v2147 = vld [vmem:[#allocation15] sm:$0xff]
    %v2148 = vld [vmem:[#allocation15 + $0x8] sm:$0xff]
    %v2149 = vld [vmem:[#allocation15 + $0x10] sm:$0xff]
    %v2150 = vld [vmem:[#allocation15 + $0x18] sm:$0xff]
    %v2151 = vld [vmem:[#allocation15 + $0x20] sm:$0xff]
    %v2152 = vld [vmem:[#allocation15 + $0x28] sm:$0xff]
    %v2153 = vld [vmem:[#allocation15 + $0x30] sm:$0xff]
    %v2154 = vld [vmem:[#allocation15 + $0x38] sm:$0xff]
    %v2155 = vld [vmem:[%s41] sm:$0x1]
    %v2156 = vld [vmem:[#allocation17] sm:$0xff]
    %v2157 = vld [vmem:[#allocation17 + $0x8] sm:$0xff]
    %v2158 = vld [vmem:[#allocation17 + $0x10] sm:$0xff]
    %v2159 = vld [vmem:[#allocation17 + $0x18] sm:$0xff]
    %v2160 = vld [vmem:[#allocation17 + $0x20] sm:$0xff]
    %v2161 = vld [vmem:[#allocation17 + $0x28] sm:$0xff]
    %v2162 = vld [vmem:[#allocation17 + $0x30] sm:$0xff]
    %v2163 = vld [vmem:[#allocation17 + $0x38] sm:$0xff]
    %v2164 = vld [vmem:[%s45] sm:$0x1]
    %v2165 = vld [vmem:[%s47] sm:$0x1]
    %v2166 = vld [vmem:[%s49] sm:$0x1]
    %v2167 = vld [vmem:[%s51] sm:$0x1]
    %v2168 = vld [vmem:[%s53] sm:$0x1]
    %v2170 = vperm.slane %v2137, 0
    %v2171 = vperm.slane %v2137, 1
    %v2175 = vsel %vm378, %v2117, 0
    %v2178 = vsel %vm378, %v2118, 0
    %v2181 = vsel %vm378, %v2119, 0
    %v2184 = vsel %vm378, %v2120, 0
    %2186 = vmatpush.msra.mxu0 0.0
    %2187 = vmatpush.msra.mxu0 0.0
    %2188 = vmatpush.msra.mxu0 0.0
    %2189 = vmatpush.msra.mxu0 0.0
    %2190 = vmatpush.msra.mxu0 0.0
    %2191 = vmatpush.msra.mxu0 0.0
    %2192 = vmatpush.msra.mxu0 0.0
    %2193 = vmatpush.msra.mxu0 0.0
    %2194 = vmatpush.msra.mxu0 %v2135
    %2195 = vmatpush.msra.mxu0 %v2133
    %2196 = vmatpush.msra.mxu0 %v2131
    %2197 = vmatpush.msra.mxu0 %v2129
    %2198 = vmatpush.msra.mxu0 %v2127
    %2199 = vmatpush.msra.mxu0 %v2125
    %2200 = vmatpush.msra.mxu0 %v2123
    %2201 = vmatpush.msra.mxu0 %v2121
    %2202 = vmatmul.f32.gmra.mxu0 %v2175
    %v2203 = vpop.f32.mrf.mxu0
    %v2204 = vadd.f32 %v2170, %v2203
    %2205 = vmatmul.f32.gmra.mxu0 %v2178
    %v2206 = vpop.f32.mrf.mxu0
    %v2207 = vadd.f32 %v2170, %v2206
    %2208 = vmatmul.f32.gmra.mxu0 %v2181
    %v2209 = vpop.f32.mrf.mxu0
    %v2210 = vadd.f32 %v2170, %v2209
    %2211 = vmatmul.f32.gmra.mxu0 %v2184
    %v2212 = vpop.f32.mrf.mxu0
    %v2213 = vadd.f32 %v2170, %v2212
    %2214 = vdwg.mxu0
    %2215 = vmatpush.msra.mxu0 0.0
    %2216 = vmatpush.msra.mxu0 0.0
    %2217 = vmatpush.msra.mxu0 0.0
    %2218 = vmatpush.msra.mxu0 0.0
    %2219 = vmatpush.msra.mxu0 0.0
    %2220 = vmatpush.msra.mxu0 0.0
    %2221 = vmatpush.msra.mxu0 0.0
    %2222 = vmatpush.msra.mxu0 0.0
    %2223 = vmatpush.msra.mxu0 %v2136
    %2224 = vmatpush.msra.mxu0 %v2134
    %2225 = vmatpush.msra.mxu0 %v2132
    %2226 = vmatpush.msra.mxu0 %v2130
    %2227 = vmatpush.msra.mxu0 %v2128
    %2228 = vmatpush.msra.mxu0 %v2126
    %2229 = vmatpush.msra.mxu0 %v2124
    %2230 = vmatpush.msra.mxu0 %v2122
    %2231 = vmatmul.f32.gmra.mxu0 %v2175
    %v2232 = vpop.f32.mrf.mxu0
    %v2233 = vadd.f32 %v2171, %v2232
    %2234 = vmatmul.f32.gmra.mxu0 %v2178
    %v2235 = vpop.f32.mrf.mxu0
    %v2236 = vadd.f32 %v2171, %v2235
    %2237 = vmatmul.f32.gmra.mxu0 %v2181
    %v2238 = vpop.f32.mrf.mxu0
    %v2239 = vadd.f32 %v2171, %v2238
    %2240 = vmatmul.f32.gmra.mxu0 %v2184
    %v2241 = vpop.f32.mrf.mxu0
    %v2242 = vadd.f32 %v2171, %v2241
    %2243 = vdwg.mxu0
    %v2244 = vmul.f32 %v2204, 0.25
    %2246 = vrot.lane.b32.xlu0 %v2204, 64
    %v2247 = vpop.permute.xlu0 %2246
    %v2249 = vsel %vm453, %v2244, 0
    %v2251 = vsel %vm453, %v2247, 0
    %2253 = vmatpush.xpose.msra.mxu0 0.0
    %2254 = vmatpush.xpose.msra.mxu0 0.0
    %2255 = vmatpush.xpose.msra.mxu0 0.0
    %2256 = vmatpush.xpose.msra.mxu0 0.0
    %2257 = vmatpush.xpose.msra.mxu0 0.0
    %2258 = vmatpush.xpose.msra.mxu0 0.0
    %2259 = vmatpush.xpose.msra.mxu0 0.0
    %2260 = vmatpush.xpose.msra.mxu0 0.0
    %2261 = vmatpush.xpose.msra.mxu0 0.0
    %2262 = vmatpush.xpose.msra.mxu0 0.0
    %2263 = vmatpush.xpose.msra.mxu0 0.0
    %2264 = vmatpush.xpose.msra.mxu0 0.0
    %2265 = vmatpush.xpose.msra.mxu0 0.0
    %2266 = vmatpush.xpose.msra.mxu0 0.0
    %2267 = vmatpush.xpose.msra.mxu0 0.0
    %2268 = vmatpush.xpose.msra.mxu0 %v2251
    %2269 = vmatmul.f32.gmra.mxu0 %v2249
    %v2270 = vpop.f32.mrf.mxu0
    %v2271 = vadd.f32 0.0, %v2270
    %2272 = vdwg.mxu0
    %v2273 = vsel %vm479, %v2271, -inf
    %2274 = vmax.xlane.f32.xlu0 %v2273
    %v2275 = vpop.xlane.xlu0 %2274
    %v2276 = vsub.f32 %v2271, %v2275
    %v2277 = vmul.f32 %v2276, 1.442695
    %v2278 = vpow.pop %v2277
    %v2279 = vsel %vm479, %v2278, 0.0
    %2280 = vadd.xlane.f32.xlu0 %v2279
    %v2281 = vpop.xlane.xlu0 %2280
    %v2282 = vrcp.pop %v2281
    %v2283 = vmul.f32 %v2281, %v2282
    %v2284 = vsub.f32 1.0, %v2283
    %v2285 = vmul.f32 %v2282, %v2284
    %v2286 = vadd.f32 %v2282, %v2285
    %vm2287 = vweird.f32 %v2281
    %vm2288 = vweird.f32 %v2282
    %vm2289 = vmor %vm2287, %vm2288
    %v2290 = vsel %vm2289, %v2282, %v2286
    %v2291 = vand.u32 2147483647, %v2281
    %vm2292 = vcmp.eq.f32.partialorder %v2291, 8.507059e+37
    %v2293 = vand.u32 %v2281, 2147483648
    %v2294 = vor.u32 1.1754944e-38, %v2293
    %v2295 = vsel %vm2292, %v2294, %v2290
    %v2296 = vmul.f32 %v2278, %v2295
    %v2298 = vsel %vm479, %v2296, 0
    %2300 = vmatpush.msra.mxu0 0.0
    %2301 = vmatpush.msra.mxu0 0.0
    %2302 = vmatpush.msra.mxu0 0.0
    %2303 = vmatpush.msra.mxu0 0.0
    %2304 = vmatpush.msra.mxu0 0.0
    %2305 = vmatpush.msra.mxu0 0.0
    %2306 = vmatpush.msra.mxu0 0.0
    %2307 = vmatpush.msra.mxu0 0.0
    %2308 = vmatpush.msra.mxu0 0.0
    %2309 = vmatpush.msra.mxu0 0.0
    %2310 = vmatpush.msra.mxu0 0.0
    %2311 = vmatpush.msra.mxu0 0.0
    %2312 = vmatpush.msra.mxu0 0.0
    %2313 = vmatpush.msra.mxu0 0.0
    %2314 = vmatpush.msra.mxu0 0.0
    %2315 = vmatpush.msra.mxu0 %v2233
    %2316 = vmatmul.f32.gmra.mxu0 %v2298
    %v2317 = vpop.f32.mrf.mxu0
    %v2318 = vadd.f32 0.0, %v2317
    %2319 = vdwg.mxu0
    %2320 = vst.msk [vmem:[#allocation2] sm:$0xff] %vm453, %v2318
    %2321 = vrot.lane.b32.xlu0 %v2244, 112
    %v2322 = vpop.permute.xlu0 %2321
    %2323 = vrot.lane.b32.xlu0 %v2204, 48
    %v2324 = vpop.permute.xlu0 %2323
    %v2325 = vsel %vm453, %v2322, 0
    %v2327 = vsel %vm453, %v2324, 0
    %2329 = vmatpush.xpose.msra.mxu0 0.0
    %2330 = vmatpush.xpose.msra.mxu0 0.0
    %2331 = vmatpush.xpose.msra.mxu0 0.0
    %2332 = vmatpush.xpose.msra.mxu0 0.0
    %2333 = vmatpush.xpose.msra.mxu0 0.0
    %2334 = vmatpush.xpose.msra.mxu0 0.0
    %2335 = vmatpush.xpose.msra.mxu0 0.0
    %2336 = vmatpush.xpose.msra.mxu0 0.0
    %2337 = vmatpush.xpose.msra.mxu0 0.0
    %2338 = vmatpush.xpose.msra.mxu0 0.0
    %2339 = vmatpush.xpose.msra.mxu0 0.0
    %2340 = vmatpush.xpose.msra.mxu0 0.0
    %2341 = vmatpush.xpose.msra.mxu0 0.0
    %2342 = vmatpush.xpose.msra.mxu0 0.0
    %2343 = vmatpush.xpose.msra.mxu0 0.0
    %2344 = vmatpush.xpose.msra.mxu0 %v2327
    %2345 = vmatmul.f32.gmra.mxu0 %v2325
    %v2346 = vpop.f32.mrf.mxu0
    %v2347 = vadd.f32 0.0, %v2346
    %2348 = vdwg.mxu0
    %v2349 = vsel %vm479, %v2347, -inf
    %2350 = vmax.xlane.f32.xlu0 %v2349
    %v2351 = vpop.xlane.xlu0 %2350
    %v2352 = vsub.f32 %v2347, %v2351
    %v2353 = vmul.f32 %v2352, 1.442695
    %v2354 = vpow.pop %v2353
    %v2355 = vsel %vm479, %v2354, 0.0
    %2356 = vadd.xlane.f32.xlu0 %v2355
    %v2357 = vpop.xlane.xlu0 %2356
    %v2358 = vrcp.pop %v2357
    %v2359 = vmul.f32 %v2357, %v2358
    %v2360 = vsub.f32 1.0, %v2359
    %v2361 = vmul.f32 %v2358, %v2360
    %v2362 = vadd.f32 %v2358, %v2361
    %vm2363 = vweird.f32 %v2357
    %vm2364 = vweird.f32 %v2358
    %vm2365 = vmor %vm2363, %vm2364
    %v2366 = vsel %vm2365, %v2358, %v2362
    %v2367 = vand.u32 2147483647, %v2357
    %vm2368 = vcmp.eq.f32.partialorder %v2367, 8.507059e+37
    %v2369 = vand.u32 %v2357, 2147483648
    %v2370 = vor.u32 1.1754944e-38, %v2369
    %v2371 = vsel %vm2368, %v2370, %v2366
    %v2372 = vmul.f32 %v2354, %v2371
    %2374 = vrot.lane.b32.xlu0 %v2233, 112
    %v2375 = vpop.permute.xlu0 %2374
    %v2378 = vsel %vm479, %v2372, 0
    %2380 = vmatpush.msra.mxu0 0.0
    %2381 = vmatpush.msra.mxu0 0.0
    %2382 = vmatpush.msra.mxu0 0.0
    %2383 = vmatpush.msra.mxu0 0.0
    %2384 = vmatpush.msra.mxu0 0.0
    %2385 = vmatpush.msra.mxu0 0.0
    %2386 = vmatpush.msra.mxu0 0.0
    %2387 = vmatpush.msra.mxu0 0.0
    %2388 = vmatpush.msra.mxu0 0.0
    %2389 = vmatpush.msra.mxu0 0.0
    %2390 = vmatpush.msra.mxu0 0.0
    %2391 = vmatpush.msra.mxu0 0.0
    %2392 = vmatpush.msra.mxu0 0.0
    %2393 = vmatpush.msra.mxu0 0.0
    %2394 = vmatpush.msra.mxu0 0.0
    %2395 = vmatpush.msra.mxu0 %v2375
    %2396 = vmatmul.f32.gmra.mxu0 %v2378
    %v2397 = vpop.f32.mrf.mxu0
    %v2398 = vadd.f32 0.0, %v2397
    %2399 = vdwg.mxu0
    %2401 = vrot.lane.b32.xlu0 %v2398, 16
    %v2402 = vpop.permute.xlu0 %2401
    %2404 = vst.msk [vmem:[#allocation2] sm:$0xff] %vm611, %v2402
    %2405 = vrot.lane.b32.xlu0 %v2244, 96
    %v2406 = vpop.permute.xlu0 %2405
    %2407 = vrot.lane.b32.xlu0 %v2204, 32
    %v2408 = vpop.permute.xlu0 %2407
    %v2409 = vsel %vm453, %v2406, 0
    %v2411 = vsel %vm453, %v2408, 0
    %2413 = vmatpush.xpose.msra.mxu0 0.0
    %2414 = vmatpush.xpose.msra.mxu0 0.0
    %2415 = vmatpush.xpose.msra.mxu0 0.0
    %2416 = vmatpush.xpose.msra.mxu0 0.0
    %2417 = vmatpush.xpose.msra.mxu0 0.0
    %2418 = vmatpush.xpose.msra.mxu0 0.0
    %2419 = vmatpush.xpose.msra.mxu0 0.0
    %2420 = vmatpush.xpose.msra.mxu0 0.0
    %2421 = vmatpush.xpose.msra.mxu0 0.0
    %2422 = vmatpush.xpose.msra.mxu0 0.0
    %2423 = vmatpush.xpose.msra.mxu0 0.0
    %2424 = vmatpush.xpose.msra.mxu0 0.0
    %2425 = vmatpush.xpose.msra.mxu0 0.0
    %2426 = vmatpush.xpose.msra.mxu0 0.0
    %2427 = vmatpush.xpose.msra.mxu0 0.0
    %2428 = vmatpush.xpose.msra.mxu0 %v2411
    %2429 = vmatmul.f32.gmra.mxu0 %v2409
    %v2430 = vpop.f32.mrf.mxu0
    %v2431 = vadd.f32 0.0, %v2430
    %2432 = vdwg.mxu0
    %v2433 = vsel %vm479, %v2431, -inf
    %2434 = vmax.xlane.f32.xlu0 %v2433
    %v2435 = vpop.xlane.xlu0 %2434
    %v2436 = vsub.f32 %v2431, %v2435
    %v2437 = vmul.f32 %v2436, 1.442695
    %v2438 = vpow.pop %v2437
    %v2439 = vsel %vm479, %v2438, 0.0
    %2440 = vadd.xlane.f32.xlu0 %v2439
    %v2441 = vpop.xlane.xlu0 %2440
    %v2442 = vrcp.pop %v2441
    %v2443 = vmul.f32 %v2441, %v2442
    %v2444 = vsub.f32 1.0, %v2443
    %v2445 = vmul.f32 %v2442, %v2444
    %v2446 = vadd.f32 %v2442, %v2445
    %vm2447 = vweird.f32 %v2441
    %vm2448 = vweird.f32 %v2442
    %vm2449 = vmor %vm2447, %vm2448
    %v2450 = vsel %vm2449, %v2442, %v2446
    %v2451 = vand.u32 2147483647, %v2441
    %vm2452 = vcmp.eq.f32.partialorder %v2451, 8.507059e+37
    %v2453 = vand.u32 %v2441, 2147483648
    %v2454 = vor.u32 1.1754944e-38, %v2453
    %v2455 = vsel %vm2452, %v2454, %v2450
    %v2456 = vmul.f32 %v2438, %v2455
    %2457 = vrot.lane.b32.xlu0 %v2233, 96
    %v2458 = vpop.permute.xlu0 %2457
    %v2461 = vsel %vm479, %v2456, 0
    %2463 = vmatpush.msra.mxu0 0.0
    %2464 = vmatpush.msra.mxu0 0.0
    %2465 = vmatpush.msra.mxu0 0.0
    %2466 = vmatpush.msra.mxu0 0.0
    %2467 = vmatpush.msra.mxu0 0.0
    %2468 = vmatpush.msra.mxu0 0.0
    %2469 = vmatpush.msra.mxu0 0.0
    %2470 = vmatpush.msra.mxu0 0.0
    %2471 = vmatpush.msra.mxu0 0.0
    %2472 = vmatpush.msra.mxu0 0.0
    %2473 = vmatpush.msra.mxu0 0.0
    %2474 = vmatpush.msra.mxu0 0.0
    %2475 = vmatpush.msra.mxu0 0.0
    %2476 = vmatpush.msra.mxu0 0.0
    %2477 = vmatpush.msra.mxu0 0.0
    %2478 = vmatpush.msra.mxu0 %v2458
    %2479 = vmatmul.f32.gmra.mxu0 %v2461
    %v2480 = vpop.f32.mrf.mxu0
    %v2481 = vadd.f32 0.0, %v2480
    %2482 = vdwg.mxu0
    %2484 = vrot.lane.b32.xlu0 %v2481, 32
    %v2485 = vpop.permute.xlu0 %2484
    %2487 = vst.msk [vmem:[#allocation2] sm:$0xff] %vm695, %v2485
    %2488 = vrot.lane.b32.xlu0 %v2244, 80
    %v2489 = vpop.permute.xlu0 %2488
    %2490 = vrot.lane.b32.xlu0 %v2204, 16
    %v2491 = vpop.permute.xlu0 %2490
    %v2492 = vsel %vm453, %v2489, 0
    %v2494 = vsel %vm453, %v2491, 0
    %2496 = vmatpush.xpose.msra.mxu0 0.0
    %2497 = vmatpush.xpose.msra.mxu0 0.0
    %2498 = vmatpush.xpose.msra.mxu0 0.0
    %2499 = vmatpush.xpose.msra.mxu0 0.0
    %2500 = vmatpush.xpose.msra.mxu0 0.0
    %2501 = vmatpush.xpose.msra.mxu0 0.0
    %2502 = vmatpush.xpose.msra.mxu0 0.0
    %2503 = vmatpush.xpose.msra.mxu0 0.0
    %2504 = vmatpush.xpose.msra.mxu0 0.0
    %2505 = vmatpush.xpose.msra.mxu0 0.0
    %2506 = vmatpush.xpose.msra.mxu0 0.0
    %2507 = vmatpush.xpose.msra.mxu0 0.0
    %2508 = vmatpush.xpose.msra.mxu0 0.0
    %2509 = vmatpush.xpose.msra.mxu0 0.0
    %2510 = vmatpush.xpose.msra.mxu0 0.0
    %2511 = vmatpush.xpose.msra.mxu0 %v2494
    %2512 = vmatmul.f32.gmra.mxu0 %v2492
    %v2513 = vpop.f32.mrf.mxu0
    %v2514 = vadd.f32 0.0, %v2513
    %2515 = vdwg.mxu0
    %v2516 = vsel %vm479, %v2514, -inf
    %2517 = vmax.xlane.f32.xlu0 %v2516
    %v2518 = vpop.xlane.xlu0 %2517
    %v2519 = vsub.f32 %v2514, %v2518
    %v2520 = vmul.f32 %v2519, 1.442695
    %v2521 = vpow.pop %v2520
    %v2522 = vsel %vm479, %v2521, 0.0
    %2523 = vadd.xlane.f32.xlu0 %v2522
    %v2524 = vpop.xlane.xlu0 %2523
    %v2525 = vrcp.pop %v2524
    %v2526 = vmul.f32 %v2524, %v2525
    %v2527 = vsub.f32 1.0, %v2526
    %v2528 = vmul.f32 %v2525, %v2527
    %v2529 = vadd.f32 %v2525, %v2528
    %vm2530 = vweird.f32 %v2524
    %vm2531 = vweird.f32 %v2525
    %vm2532 = vmor %vm2530, %vm2531
    %v2533 = vsel %vm2532, %v2525, %v2529
    %v2534 = vand.u32 2147483647, %v2524
    %vm2535 = vcmp.eq.f32.partialorder %v2534, 8.507059e+37
    %v2536 = vand.u32 %v2524, 2147483648
    %v2537 = vor.u32 1.1754944e-38, %v2536
    %v2538 = vsel %vm2535, %v2537, %v2533
    %v2539 = vmul.f32 %v2521, %v2538
    %2540 = vrot.lane.b32.xlu0 %v2233, 80
    %v2541 = vpop.permute.xlu0 %2540
    %v2544 = vsel %vm479, %v2539, 0
    %2546 = vmatpush.msra.mxu0 0.0
    %2547 = vmatpush.msra.mxu0 0.0
    %2548 = vmatpush.msra.mxu0 0.0
    %2549 = vmatpush.msra.mxu0 0.0
    %2550 = vmatpush.msra.mxu0 0.0
    %2551 = vmatpush.msra.mxu0 0.0
    %2552 = vmatpush.msra.mxu0 0.0
    %2553 = vmatpush.msra.mxu0 0.0
    %2554 = vmatpush.msra.mxu0 0.0
    %2555 = vmatpush.msra.mxu0 0.0
    %2556 = vmatpush.msra.mxu0 0.0
    %2557 = vmatpush.msra.mxu0 0.0
    %2558 = vmatpush.msra.mxu0 0.0
    %2559 = vmatpush.msra.mxu0 0.0
    %2560 = vmatpush.msra.mxu0 0.0
    %2561 = vmatpush.msra.mxu0 %v2541
    %2562 = vmatmul.f32.gmra.mxu0 %v2544
    %v2563 = vpop.f32.mrf.mxu0
    %v2564 = vadd.f32 0.0, %v2563
    %2565 = vdwg.mxu0
    %2567 = vrot.lane.b32.xlu0 %v2564, 48
    %v2568 = vpop.permute.xlu0 %2567
    %2570 = vst.msk [vmem:[#allocation2] sm:$0xff] %vm779, %v2568
    %v2571 = vmul.f32 %v2207, 0.25
    %2573 = vrot.lane.b32.xlu0 %v2207, 64
    %v2574 = vpop.permute.xlu0 %2573
    %v2576 = vsel %vm453, %v2571, 0
    %v2578 = vsel %vm453, %v2574, 0
    %2580 = vmatpush.xpose.msra.mxu0 0.0
    %2581 = vmatpush.xpose.msra.mxu0 0.0
    %2582 = vmatpush.xpose.msra.mxu0 0.0
    %2583 = vmatpush.xpose.msra.mxu0 0.0
    %2584 = vmatpush.xpose.msra.mxu0 0.0
    %2585 = vmatpush.xpose.msra.mxu0 0.0
    %2586 = vmatpush.xpose.msra.mxu0 0.0
    %2587 = vmatpush.xpose.msra.mxu0 0.0
    %2588 = vmatpush.xpose.msra.mxu0 0.0
    %2589 = vmatpush.xpose.msra.mxu0 0.0
    %2590 = vmatpush.xpose.msra.mxu0 0.0
    %2591 = vmatpush.xpose.msra.mxu0 0.0
    %2592 = vmatpush.xpose.msra.mxu0 0.0
    %2593 = vmatpush.xpose.msra.mxu0 0.0
    %2594 = vmatpush.xpose.msra.mxu0 0.0
    %2595 = vmatpush.xpose.msra.mxu0 %v2578
    %2596 = vmatmul.f32.gmra.mxu0 %v2576
    %v2597 = vpop.f32.mrf.mxu0
    %v2598 = vadd.f32 0.0, %v2597
    %2599 = vdwg.mxu0
    %v2600 = vsel %vm479, %v2598, -inf
    %2601 = vmax.xlane.f32.xlu0 %v2600
    %v2602 = vpop.xlane.xlu0 %2601
    %v2603 = vsub.f32 %v2598, %v2602
    %v2604 = vmul.f32 %v2603, 1.442695
    %v2605 = vpow.pop %v2604
    %v2606 = vsel %vm479, %v2605, 0.0
    %2607 = vadd.xlane.f32.xlu0 %v2606
    %v2608 = vpop.xlane.xlu0 %2607
    %v2609 = vrcp.pop %v2608
    %v2610 = vmul.f32 %v2608, %v2609
    %v2611 = vsub.f32 1.0, %v2610
    %v2612 = vmul.f32 %v2609, %v2611
    %v2613 = vadd.f32 %v2609, %v2612
    %vm2614 = vweird.f32 %v2608
    %vm2615 = vweird.f32 %v2609
    %vm2616 = vmor %vm2614, %vm2615
    %v2617 = vsel %vm2616, %v2609, %v2613
    %v2618 = vand.u32 2147483647, %v2608
    %vm2619 = vcmp.eq.f32.partialorder %v2618, 8.507059e+37
    %v2620 = vand.u32 %v2608, 2147483648
    %v2621 = vor.u32 1.1754944e-38, %v2620
    %v2622 = vsel %vm2619, %v2621, %v2617
    %v2623 = vmul.f32 %v2605, %v2622
    %v2625 = vsel %vm479, %v2623, 0
    %2627 = vmatpush.msra.mxu0 0.0
    %2628 = vmatpush.msra.mxu0 0.0
    %2629 = vmatpush.msra.mxu0 0.0
    %2630 = vmatpush.msra.mxu0 0.0
    %2631 = vmatpush.msra.mxu0 0.0
    %2632 = vmatpush.msra.mxu0 0.0
    %2633 = vmatpush.msra.mxu0 0.0
    %2634 = vmatpush.msra.mxu0 0.0
    %2635 = vmatpush.msra.mxu0 0.0
    %2636 = vmatpush.msra.mxu0 0.0
    %2637 = vmatpush.msra.mxu0 0.0
    %2638 = vmatpush.msra.mxu0 0.0
    %2639 = vmatpush.msra.mxu0 0.0
    %2640 = vmatpush.msra.mxu0 0.0
    %2641 = vmatpush.msra.mxu0 0.0
    %2642 = vmatpush.msra.mxu0 %v2236
    %2643 = vmatmul.f32.gmra.mxu0 %v2625
    %v2644 = vpop.f32.mrf.mxu0
    %v2645 = vadd.f32 0.0, %v2644
    %2646 = vdwg.mxu0
    %2647 = vst.msk [vmem:[#allocation2 + $0x8] sm:$0xff] %vm453, %v2645
    %2648 = vrot.lane.b32.xlu0 %v2571, 112
    %v2649 = vpop.permute.xlu0 %2648
    %2650 = vrot.lane.b32.xlu0 %v2207, 48
    %v2651 = vpop.permute.xlu0 %2650
    %v2652 = vsel %vm453, %v2649, 0
    %v2654 = vsel %vm453, %v2651, 0
    %2656 = vmatpush.xpose.msra.mxu0 0.0
    %2657 = vmatpush.xpose.msra.mxu0 0.0
    %2658 = vmatpush.xpose.msra.mxu0 0.0
    %2659 = vmatpush.xpose.msra.mxu0 0.0
    %2660 = vmatpush.xpose.msra.mxu0 0.0
    %2661 = vmatpush.xpose.msra.mxu0 0.0
    %2662 = vmatpush.xpose.msra.mxu0 0.0
    %2663 = vmatpush.xpose.msra.mxu0 0.0
    %2664 = vmatpush.xpose.msra.mxu0 0.0
    %2665 = vmatpush.xpose.msra.mxu0 0.0
    %2666 = vmatpush.xpose.msra.mxu0 0.0
    %2667 = vmatpush.xpose.msra.mxu0 0.0
    %2668 = vmatpush.xpose.msra.mxu0 0.0
    %2669 = vmatpush.xpose.msra.mxu0 0.0
    %2670 = vmatpush.xpose.msra.mxu0 0.0
    %2671 = vmatpush.xpose.msra.mxu0 %v2654
    %2672 = vmatmul.f32.gmra.mxu0 %v2652
    %v2673 = vpop.f32.mrf.mxu0
    %v2674 = vadd.f32 0.0, %v2673
    %2675 = vdwg.mxu0
    %v2676 = vsel %vm479, %v2674, -inf
    %2677 = vmax.xlane.f32.xlu0 %v2676
    %v2678 = vpop.xlane.xlu0 %2677
    %v2679 = vsub.f32 %v2674, %v2678
    %v2680 = vmul.f32 %v2679, 1.442695
    %v2681 = vpow.pop %v2680
    %v2682 = vsel %vm479, %v2681, 0.0
    %2683 = vadd.xlane.f32.xlu0 %v2682
    %v2684 = vpop.xlane.xlu0 %2683
    %v2685 = vrcp.pop %v2684
    %v2686 = vmul.f32 %v2684, %v2685
    %v2687 = vsub.f32 1.0, %v2686
    %v2688 = vmul.f32 %v2685, %v2687
    %v2689 = vadd.f32 %v2685, %v2688
    %vm2690 = vweird.f32 %v2684
    %vm2691 = vweird.f32 %v2685
    %vm2692 = vmor %vm2690, %vm2691
    %v2693 = vsel %vm2692, %v2685, %v2689
    %v2694 = vand.u32 2147483647, %v2684
    %vm2695 = vcmp.eq.f32.partialorder %v2694, 8.507059e+37
    %v2696 = vand.u32 %v2684, 2147483648
    %v2697 = vor.u32 1.1754944e-38, %v2696
    %v2698 = vsel %vm2695, %v2697, %v2693
    %v2699 = vmul.f32 %v2681, %v2698
    %2701 = vrot.lane.b32.xlu0 %v2236, 112
    %v2702 = vpop.permute.xlu0 %2701
    %v2705 = vsel %vm479, %v2699, 0
    %2707 = vmatpush.msra.mxu0 0.0
    %2708 = vmatpush.msra.mxu0 0.0
    %2709 = vmatpush.msra.mxu0 0.0
    %2710 = vmatpush.msra.mxu0 0.0
    %2711 = vmatpush.msra.mxu0 0.0
    %2712 = vmatpush.msra.mxu0 0.0
    %2713 = vmatpush.msra.mxu0 0.0
    %2714 = vmatpush.msra.mxu0 0.0
    %2715 = vmatpush.msra.mxu0 0.0
    %2716 = vmatpush.msra.mxu0 0.0
    %2717 = vmatpush.msra.mxu0 0.0
    %2718 = vmatpush.msra.mxu0 0.0
    %2719 = vmatpush.msra.mxu0 0.0
    %2720 = vmatpush.msra.mxu0 0.0
    %2721 = vmatpush.msra.mxu0 0.0
    %2722 = vmatpush.msra.mxu0 %v2702
    %2723 = vmatmul.f32.gmra.mxu0 %v2705
    %v2724 = vpop.f32.mrf.mxu0
    %v2725 = vadd.f32 0.0, %v2724
    %2726 = vdwg.mxu0
    %2728 = vrot.lane.b32.xlu0 %v2725, 16
    %v2729 = vpop.permute.xlu0 %2728
    %2731 = vst.msk [vmem:[#allocation2 + $0x8] sm:$0xff] %vm611, %v2729
    %2732 = vrot.lane.b32.xlu0 %v2571, 96
    %v2733 = vpop.permute.xlu0 %2732
    %2734 = vrot.lane.b32.xlu0 %v2207, 32
    %v2735 = vpop.permute.xlu0 %2734
    %v2736 = vsel %vm453, %v2733, 0
    %v2738 = vsel %vm453, %v2735, 0
    %2740 = vmatpush.xpose.msra.mxu0 0.0
    %2741 = vmatpush.xpose.msra.mxu0 0.0
    %2742 = vmatpush.xpose.msra.mxu0 0.0
    %2743 = vmatpush.xpose.msra.mxu0 0.0
    %2744 = vmatpush.xpose.msra.mxu0 0.0
    %2745 = vmatpush.xpose.msra.mxu0 0.0
    %2746 = vmatpush.xpose.msra.mxu0 0.0
    %2747 = vmatpush.xpose.msra.mxu0 0.0
    %2748 = vmatpush.xpose.msra.mxu0 0.0
    %2749 = vmatpush.xpose.msra.mxu0 0.0
    %2750 = vmatpush.xpose.msra.mxu0 0.0
    %2751 = vmatpush.xpose.msra.mxu0 0.0
    %2752 = vmatpush.xpose.msra.mxu0 0.0
    %2753 = vmatpush.xpose.msra.mxu0 0.0
    %2754 = vmatpush.xpose.msra.mxu0 0.0
    %2755 = vmatpush.xpose.msra.mxu0 %v2738
    %2756 = vmatmul.f32.gmra.mxu0 %v2736
    %v2757 = vpop.f32.mrf.mxu0
    %v2758 = vadd.f32 0.0, %v2757
    %2759 = vdwg.mxu0
    %v2760 = vsel %vm479, %v2758, -inf
    %2761 = vmax.xlane.f32.xlu0 %v2760
    %v2762 = vpop.xlane.xlu0 %2761
    %v2763 = vsub.f32 %v2758, %v2762
    %v2764 = vmul.f32 %v2763, 1.442695
    %v2765 = vpow.pop %v2764
    %v2766 = vsel %vm479, %v2765, 0.0
    %2767 = vadd.xlane.f32.xlu0 %v2766
    %v2768 = vpop.xlane.xlu0 %2767
    %v2769 = vrcp.pop %v2768
    %v2770 = vmul.f32 %v2768, %v2769
    %v2771 = vsub.f32 1.0, %v2770
    %v2772 = vmul.f32 %v2769, %v2771
    %v2773 = vadd.f32 %v2769, %v2772
    %vm2774 = vweird.f32 %v2768
    %vm2775 = vweird.f32 %v2769
    %vm2776 = vmor %vm2774, %vm2775
    %v2777 = vsel %vm2776, %v2769, %v2773
    %v2778 = vand.u32 2147483647, %v2768
    %vm2779 = vcmp.eq.f32.partialorder %v2778, 8.507059e+37
    %v2780 = vand.u32 %v2768, 2147483648
    %v2781 = vor.u32 1.1754944e-38, %v2780
    %v2782 = vsel %vm2779, %v2781, %v2777
    %v2783 = vmul.f32 %v2765, %v2782
    %2784 = vrot.lane.b32.xlu0 %v2236, 96
    %v2785 = vpop.permute.xlu0 %2784
    %v2788 = vsel %vm479, %v2783, 0
    %2790 = vmatpush.msra.mxu0 0.0
    %2791 = vmatpush.msra.mxu0 0.0
    %2792 = vmatpush.msra.mxu0 0.0
    %2793 = vmatpush.msra.mxu0 0.0
    %2794 = vmatpush.msra.mxu0 0.0
    %2795 = vmatpush.msra.mxu0 0.0
    %2796 = vmatpush.msra.mxu0 0.0
    %2797 = vmatpush.msra.mxu0 0.0
    %2798 = vmatpush.msra.mxu0 0.0
    %2799 = vmatpush.msra.mxu0 0.0
    %2800 = vmatpush.msra.mxu0 0.0
    %2801 = vmatpush.msra.mxu0 0.0
    %2802 = vmatpush.msra.mxu0 0.0
    %2803 = vmatpush.msra.mxu0 0.0
    %2804 = vmatpush.msra.mxu0 0.0
    %2805 = vmatpush.msra.mxu0 %v2785
    %2806 = vmatmul.f32.gmra.mxu0 %v2788
    %v2807 = vpop.f32.mrf.mxu0
    %v2808 = vadd.f32 0.0, %v2807
    %2809 = vdwg.mxu0
    %2811 = vrot.lane.b32.xlu0 %v2808, 32
    %v2812 = vpop.permute.xlu0 %2811
    %2814 = vst.msk [vmem:[#allocation2 + $0x8] sm:$0xff] %vm695, %v2812
    %2815 = vrot.lane.b32.xlu0 %v2571, 80
    %v2816 = vpop.permute.xlu0 %2815
    %2817 = vrot.lane.b32.xlu0 %v2207, 16
    %v2818 = vpop.permute.xlu0 %2817
    %v2819 = vsel %vm453, %v2816, 0
    %v2821 = vsel %vm453, %v2818, 0
    %2823 = vmatpush.xpose.msra.mxu0 0.0
    %2824 = vmatpush.xpose.msra.mxu0 0.0
    %2825 = vmatpush.xpose.msra.mxu0 0.0
    %2826 = vmatpush.xpose.msra.mxu0 0.0
    %2827 = vmatpush.xpose.msra.mxu0 0.0
    %2828 = vmatpush.xpose.msra.mxu0 0.0
    %2829 = vmatpush.xpose.msra.mxu0 0.0
    %2830 = vmatpush.xpose.msra.mxu0 0.0
    %2831 = vmatpush.xpose.msra.mxu0 0.0
    %2832 = vmatpush.xpose.msra.mxu0 0.0
    %2833 = vmatpush.xpose.msra.mxu0 0.0
    %2834 = vmatpush.xpose.msra.mxu0 0.0
    %2835 = vmatpush.xpose.msra.mxu0 0.0
    %2836 = vmatpush.xpose.msra.mxu0 0.0
    %2837 = vmatpush.xpose.msra.mxu0 0.0
    %2838 = vmatpush.xpose.msra.mxu0 %v2821
    %2839 = vmatmul.f32.gmra.mxu0 %v2819
    %v2840 = vpop.f32.mrf.mxu0
    %v2841 = vadd.f32 0.0, %v2840
    %2842 = vdwg.mxu0
    %v2843 = vsel %vm479, %v2841, -inf
    %2844 = vmax.xlane.f32.xlu0 %v2843
    %v2845 = vpop.xlane.xlu0 %2844
    %v2846 = vsub.f32 %v2841, %v2845
    %v2847 = vmul.f32 %v2846, 1.442695
    %v2848 = vpow.pop %v2847
    %v2849 = vsel %vm479, %v2848, 0.0
    %2850 = vadd.xlane.f32.xlu0 %v2849
    %v2851 = vpop.xlane.xlu0 %2850
    %v2852 = vrcp.pop %v2851
    %v2853 = vmul.f32 %v2851, %v2852
    %v2854 = vsub.f32 1.0, %v2853
    %v2855 = vmul.f32 %v2852, %v2854
    %v2856 = vadd.f32 %v2852, %v2855
    %vm2857 = vweird.f32 %v2851
    %vm2858 = vweird.f32 %v2852
    %vm2859 = vmor %vm2857, %vm2858
    %v2860 = vsel %vm2859, %v2852, %v2856
    %v2861 = vand.u32 2147483647, %v2851
    %vm2862 = vcmp.eq.f32.partialorder %v2861, 8.507059e+37
    %v2863 = vand.u32 %v2851, 2147483648
    %v2864 = vor.u32 1.1754944e-38, %v2863
    %v2865 = vsel %vm2862, %v2864, %v2860
    %v2866 = vmul.f32 %v2848, %v2865
    %2867 = vrot.lane.b32.xlu0 %v2236, 80
    %v2868 = vpop.permute.xlu0 %2867
    %v2871 = vsel %vm479, %v2866, 0
    %2873 = vmatpush.msra.mxu0 0.0
    %2874 = vmatpush.msra.mxu0 0.0
    %2875 = vmatpush.msra.mxu0 0.0
    %2876 = vmatpush.msra.mxu0 0.0
    %2877 = vmatpush.msra.mxu0 0.0
    %2878 = vmatpush.msra.mxu0 0.0
    %2879 = vmatpush.msra.mxu0 0.0
    %2880 = vmatpush.msra.mxu0 0.0
    %2881 = vmatpush.msra.mxu0 0.0
    %2882 = vmatpush.msra.mxu0 0.0
    %2883 = vmatpush.msra.mxu0 0.0
    %2884 = vmatpush.msra.mxu0 0.0
    %2885 = vmatpush.msra.mxu0 0.0
    %2886 = vmatpush.msra.mxu0 0.0
    %2887 = vmatpush.msra.mxu0 0.0
    %2888 = vmatpush.msra.mxu0 %v2868
    %2889 = vmatmul.f32.gmra.mxu0 %v2871
    %v2890 = vpop.f32.mrf.mxu0
    %v2891 = vadd.f32 0.0, %v2890
    %2892 = vdwg.mxu0
    %2894 = vrot.lane.b32.xlu0 %v2891, 48
    %v2895 = vpop.permute.xlu0 %2894
    %2897 = vst.msk [vmem:[#allocation2 + $0x8] sm:$0xff] %vm779, %v2895
    %v2898 = vmul.f32 %v2210, 0.25
    %2900 = vrot.lane.b32.xlu0 %v2210, 64
    %v2901 = vpop.permute.xlu0 %2900
    %v2903 = vsel %vm453, %v2898, 0
    %v2905 = vsel %vm453, %v2901, 0
    %2907 = vmatpush.xpose.msra.mxu0 0.0
    %2908 = vmatpush.xpose.msra.mxu0 0.0
    %2909 = vmatpush.xpose.msra.mxu0 0.0
    %2910 = vmatpush.xpose.msra.mxu0 0.0
    %2911 = vmatpush.xpose.msra.mxu0 0.0
    %2912 = vmatpush.xpose.msra.mxu0 0.0
    %2913 = vmatpush.xpose.msra.mxu0 0.0
    %2914 = vmatpush.xpose.msra.mxu0 0.0
    %2915 = vmatpush.xpose.msra.mxu0 0.0
    %2916 = vmatpush.xpose.msra.mxu0 0.0
    %2917 = vmatpush.xpose.msra.mxu0 0.0
    %2918 = vmatpush.xpose.msra.mxu0 0.0
    %2919 = vmatpush.xpose.msra.mxu0 0.0
    %2920 = vmatpush.xpose.msra.mxu0 0.0
    %2921 = vmatpush.xpose.msra.mxu0 0.0
    %2922 = vmatpush.xpose.msra.mxu0 %v2905
    %2923 = vmatmul.f32.gmra.mxu0 %v2903
    %v2924 = vpop.f32.mrf.mxu0
    %v2925 = vadd.f32 0.0, %v2924
    %2926 = vdwg.mxu0
    %v2927 = vsel %vm479, %v2925, -inf
    %2928 = vmax.xlane.f32.xlu0 %v2927
    %v2929 = vpop.xlane.xlu0 %2928
    %v2930 = vsub.f32 %v2925, %v2929
    %v2931 = vmul.f32 %v2930, 1.442695
    %v2932 = vpow.pop %v2931
    %v2933 = vsel %vm479, %v2932, 0.0
    %2934 = vadd.xlane.f32.xlu0 %v2933
    %v2935 = vpop.xlane.xlu0 %2934
    %v2936 = vrcp.pop %v2935
    %v2937 = vmul.f32 %v2935, %v2936
    %v2938 = vsub.f32 1.0, %v2937
    %v2939 = vmul.f32 %v2936, %v2938
    %v2940 = vadd.f32 %v2936, %v2939
    %vm2941 = vweird.f32 %v2935
    %vm2942 = vweird.f32 %v2936
    %vm2943 = vmor %vm2941, %vm2942
    %v2944 = vsel %vm2943, %v2936, %v2940
    %v2945 = vand.u32 2147483647, %v2935
    %vm2946 = vcmp.eq.f32.partialorder %v2945, 8.507059e+37
    %v2947 = vand.u32 %v2935, 2147483648
    %v2948 = vor.u32 1.1754944e-38, %v2947
    %v2949 = vsel %vm2946, %v2948, %v2944
    %v2950 = vmul.f32 %v2932, %v2949
    %v2952 = vsel %vm479, %v2950, 0
    %2954 = vmatpush.msra.mxu0 0.0
    %2955 = vmatpush.msra.mxu0 0.0
    %2956 = vmatpush.msra.mxu0 0.0
    %2957 = vmatpush.msra.mxu0 0.0
    %2958 = vmatpush.msra.mxu0 0.0
    %2959 = vmatpush.msra.mxu0 0.0
    %2960 = vmatpush.msra.mxu0 0.0
    %2961 = vmatpush.msra.mxu0 0.0
    %2962 = vmatpush.msra.mxu0 0.0
    %2963 = vmatpush.msra.mxu0 0.0
    %2964 = vmatpush.msra.mxu0 0.0
    %2965 = vmatpush.msra.mxu0 0.0
    %2966 = vmatpush.msra.mxu0 0.0
    %2967 = vmatpush.msra.mxu0 0.0
    %2968 = vmatpush.msra.mxu0 0.0
    %2969 = vmatpush.msra.mxu0 %v2239
    %2970 = vmatmul.f32.gmra.mxu0 %v2952
    %v2971 = vpop.f32.mrf.mxu0
    %v2972 = vadd.f32 0.0, %v2971
    %2973 = vdwg.mxu0
    %2974 = vst.msk [vmem:[#allocation2 + $0x10] sm:$0xff] %vm453, %v2972
    %2975 = vrot.lane.b32.xlu0 %v2898, 112
    %v2976 = vpop.permute.xlu0 %2975
    %2977 = vrot.lane.b32.xlu0 %v2210, 48
    %v2978 = vpop.permute.xlu0 %2977
    %v2979 = vsel %vm453, %v2976, 0
    %v2981 = vsel %vm453, %v2978, 0
    %2983 = vmatpush.xpose.msra.mxu0 0.0
    %2984 = vmatpush.xpose.msra.mxu0 0.0
    %2985 = vmatpush.xpose.msra.mxu0 0.0
    %2986 = vmatpush.xpose.msra.mxu0 0.0
    %2987 = vmatpush.xpose.msra.mxu0 0.0
    %2988 = vmatpush.xpose.msra.mxu0 0.0
    %2989 = vmatpush.xpose.msra.mxu0 0.0
    %2990 = vmatpush.xpose.msra.mxu0 0.0
    %2991 = vmatpush.xpose.msra.mxu0 0.0
    %2992 = vmatpush.xpose.msra.mxu0 0.0
    %2993 = vmatpush.xpose.msra.mxu0 0.0
    %2994 = vmatpush.xpose.msra.mxu0 0.0
    %2995 = vmatpush.xpose.msra.mxu0 0.0
    %2996 = vmatpush.xpose.msra.mxu0 0.0
    %2997 = vmatpush.xpose.msra.mxu0 0.0
    %2998 = vmatpush.xpose.msra.mxu0 %v2981
    %2999 = vmatmul.f32.gmra.mxu0 %v2979
    %v3000 = vpop.f32.mrf.mxu0
    %v3001 = vadd.f32 0.0, %v3000
    %3002 = vdwg.mxu0
    %v3003 = vsel %vm479, %v3001, -inf
    %3004 = vmax.xlane.f32.xlu0 %v3003
    %v3005 = vpop.xlane.xlu0 %3004
    %v3006 = vsub.f32 %v3001, %v3005
    %v3007 = vmul.f32 %v3006, 1.442695
    %v3008 = vpow.pop %v3007
    %v3009 = vsel %vm479, %v3008, 0.0
    %3010 = vadd.xlane.f32.xlu0 %v3009
    %v3011 = vpop.xlane.xlu0 %3010
    %v3012 = vrcp.pop %v3011
    %v3013 = vmul.f32 %v3011, %v3012
    %v3014 = vsub.f32 1.0, %v3013
    %v3015 = vmul.f32 %v3012, %v3014
    %v3016 = vadd.f32 %v3012, %v3015
    %vm3017 = vweird.f32 %v3011
    %vm3018 = vweird.f32 %v3012
    %vm3019 = vmor %vm3017, %vm3018
    %v3020 = vsel %vm3019, %v3012, %v3016
    %v3021 = vand.u32 2147483647, %v3011
    %vm3022 = vcmp.eq.f32.partialorder %v3021, 8.507059e+37
    %v3023 = vand.u32 %v3011, 2147483648
    %v3024 = vor.u32 1.1754944e-38, %v3023
    %v3025 = vsel %vm3022, %v3024, %v3020
    %v3026 = vmul.f32 %v3008, %v3025
    %3028 = vrot.lane.b32.xlu0 %v2239, 112
    %v3029 = vpop.permute.xlu0 %3028
    %v3032 = vsel %vm479, %v3026, 0
    %3034 = vmatpush.msra.mxu0 0.0
    %3035 = vmatpush.msra.mxu0 0.0
    %3036 = vmatpush.msra.mxu0 0.0
    %3037 = vmatpush.msra.mxu0 0.0
    %3038 = vmatpush.msra.mxu0 0.0
    %3039 = vmatpush.msra.mxu0 0.0
    %3040 = vmatpush.msra.mxu0 0.0
    %3041 = vmatpush.msra.mxu0 0.0
    %3042 = vmatpush.msra.mxu0 0.0
    %3043 = vmatpush.msra.mxu0 0.0
    %3044 = vmatpush.msra.mxu0 0.0
    %3045 = vmatpush.msra.mxu0 0.0
    %3046 = vmatpush.msra.mxu0 0.0
    %3047 = vmatpush.msra.mxu0 0.0
    %3048 = vmatpush.msra.mxu0 0.0
    %3049 = vmatpush.msra.mxu0 %v3029
    %3050 = vmatmul.f32.gmra.mxu0 %v3032
    %v3051 = vpop.f32.mrf.mxu0
    %v3052 = vadd.f32 0.0, %v3051
    %3053 = vdwg.mxu0
    %3055 = vrot.lane.b32.xlu0 %v3052, 16
    %v3056 = vpop.permute.xlu0 %3055
    %3058 = vst.msk [vmem:[#allocation2 + $0x10] sm:$0xff] %vm611, %v3056
    %3059 = vrot.lane.b32.xlu0 %v2898, 96
    %v3060 = vpop.permute.xlu0 %3059
    %3061 = vrot.lane.b32.xlu0 %v2210, 32
    %v3062 = vpop.permute.xlu0 %3061
    %v3063 = vsel %vm453, %v3060, 0
    %v3065 = vsel %vm453, %v3062, 0
    %3067 = vmatpush.xpose.msra.mxu0 0.0
    %3068 = vmatpush.xpose.msra.mxu0 0.0
    %3069 = vmatpush.xpose.msra.mxu0 0.0
    %3070 = vmatpush.xpose.msra.mxu0 0.0
    %3071 = vmatpush.xpose.msra.mxu0 0.0
    %3072 = vmatpush.xpose.msra.mxu0 0.0
    %3073 = vmatpush.xpose.msra.mxu0 0.0
    %3074 = vmatpush.xpose.msra.mxu0 0.0
    %3075 = vmatpush.xpose.msra.mxu0 0.0
    %3076 = vmatpush.xpose.msra.mxu0 0.0
    %3077 = vmatpush.xpose.msra.mxu0 0.0
    %3078 = vmatpush.xpose.msra.mxu0 0.0
    %3079 = vmatpush.xpose.msra.mxu0 0.0
    %3080 = vmatpush.xpose.msra.mxu0 0.0
    %3081 = vmatpush.xpose.msra.mxu0 0.0
    %3082 = vmatpush.xpose.msra.mxu0 %v3065
    %3083 = vmatmul.f32.gmra.mxu0 %v3063
    %v3084 = vpop.f32.mrf.mxu0
    %v3085 = vadd.f32 0.0, %v3084
    %3086 = vdwg.mxu0
    %v3087 = vsel %vm479, %v3085, -inf
    %3088 = vmax.xlane.f32.xlu0 %v3087
    %v3089 = vpop.xlane.xlu0 %3088
    %v3090 = vsub.f32 %v3085, %v3089
    %v3091 = vmul.f32 %v3090, 1.442695
    %v3092 = vpow.pop %v3091
    %v3093 = vsel %vm479, %v3092, 0.0
    %3094 = vadd.xlane.f32.xlu0 %v3093
    %v3095 = vpop.xlane.xlu0 %3094
    %v3096 = vrcp.pop %v3095
    %v3097 = vmul.f32 %v3095, %v3096
    %v3098 = vsub.f32 1.0, %v3097
    %v3099 = vmul.f32 %v3096, %v3098
    %v3100 = vadd.f32 %v3096, %v3099
    %vm3101 = vweird.f32 %v3095
    %vm3102 = vweird.f32 %v3096
    %vm3103 = vmor %vm3101, %vm3102
    %v3104 = vsel %vm3103, %v3096, %v3100
    %v3105 = vand.u32 2147483647, %v3095
    %vm3106 = vcmp.eq.f32.partialorder %v3105, 8.507059e+37
    %v3107 = vand.u32 %v3095, 2147483648
    %v3108 = vor.u32 1.1754944e-38, %v3107
    %v3109 = vsel %vm3106, %v3108, %v3104
    %v3110 = vmul.f32 %v3092, %v3109
    %3111 = vrot.lane.b32.xlu0 %v2239, 96
    %v3112 = vpop.permute.xlu0 %3111
    %v3115 = vsel %vm479, %v3110, 0
    %3117 = vmatpush.msra.mxu0 0.0
    %3118 = vmatpush.msra.mxu0 0.0
    %3119 = vmatpush.msra.mxu0 0.0
    %3120 = vmatpush.msra.mxu0 0.0
    %3121 = vmatpush.msra.mxu0 0.0
    %3122 = vmatpush.msra.mxu0 0.0
    %3123 = vmatpush.msra.mxu0 0.0
    %3124 = vmatpush.msra.mxu0 0.0
    %3125 = vmatpush.msra.mxu0 0.0
    %3126 = vmatpush.msra.mxu0 0.0
    %3127 = vmatpush.msra.mxu0 0.0
    %3128 = vmatpush.msra.mxu0 0.0
    %3129 = vmatpush.msra.mxu0 0.0
    %3130 = vmatpush.msra.mxu0 0.0
    %3131 = vmatpush.msra.mxu0 0.0
    %3132 = vmatpush.msra.mxu0 %v3112
    %3133 = vmatmul.f32.gmra.mxu0 %v3115
    %v3134 = vpop.f32.mrf.mxu0
    %v3135 = vadd.f32 0.0, %v3134
    %3136 = vdwg.mxu0
    %3138 = vrot.lane.b32.xlu0 %v3135, 32
    %v3139 = vpop.permute.xlu0 %3138
    %3141 = vst.msk [vmem:[#allocation2 + $0x10] sm:$0xff] %vm695, %v3139
    %3142 = vrot.lane.b32.xlu0 %v2898, 80
    %v3143 = vpop.permute.xlu0 %3142
    %3144 = vrot.lane.b32.xlu0 %v2210, 16
    %v3145 = vpop.permute.xlu0 %3144
    %v3146 = vsel %vm453, %v3143, 0
    %v3148 = vsel %vm453, %v3145, 0
    %3150 = vmatpush.xpose.msra.mxu0 0.0
    %3151 = vmatpush.xpose.msra.mxu0 0.0
    %3152 = vmatpush.xpose.msra.mxu0 0.0
    %3153 = vmatpush.xpose.msra.mxu0 0.0
    %3154 = vmatpush.xpose.msra.mxu0 0.0
    %3155 = vmatpush.xpose.msra.mxu0 0.0
    %3156 = vmatpush.xpose.msra.mxu0 0.0
    %3157 = vmatpush.xpose.msra.mxu0 0.0
    %3158 = vmatpush.xpose.msra.mxu0 0.0
    %3159 = vmatpush.xpose.msra.mxu0 0.0
    %3160 = vmatpush.xpose.msra.mxu0 0.0
    %3161 = vmatpush.xpose.msra.mxu0 0.0
    %3162 = vmatpush.xpose.msra.mxu0 0.0
    %3163 = vmatpush.xpose.msra.mxu0 0.0
    %3164 = vmatpush.xpose.msra.mxu0 0.0
    %3165 = vmatpush.xpose.msra.mxu0 %v3148
    %3166 = vmatmul.f32.gmra.mxu0 %v3146
    %v3167 = vpop.f32.mrf.mxu0
    %v3168 = vadd.f32 0.0, %v3167
    %3169 = vdwg.mxu0
    %v3170 = vsel %vm479, %v3168, -inf
    %3171 = vmax.xlane.f32.xlu0 %v3170
    %v3172 = vpop.xlane.xlu0 %3171
    %v3173 = vsub.f32 %v3168, %v3172
    %v3174 = vmul.f32 %v3173, 1.442695
    %v3175 = vpow.pop %v3174
    %v3176 = vsel %vm479, %v3175, 0.0
    %3177 = vadd.xlane.f32.xlu0 %v3176
    %v3178 = vpop.xlane.xlu0 %3177
    %v3179 = vrcp.pop %v3178
    %v3180 = vmul.f32 %v3178, %v3179
    %v3181 = vsub.f32 1.0, %v3180
    %v3182 = vmul.f32 %v3179, %v3181
    %v3183 = vadd.f32 %v3179, %v3182
    %vm3184 = vweird.f32 %v3178
    %vm3185 = vweird.f32 %v3179
    %vm3186 = vmor %vm3184, %vm3185
    %v3187 = vsel %vm3186, %v3179, %v3183
    %v3188 = vand.u32 2147483647, %v3178
    %vm3189 = vcmp.eq.f32.partialorder %v3188, 8.507059e+37
    %v3190 = vand.u32 %v3178, 2147483648
    %v3191 = vor.u32 1.1754944e-38, %v3190
    %v3192 = vsel %vm3189, %v3191, %v3187
    %v3193 = vmul.f32 %v3175, %v3192
    %3194 = vrot.lane.b32.xlu0 %v2239, 80
    %v3195 = vpop.permute.xlu0 %3194
    %v3198 = vsel %vm479, %v3193, 0
    %3200 = vmatpush.msra.mxu0 0.0
    %3201 = vmatpush.msra.mxu0 0.0
    %3202 = vmatpush.msra.mxu0 0.0
    %3203 = vmatpush.msra.mxu0 0.0
    %3204 = vmatpush.msra.mxu0 0.0
    %3205 = vmatpush.msra.mxu0 0.0
    %3206 = vmatpush.msra.mxu0 0.0
    %3207 = vmatpush.msra.mxu0 0.0
    %3208 = vmatpush.msra.mxu0 0.0
    %3209 = vmatpush.msra.mxu0 0.0
    %3210 = vmatpush.msra.mxu0 0.0
    %3211 = vmatpush.msra.mxu0 0.0
    %3212 = vmatpush.msra.mxu0 0.0
    %3213 = vmatpush.msra.mxu0 0.0
    %3214 = vmatpush.msra.mxu0 0.0
    %3215 = vmatpush.msra.mxu0 %v3195
    %3216 = vmatmul.f32.gmra.mxu0 %v3198
    %v3217 = vpop.f32.mrf.mxu0
    %v3218 = vadd.f32 0.0, %v3217
    %3219 = vdwg.mxu0
    %3221 = vrot.lane.b32.xlu0 %v3218, 48
    %v3222 = vpop.permute.xlu0 %3221
    %3224 = vst.msk [vmem:[#allocation2 + $0x10] sm:$0xff] %vm779, %v3222
    %v3225 = vmul.f32 %v2213, 0.25
    %3227 = vrot.lane.b32.xlu0 %v2213, 64
    %v3228 = vpop.permute.xlu0 %3227
    %v3230 = vsel %vm453, %v3225, 0
    %v3232 = vsel %vm453, %v3228, 0
    %3234 = vmatpush.xpose.msra.mxu0 0.0
    %3235 = vmatpush.xpose.msra.mxu0 0.0
    %3236 = vmatpush.xpose.msra.mxu0 0.0
    %3237 = vmatpush.xpose.msra.mxu0 0.0
    %3238 = vmatpush.xpose.msra.mxu0 0.0
    %3239 = vmatpush.xpose.msra.mxu0 0.0
    %3240 = vmatpush.xpose.msra.mxu0 0.0
    %3241 = vmatpush.xpose.msra.mxu0 0.0
    %3242 = vmatpush.xpose.msra.mxu0 0.0
    %3243 = vmatpush.xpose.msra.mxu0 0.0
    %3244 = vmatpush.xpose.msra.mxu0 0.0
    %3245 = vmatpush.xpose.msra.mxu0 0.0
    %3246 = vmatpush.xpose.msra.mxu0 0.0
    %3247 = vmatpush.xpose.msra.mxu0 0.0
    %3248 = vmatpush.xpose.msra.mxu0 0.0
    %3249 = vmatpush.xpose.msra.mxu0 %v3232
    %3250 = vmatmul.f32.gmra.mxu0 %v3230
    %v3251 = vpop.f32.mrf.mxu0
    %v3252 = vadd.f32 0.0, %v3251
    %3253 = vdwg.mxu0
    %v3254 = vsel %vm479, %v3252, -inf
    %3255 = vmax.xlane.f32.xlu0 %v3254
    %v3256 = vpop.xlane.xlu0 %3255
    %v3257 = vsub.f32 %v3252, %v3256
    %v3258 = vmul.f32 %v3257, 1.442695
    %v3259 = vpow.pop %v3258
    %v3260 = vsel %vm479, %v3259, 0.0
    %3261 = vadd.xlane.f32.xlu0 %v3260
    %v3262 = vpop.xlane.xlu0 %3261
    %v3263 = vrcp.pop %v3262
    %v3264 = vmul.f32 %v3262, %v3263
    %v3265 = vsub.f32 1.0, %v3264
    %v3266 = vmul.f32 %v3263, %v3265
    %v3267 = vadd.f32 %v3263, %v3266
    %vm3268 = vweird.f32 %v3262
    %vm3269 = vweird.f32 %v3263
    %vm3270 = vmor %vm3268, %vm3269
    %v3271 = vsel %vm3270, %v3263, %v3267
    %v3272 = vand.u32 2147483647, %v3262
    %vm3273 = vcmp.eq.f32.partialorder %v3272, 8.507059e+37
    %v3274 = vand.u32 %v3262, 2147483648
    %v3275 = vor.u32 1.1754944e-38, %v3274
    %v3276 = vsel %vm3273, %v3275, %v3271
    %v3277 = vmul.f32 %v3259, %v3276
    %v3279 = vsel %vm479, %v3277, 0
    %3281 = vmatpush.msra.mxu0 0.0
    %3282 = vmatpush.msra.mxu0 0.0
    %3283 = vmatpush.msra.mxu0 0.0
    %3284 = vmatpush.msra.mxu0 0.0
    %3285 = vmatpush.msra.mxu0 0.0
    %3286 = vmatpush.msra.mxu0 0.0
    %3287 = vmatpush.msra.mxu0 0.0
    %3288 = vmatpush.msra.mxu0 0.0
    %3289 = vmatpush.msra.mxu0 0.0
    %3290 = vmatpush.msra.mxu0 0.0
    %3291 = vmatpush.msra.mxu0 0.0
    %3292 = vmatpush.msra.mxu0 0.0
    %3293 = vmatpush.msra.mxu0 0.0
    %3294 = vmatpush.msra.mxu0 0.0
    %3295 = vmatpush.msra.mxu0 0.0
    %3296 = vmatpush.msra.mxu0 %v2242
    %3297 = vmatmul.f32.gmra.mxu0 %v3279
    %v3298 = vpop.f32.mrf.mxu0
    %v3299 = vadd.f32 0.0, %v3298
    %3300 = vdwg.mxu0
    %3301 = vst.msk [vmem:[#allocation2 + $0x18] sm:$0xff] %vm453, %v3299
    %3302 = vrot.lane.b32.xlu0 %v3225, 112
    %v3303 = vpop.permute.xlu0 %3302
    %3304 = vrot.lane.b32.xlu0 %v2213, 48
    %v3305 = vpop.permute.xlu0 %3304
    %v3306 = vsel %vm453, %v3303, 0
    %v3308 = vsel %vm453, %v3305, 0
    %3310 = vmatpush.xpose.msra.mxu0 0.0
    %3311 = vmatpush.xpose.msra.mxu0 0.0
    %3312 = vmatpush.xpose.msra.mxu0 0.0
    %3313 = vmatpush.xpose.msra.mxu0 0.0
    %3314 = vmatpush.xpose.msra.mxu0 0.0
    %3315 = vmatpush.xpose.msra.mxu0 0.0
    %3316 = vmatpush.xpose.msra.mxu0 0.0
    %3317 = vmatpush.xpose.msra.mxu0 0.0
    %3318 = vmatpush.xpose.msra.mxu0 0.0
    %3319 = vmatpush.xpose.msra.mxu0 0.0
    %3320 = vmatpush.xpose.msra.mxu0 0.0
    %3321 = vmatpush.xpose.msra.mxu0 0.0
    %3322 = vmatpush.xpose.msra.mxu0 0.0
    %3323 = vmatpush.xpose.msra.mxu0 0.0
    %3324 = vmatpush.xpose.msra.mxu0 0.0
    %3325 = vmatpush.xpose.msra.mxu0 %v3308
    %3326 = vmatmul.f32.gmra.mxu0 %v3306
    %v3327 = vpop.f32.mrf.mxu0
    %v3328 = vadd.f32 0.0, %v3327
    %3329 = vdwg.mxu0
    %v3330 = vsel %vm479, %v3328, -inf
    %3331 = vmax.xlane.f32.xlu0 %v3330
    %v3332 = vpop.xlane.xlu0 %3331
    %v3333 = vsub.f32 %v3328, %v3332
    %v3334 = vmul.f32 %v3333, 1.442695
    %v3335 = vpow.pop %v3334
    %v3336 = vsel %vm479, %v3335, 0.0
    %3337 = vadd.xlane.f32.xlu0 %v3336
    %v3338 = vpop.xlane.xlu0 %3337
    %v3339 = vrcp.pop %v3338
    %v3340 = vmul.f32 %v3338, %v3339
    %v3341 = vsub.f32 1.0, %v3340
    %v3342 = vmul.f32 %v3339, %v3341
    %v3343 = vadd.f32 %v3339, %v3342
    %vm3344 = vweird.f32 %v3338
    %vm3345 = vweird.f32 %v3339
    %vm3346 = vmor %vm3344, %vm3345
    %v3347 = vsel %vm3346, %v3339, %v3343
    %v3348 = vand.u32 2147483647, %v3338
    %vm3349 = vcmp.eq.f32.partialorder %v3348, 8.507059e+37
    %v3350 = vand.u32 %v3338, 2147483648
    %v3351 = vor.u32 1.1754944e-38, %v3350
    %v3352 = vsel %vm3349, %v3351, %v3347
    %v3353 = vmul.f32 %v3335, %v3352
    %3355 = vrot.lane.b32.xlu0 %v2242, 112
    %v3356 = vpop.permute.xlu0 %3355
    %v3359 = vsel %vm479, %v3353, 0
    %3361 = vmatpush.msra.mxu0 0.0
    %3362 = vmatpush.msra.mxu0 0.0
    %3363 = vmatpush.msra.mxu0 0.0
    %3364 = vmatpush.msra.mxu0 0.0
    %3365 = vmatpush.msra.mxu0 0.0
    %3366 = vmatpush.msra.mxu0 0.0
    %3367 = vmatpush.msra.mxu0 0.0
    %3368 = vmatpush.msra.mxu0 0.0
    %3369 = vmatpush.msra.mxu0 0.0
    %3370 = vmatpush.msra.mxu0 0.0
    %3371 = vmatpush.msra.mxu0 0.0
    %3372 = vmatpush.msra.mxu0 0.0
    %3373 = vmatpush.msra.mxu0 0.0
    %3374 = vmatpush.msra.mxu0 0.0
    %3375 = vmatpush.msra.mxu0 0.0
    %3376 = vmatpush.msra.mxu0 %v3356
    %3377 = vmatmul.f32.gmra.mxu0 %v3359
    %v3378 = vpop.f32.mrf.mxu0
    %v3379 = vadd.f32 0.0, %v3378
    %3380 = vdwg.mxu0
    %3382 = vrot.lane.b32.xlu0 %v3379, 16
    %v3383 = vpop.permute.xlu0 %3382
    %3385 = vst.msk [vmem:[#allocation2 + $0x18] sm:$0xff] %vm611, %v3383
    %3386 = vrot.lane.b32.xlu0 %v3225, 96
    %v3387 = vpop.permute.xlu0 %3386
    %3388 = vrot.lane.b32.xlu0 %v2213, 32
    %v3389 = vpop.permute.xlu0 %3388
    %v3390 = vsel %vm453, %v3387, 0
    %v3392 = vsel %vm453, %v3389, 0
    %3394 = vmatpush.xpose.msra.mxu0 0.0
    %3395 = vmatpush.xpose.msra.mxu0 0.0
    %3396 = vmatpush.xpose.msra.mxu0 0.0
    %3397 = vmatpush.xpose.msra.mxu0 0.0
    %3398 = vmatpush.xpose.msra.mxu0 0.0
    %3399 = vmatpush.xpose.msra.mxu0 0.0
    %3400 = vmatpush.xpose.msra.mxu0 0.0
    %3401 = vmatpush.xpose.msra.mxu0 0.0
    %3402 = vmatpush.xpose.msra.mxu0 0.0
    %3403 = vmatpush.xpose.msra.mxu0 0.0
    %3404 = vmatpush.xpose.msra.mxu0 0.0
    %3405 = vmatpush.xpose.msra.mxu0 0.0
    %3406 = vmatpush.xpose.msra.mxu0 0.0
    %3407 = vmatpush.xpose.msra.mxu0 0.0
    %3408 = vmatpush.xpose.msra.mxu0 0.0
    %3409 = vmatpush.xpose.msra.mxu0 %v3392
    %3410 = vmatmul.f32.gmra.mxu0 %v3390
    %v3411 = vpop.f32.mrf.mxu0
    %v3412 = vadd.f32 0.0, %v3411
    %3413 = vdwg.mxu0
    %v3414 = vsel %vm479, %v3412, -inf
    %3415 = vmax.xlane.f32.xlu0 %v3414
    %v3416 = vpop.xlane.xlu0 %3415
    %v3417 = vsub.f32 %v3412, %v3416
    %v3418 = vmul.f32 %v3417, 1.442695
    %v3419 = vpow.pop %v3418
    %v3420 = vsel %vm479, %v3419, 0.0
    %3421 = vadd.xlane.f32.xlu0 %v3420
    %v3422 = vpop.xlane.xlu0 %3421
    %v3423 = vrcp.pop %v3422
    %v3424 = vmul.f32 %v3422, %v3423
    %v3425 = vsub.f32 1.0, %v3424
    %v3426 = vmul.f32 %v3423, %v3425
    %v3427 = vadd.f32 %v3423, %v3426
    %vm3428 = vweird.f32 %v3422
    %vm3429 = vweird.f32 %v3423
    %vm3430 = vmor %vm3428, %vm3429
    %v3431 = vsel %vm3430, %v3423, %v3427
    %v3432 = vand.u32 2147483647, %v3422
    %vm3433 = vcmp.eq.f32.partialorder %v3432, 8.507059e+37
    %v3434 = vand.u32 %v3422, 2147483648
    %v3435 = vor.u32 1.1754944e-38, %v3434
    %v3436 = vsel %vm3433, %v3435, %v3431
    %v3437 = vmul.f32 %v3419, %v3436
    %3438 = vrot.lane.b32.xlu0 %v2242, 96
    %v3439 = vpop.permute.xlu0 %3438
    %v3442 = vsel %vm479, %v3437, 0
    %3444 = vmatpush.msra.mxu0 0.0
    %3445 = vmatpush.msra.mxu0 0.0
    %3446 = vmatpush.msra.mxu0 0.0
    %3447 = vmatpush.msra.mxu0 0.0
    %3448 = vmatpush.msra.mxu0 0.0
    %3449 = vmatpush.msra.mxu0 0.0
    %3450 = vmatpush.msra.mxu0 0.0
    %3451 = vmatpush.msra.mxu0 0.0
    %3452 = vmatpush.msra.mxu0 0.0
    %3453 = vmatpush.msra.mxu0 0.0
    %3454 = vmatpush.msra.mxu0 0.0
    %3455 = vmatpush.msra.mxu0 0.0
    %3456 = vmatpush.msra.mxu0 0.0
    %3457 = vmatpush.msra.mxu0 0.0
    %3458 = vmatpush.msra.mxu0 0.0
    %3459 = vmatpush.msra.mxu0 %v3439
    %3460 = vmatmul.f32.gmra.mxu0 %v3442
    %v3461 = vpop.f32.mrf.mxu0
    %v3462 = vadd.f32 0.0, %v3461
    %3463 = vdwg.mxu0
    %3465 = vrot.lane.b32.xlu0 %v3462, 32
    %v3466 = vpop.permute.xlu0 %3465
    %3468 = vst.msk [vmem:[#allocation2 + $0x18] sm:$0xff] %vm695, %v3466
    %3469 = vrot.lane.b32.xlu0 %v3225, 80
    %v3470 = vpop.permute.xlu0 %3469
    %3471 = vrot.lane.b32.xlu0 %v2213, 16
    %v3472 = vpop.permute.xlu0 %3471
    %v3473 = vsel %vm453, %v3470, 0
    %v3475 = vsel %vm453, %v3472, 0
    %3477 = vmatpush.xpose.msra.mxu0 0.0
    %3478 = vmatpush.xpose.msra.mxu0 0.0
    %3479 = vmatpush.xpose.msra.mxu0 0.0
    %3480 = vmatpush.xpose.msra.mxu0 0.0
    %3481 = vmatpush.xpose.msra.mxu0 0.0
    %3482 = vmatpush.xpose.msra.mxu0 0.0
    %3483 = vmatpush.xpose.msra.mxu0 0.0
    %3484 = vmatpush.xpose.msra.mxu0 0.0
    %3485 = vmatpush.xpose.msra.mxu0 0.0
    %3486 = vmatpush.xpose.msra.mxu0 0.0
    %3487 = vmatpush.xpose.msra.mxu0 0.0
    %3488 = vmatpush.xpose.msra.mxu0 0.0
    %3489 = vmatpush.xpose.msra.mxu0 0.0
    %3490 = vmatpush.xpose.msra.mxu0 0.0
    %3491 = vmatpush.xpose.msra.mxu0 0.0
    %3492 = vmatpush.xpose.msra.mxu0 %v3475
    %3493 = vmatmul.f32.gmra.mxu0 %v3473
    %v3494 = vpop.f32.mrf.mxu0
    %v3495 = vadd.f32 0.0, %v3494
    %3496 = vdwg.mxu0
    %v3497 = vsel %vm479, %v3495, -inf
    %3498 = vmax.xlane.f32.xlu0 %v3497
    %v3499 = vpop.xlane.xlu0 %3498
    %v3500 = vsub.f32 %v3495, %v3499
    %v3501 = vmul.f32 %v3500, 1.442695
    %v3502 = vpow.pop %v3501
    %v3503 = vsel %vm479, %v3502, 0.0
    %3504 = vadd.xlane.f32.xlu0 %v3503
    %v3505 = vpop.xlane.xlu0 %3504
    %v3506 = vrcp.pop %v3505
    %v3507 = vmul.f32 %v3505, %v3506
    %v3508 = vsub.f32 1.0, %v3507
    %v3509 = vmul.f32 %v3506, %v3508
    %v3510 = vadd.f32 %v3506, %v3509
    %vm3511 = vweird.f32 %v3505
    %vm3512 = vweird.f32 %v3506
    %vm3513 = vmor %vm3511, %vm3512
    %v3514 = vsel %vm3513, %v3506, %v3510
    %v3515 = vand.u32 2147483647, %v3505
    %vm3516 = vcmp.eq.f32.partialorder %v3515, 8.507059e+37
    %v3517 = vand.u32 %v3505, 2147483648
    %v3518 = vor.u32 1.1754944e-38, %v3517
    %v3519 = vsel %vm3516, %v3518, %v3514
    %v3520 = vmul.f32 %v3502, %v3519
    %3521 = vrot.lane.b32.xlu0 %v2242, 80
    %v3522 = vpop.permute.xlu0 %3521
    %v3525 = vsel %vm479, %v3520, 0
    %3527 = vmatpush.msra.mxu0 0.0
    %3528 = vmatpush.msra.mxu0 0.0
    %3529 = vmatpush.msra.mxu0 0.0
    %3530 = vmatpush.msra.mxu0 0.0
    %3531 = vmatpush.msra.mxu0 0.0
    %3532 = vmatpush.msra.mxu0 0.0
    %3533 = vmatpush.msra.mxu0 0.0
    %3534 = vmatpush.msra.mxu0 0.0
    %3535 = vmatpush.msra.mxu0 0.0
    %3536 = vmatpush.msra.mxu0 0.0
    %3537 = vmatpush.msra.mxu0 0.0
    %3538 = vmatpush.msra.mxu0 0.0
    %3539 = vmatpush.msra.mxu0 0.0
    %3540 = vmatpush.msra.mxu0 0.0
    %3541 = vmatpush.msra.mxu0 0.0
    %3542 = vmatpush.msra.mxu0 %v3522
    %3543 = vmatmul.f32.gmra.mxu0 %v3525
    %v3544 = vpop.f32.mrf.mxu0
    %v3545 = vadd.f32 0.0, %v3544
    %3546 = vdwg.mxu0
    %3548 = vrot.lane.b32.xlu0 %v3545, 48
    %v3549 = vpop.permute.xlu0 %3548
    %3551 = vst.msk [vmem:[#allocation2 + $0x18] sm:$0xff] %vm779, %v3549
    %v3552 = vld [vmem:[#allocation2] sm:$0xff]
    %v3553 = vld [vmem:[#allocation2 + $0x8] sm:$0xff]
    %v3554 = vld [vmem:[#allocation2 + $0x10] sm:$0xff]
    %v3555 = vld [vmem:[#allocation2 + $0x18] sm:$0xff]
    %v3557 = vperm.slane %v2146, 0
    %v3560 = vsel %vm378, %v3552, 0
    %v3563 = vsel %vm378, %v3553, 0
    %v3566 = vsel %vm378, %v3554, 0
    %v3569 = vsel %vm378, %v3555, 0
    %3571 = vmatpush.msra.mxu0 0.0
    %3572 = vmatpush.msra.mxu0 0.0
    %3573 = vmatpush.msra.mxu0 0.0
    %3574 = vmatpush.msra.mxu0 0.0
    %3575 = vmatpush.msra.mxu0 0.0
    %3576 = vmatpush.msra.mxu0 0.0
    %3577 = vmatpush.msra.mxu0 0.0
    %3578 = vmatpush.msra.mxu0 0.0
    %3579 = vmatpush.msra.mxu0 %v2145
    %3580 = vmatpush.msra.mxu0 %v2144
    %3581 = vmatpush.msra.mxu0 %v2143
    %3582 = vmatpush.msra.mxu0 %v2142
    %3583 = vmatpush.msra.mxu0 %v2141
    %3584 = vmatpush.msra.mxu0 %v2140
    %3585 = vmatpush.msra.mxu0 %v2139
    %3586 = vmatpush.msra.mxu0 %v2138
    %3587 = vmatmul.f32.gmra.mxu0 %v3560
    %v3588 = vpop.f32.mrf.mxu0
    %v3589 = vadd.f32 %v3557, %v3588
    %3590 = vmatmul.f32.gmra.mxu0 %v3563
    %v3591 = vpop.f32.mrf.mxu0
    %v3592 = vadd.f32 %v3557, %v3591
    %3593 = vmatmul.f32.gmra.mxu0 %v3566
    %v3594 = vpop.f32.mrf.mxu0
    %v3595 = vadd.f32 %v3557, %v3594
    %3596 = vmatmul.f32.gmra.mxu0 %v3569
    %v3597 = vpop.f32.mrf.mxu0
    %v3598 = vadd.f32 %v3557, %v3597
    %3599 = vdwg.mxu0
    %v3600 = vadd.f32 %v2117, %v3589
    %v3601 = vadd.f32 %v2118, %v3592
    %v3602 = vadd.f32 %v2119, %v3595
    %v3603 = vadd.f32 %v2120, %v3598
    %v3604 = vsel %vm378, %v3600, 0.0
    %3605 = vadd.xlane.f32.xlu0 %v3604
    %v3606 = vpop.xlane.xlu0 %3605
    %v3607 = vsel %vm378, %v3601, 0.0
    %3608 = vadd.xlane.f32.xlu0 %v3607
    %v3609 = vpop.xlane.xlu0 %3608
    %v3610 = vsel %vm378, %v3602, 0.0
    %3611 = vadd.xlane.f32.xlu0 %v3610
    %v3612 = vpop.xlane.xlu0 %3611
    %v3613 = vsel %vm378, %v3603, 0.0
    %3614 = vadd.xlane.f32.xlu0 %v3613
    %v3615 = vpop.xlane.xlu0 %3614
    %v3616 = vmul.f32 %v3606, %v1832
    %v3617 = vmul.f32 %v3609, %v1832
    %v3618 = vmul.f32 %v3612, %v1832
    %v3619 = vmul.f32 %v3615, %v1832
    %v3620 = vsub.f32 %v3600, %v3616
    %v3621 = vsub.f32 %v3601, %v3617
    %v3622 = vsub.f32 %v3602, %v3618
    %v3623 = vsub.f32 %v3603, %v3619
    %v3624 = vmul.f32 %v3620, %v3620
    %v3625 = vmul.f32 %v3621, %v3621
    %v3626 = vmul.f32 %v3622, %v3622
    %v3627 = vmul.f32 %v3623, %v3623
    %v3628 = vsel %vm378, %v3624, 0.0
    %3629 = vadd.xlane.f32.xlu0 %v3628
    %v3630 = vpop.xlane.xlu0 %3629
    %v3631 = vsel %vm378, %v3625, 0.0
    %3632 = vadd.xlane.f32.xlu0 %v3631
    %v3633 = vpop.xlane.xlu0 %3632
    %v3634 = vsel %vm378, %v3626, 0.0
    %3635 = vadd.xlane.f32.xlu0 %v3634
    %v3636 = vpop.xlane.xlu0 %3635
    %v3637 = vsel %vm378, %v3627, 0.0
    %3638 = vadd.xlane.f32.xlu0 %v3637
    %v3639 = vpop.xlane.xlu0 %3638
    %v3640 = vmul.f32 %v3630, %v1832
    %v3641 = vmul.f32 %v3633, %v1832
    %v3642 = vmul.f32 %v3636, %v1832
    %v3643 = vmul.f32 %v3639, %v1832
    %v3644 = vadd.f32 %v3640, 1e-05
    %v3645 = vadd.f32 %v3641, 1e-05
    %v3646 = vadd.f32 %v3642, 1e-05
    %v3647 = vadd.f32 %v3643, 1e-05
    %v3648 = vrsqrt.pop %v3644
    %v3649 = vmul.f32 %v3648, %v3644
    %v3650 = vmul.f32 %v3649, %v3648
    %v3651 = vmul.f32 0.5, %v3650
    %v3652 = vsub.f32 1.5, %v3651
    %v3653 = vmul.f32 %v3648, %v3652
    %vm3654 = vweird.f32 %v3644
    %vm3655 = vweird.f32 %v3648
    %vm3656 = vmor %vm3654, %vm3655
    %v3657 = vsel %vm3656, %v3648, %v3653
    %v3658 = vrsqrt.pop %v3645
    %v3659 = vmul.f32 %v3658, %v3645
    %v3660 = vmul.f32 %v3659, %v3658
    %v3661 = vmul.f32 0.5, %v3660
    %v3662 = vsub.f32 1.5, %v3661
    %v3663 = vmul.f32 %v3658, %v3662
    %vm3664 = vweird.f32 %v3645
    %vm3665 = vweird.f32 %v3658
    %vm3666 = vmor %vm3664, %vm3665
    %v3667 = vsel %vm3666, %v3658, %v3663
    %v3668 = vrsqrt.pop %v3646
    %v3669 = vmul.f32 %v3668, %v3646
    %v3670 = vmul.f32 %v3669, %v3668
    %v3671 = vmul.f32 0.5, %v3670
    %v3672 = vsub.f32 1.5, %v3671
    %v3673 = vmul.f32 %v3668, %v3672
    %vm3674 = vweird.f32 %v3646
    %vm3675 = vweird.f32 %v3668
    %vm3676 = vmor %vm3674, %vm3675
    %v3677 = vsel %vm3676, %v3668, %v3673
    %v3678 = vrsqrt.pop %v3647
    %v3679 = vmul.f32 %v3678, %v3647
    %v3680 = vmul.f32 %v3679, %v3678
    %v3681 = vmul.f32 0.5, %v3680
    %v3682 = vsub.f32 1.5, %v3681
    %v3683 = vmul.f32 %v3678, %v3682
    %vm3684 = vweird.f32 %v3647
    %vm3685 = vweird.f32 %v3678
    %vm3686 = vmor %vm3684, %vm3685
    %v3687 = vsel %vm3686, %v3678, %v3683
    %v3688 = vmul.f32 %v3620, %v3657
    %v3689 = vmul.f32 %v3621, %v3667
    %v3690 = vmul.f32 %v3622, %v3677
    %v3691 = vmul.f32 %v3623, %v3687
    %v3693 = vperm.slane %v2165, 0
    %v3695 = vmul.f32 %v3688, %v3693
    %v3696 = vmul.f32 %v3689, %v3693
    %v3697 = vmul.f32 %v3690, %v3693
    %v3698 = vmul.f32 %v3691, %v3693
    %v3700 = vperm.slane %v2166, 0
    %v3702 = vadd.f32 %v3695, %v3700
    %v3703 = vadd.f32 %v3696, %v3700
    %v3704 = vadd.f32 %v3697, %v3700
    %v3705 = vadd.f32 %v3698, %v3700
    %v3707 = vperm.slane %v2155, 0
    %v3710 = vsel %vm378, %v3702, 0
    %v3713 = vsel %vm378, %v3703, 0
    %v3716 = vsel %vm378, %v3704, 0
    %v3719 = vsel %vm378, %v3705, 0
    %3721 = vmatpush.msra.mxu0 0.0
    %3722 = vmatpush.msra.mxu0 0.0
    %3723 = vmatpush.msra.mxu0 0.0
    %3724 = vmatpush.msra.mxu0 0.0
    %3725 = vmatpush.msra.mxu0 0.0
    %3726 = vmatpush.msra.mxu0 0.0
    %3727 = vmatpush.msra.mxu0 0.0
    %3728 = vmatpush.msra.mxu0 0.0
    %3729 = vmatpush.msra.mxu0 %v2154
    %3730 = vmatpush.msra.mxu0 %v2153
    %3731 = vmatpush.msra.mxu0 %v2152
    %3732 = vmatpush.msra.mxu0 %v2151
    %3733 = vmatpush.msra.mxu0 %v2150
    %3734 = vmatpush.msra.mxu0 %v2149
    %3735 = vmatpush.msra.mxu0 %v2148
    %3736 = vmatpush.msra.mxu0 %v2147
    %3737 = vmatmul.f32.gmra.mxu0 %v3710
    %v3738 = vpop.f32.mrf.mxu0
    %v3739 = vadd.f32 %v3707, %v3738
    %3740 = vmatmul.f32.gmra.mxu0 %v3713
    %v3741 = vpop.f32.mrf.mxu0
    %v3742 = vadd.f32 %v3707, %v3741
    %3743 = vmatmul.f32.gmra.mxu0 %v3716
    %v3744 = vpop.f32.mrf.mxu0
    %v3745 = vadd.f32 %v3707, %v3744
    %3746 = vmatmul.f32.gmra.mxu0 %v3719
    %v3747 = vpop.f32.mrf.mxu0
    %v3748 = vadd.f32 %v3707, %v3747
    %3749 = vdwg.mxu0
    %v3750 = vmax.f32 %v3739, 0.0
    %v3751 = vmax.f32 %v3742, 0.0
    %v3752 = vmax.f32 %v3745, 0.0
    %v3753 = vmax.f32 %v3748, 0.0
    %v3755 = vperm.slane %v2164, 0
    %v3758 = vsel %vm378, %v3750, 0
    %v3761 = vsel %vm378, %v3751, 0
    %v3764 = vsel %vm378, %v3752, 0
    %v3767 = vsel %vm378, %v3753, 0
    %3769 = vmatpush.msra.mxu0 0.0
    %3770 = vmatpush.msra.mxu0 0.0
    %3771 = vmatpush.msra.mxu0 0.0
    %3772 = vmatpush.msra.mxu0 0.0
    %3773 = vmatpush.msra.mxu0 0.0
    %3774 = vmatpush.msra.mxu0 0.0
    %3775 = vmatpush.msra.mxu0 0.0
    %3776 = vmatpush.msra.mxu0 0.0
    %3777 = vmatpush.msra.mxu0 %v2163
    %3778 = vmatpush.msra.mxu0 %v2162
    %3779 = vmatpush.msra.mxu0 %v2161
    %3780 = vmatpush.msra.mxu0 %v2160
    %3781 = vmatpush.msra.mxu0 %v2159
    %3782 = vmatpush.msra.mxu0 %v2158
    %3783 = vmatpush.msra.mxu0 %v2157
    %3784 = vmatpush.msra.mxu0 %v2156
    %3785 = vmatmul.f32.gmra.mxu0 %v3758
    %v3786 = vpop.f32.mrf.mxu0
    %v3787 = vadd.f32 %v3755, %v3786
    %3788 = vmatmul.f32.gmra.mxu0 %v3761
    %v3789 = vpop.f32.mrf.mxu0
    %v3790 = vadd.f32 %v3755, %v3789
    %3791 = vmatmul.f32.gmra.mxu0 %v3764
    %v3792 = vpop.f32.mrf.mxu0
    %v3793 = vadd.f32 %v3755, %v3792
    %3794 = vmatmul.f32.gmra.mxu0 %v3767
    %v3795 = vpop.f32.mrf.mxu0
    %v3796 = vadd.f32 %v3755, %v3795
    %3797 = vdwg.mxu0
    %v3798 = vadd.f32 %v3702, %v3787
    %v3799 = vadd.f32 %v3703, %v3790
    %v3800 = vadd.f32 %v3704, %v3793
    %v3801 = vadd.f32 %v3705, %v3796
    %v3802 = vsel %vm378, %v3798, 0.0
    %3803 = vadd.xlane.f32.xlu0 %v3802
    %v3804 = vpop.xlane.xlu0 %3803
    %v3805 = vsel %vm378, %v3799, 0.0
    %3806 = vadd.xlane.f32.xlu0 %v3805
    %v3807 = vpop.xlane.xlu0 %3806
    %v3808 = vsel %vm378, %v3800, 0.0
    %3809 = vadd.xlane.f32.xlu0 %v3808
    %v3810 = vpop.xlane.xlu0 %3809
    %v3811 = vsel %vm378, %v3801, 0.0
    %3812 = vadd.xlane.f32.xlu0 %v3811
    %v3813 = vpop.xlane.xlu0 %3812
    %v3814 = vmul.f32 %v3804, %v1832
    %v3815 = vmul.f32 %v3807, %v1832
    %v3816 = vmul.f32 %v3810, %v1832
    %v3817 = vmul.f32 %v3813, %v1832
    %v3818 = vsub.f32 %v3798, %v3814
    %v3819 = vsub.f32 %v3799, %v3815
    %v3820 = vsub.f32 %v3800, %v3816
    %v3821 = vsub.f32 %v3801, %v3817
    %v3822 = vmul.f32 %v3818, %v3818
    %v3823 = vmul.f32 %v3819, %v3819
    %v3824 = vmul.f32 %v3820, %v3820
    %v3825 = vmul.f32 %v3821, %v3821
    %v3826 = vsel %vm378, %v3822, 0.0
    %3827 = vadd.xlane.f32.xlu0 %v3826
    %v3828 = vpop.xlane.xlu0 %3827
    %v3829 = vsel %vm378, %v3823, 0.0
    %3830 = vadd.xlane.f32.xlu0 %v3829
    %v3831 = vpop.xlane.xlu0 %3830
    %v3832 = vsel %vm378, %v3824, 0.0
    %3833 = vadd.xlane.f32.xlu0 %v3832
    %v3834 = vpop.xlane.xlu0 %3833
    %v3835 = vsel %vm378, %v3825, 0.0
    %3836 = vadd.xlane.f32.xlu0 %v3835
    %v3837 = vpop.xlane.xlu0 %3836
    %v3838 = vmul.f32 %v3828, %v1832
    %v3839 = vmul.f32 %v3831, %v1832
    %v3840 = vmul.f32 %v3834, %v1832
    %v3841 = vmul.f32 %v3837, %v1832
    %v3842 = vadd.f32 %v3838, 1e-05
    %v3843 = vadd.f32 %v3839, 1e-05
    %v3844 = vadd.f32 %v3840, 1e-05
    %v3845 = vadd.f32 %v3841, 1e-05
    %v3846 = vrsqrt.pop %v3842
    %v3847 = vmul.f32 %v3846, %v3842
    %v3848 = vmul.f32 %v3847, %v3846
    %v3849 = vmul.f32 0.5, %v3848
    %v3850 = vsub.f32 1.5, %v3849
    %v3851 = vmul.f32 %v3846, %v3850
    %vm3852 = vweird.f32 %v3842
    %vm3853 = vweird.f32 %v3846
    %vm3854 = vmor %vm3852, %vm3853
    %v3855 = vsel %vm3854, %v3846, %v3851
    %v3856 = vrsqrt.pop %v3843
    %v3857 = vmul.f32 %v3856, %v3843
    %v3858 = vmul.f32 %v3857, %v3856
    %v3859 = vmul.f32 0.5, %v3858
    %v3860 = vsub.f32 1.5, %v3859
    %v3861 = vmul.f32 %v3856, %v3860
    %vm3862 = vweird.f32 %v3843
    %vm3863 = vweird.f32 %v3856
    %vm3864 = vmor %vm3862, %vm3863
    %v3865 = vsel %vm3864, %v3856, %v3861
    %v3866 = vrsqrt.pop %v3844
    %v3867 = vmul.f32 %v3866, %v3844
    %v3868 = vmul.f32 %v3867, %v3866
    %v3869 = vmul.f32 0.5, %v3868
    %v3870 = vsub.f32 1.5, %v3869
    %v3871 = vmul.f32 %v3866, %v3870
    %vm3872 = vweird.f32 %v3844
    %vm3873 = vweird.f32 %v3866
    %vm3874 = vmor %vm3872, %vm3873
    %v3875 = vsel %vm3874, %v3866, %v3871
    %v3876 = vrsqrt.pop %v3845
    %v3877 = vmul.f32 %v3876, %v3845
    %v3878 = vmul.f32 %v3877, %v3876
    %v3879 = vmul.f32 0.5, %v3878
    %v3880 = vsub.f32 1.5, %v3879
    %v3881 = vmul.f32 %v3876, %v3880
    %vm3882 = vweird.f32 %v3845
    %vm3883 = vweird.f32 %v3876
    %vm3884 = vmor %vm3882, %vm3883
    %v3885 = vsel %vm3884, %v3876, %v3881
    %v3886 = vmul.f32 %v3818, %v3855
    %v3887 = vmul.f32 %v3819, %v3865
    %v3888 = vmul.f32 %v3820, %v3875
    %v3889 = vmul.f32 %v3821, %v3885
    %v3891 = vperm.slane %v2167, 0
    %v3893 = vmul.f32 %v3886, %v3891
    %v3894 = vmul.f32 %v3887, %v3891
    %v3895 = vmul.f32 %v3888, %v3891
    %v3896 = vmul.f32 %v3889, %v3891
    %v3898 = vperm.slane %v2168, 0
    %v3900 = vadd.f32 %v3893, %v3898
    %v3901 = vadd.f32 %v3894, %v3898
    %v3902 = vadd.f32 %v3895, %v3898
    %v3903 = vadd.f32 %v3896, %v3898
    %v3904 = vld [vmem:[%s55] sm:$0xf]
    %v3906 = vsel %vm279, %v3904, 0
    %3908 = vmatpush.msra.mxu0 0.0
    %3909 = vmatpush.msra.mxu0 0.0
    %3910 = vmatpush.msra.mxu0 0.0
    %3911 = vmatpush.msra.mxu0 0.0
    %3912 = vmatpush.msra.mxu0 0.0
    %3913 = vmatpush.msra.mxu0 0.0
    %3914 = vmatpush.msra.mxu0 0.0
    %3915 = vmatpush.msra.mxu0 0.0
    %3916 = vmatpush.msra.mxu0 0.0
    %3917 = vmatpush.msra.mxu0 0.0
    %3918 = vmatpush.msra.mxu0 0.0
    %3919 = vmatpush.msra.mxu0 0.0
    %3920 = vmatpush.msra.mxu0 %v3903
    %3921 = vmatpush.msra.mxu0 %v3902
    %3922 = vmatpush.msra.mxu0 %v3901
    %3923 = vmatpush.msra.mxu0 %v3900
    %3924 = vmatmul.f32.gmra.mxu0 %v3906
    %v3925 = vpop.f32.mrf.mxu0
    %v3926 = vadd.f32 0.0, %v3925
    %3927 = vdwg.mxu0
    %v3928 = vld [vmem:[%s57] sm:$0xff]
    %v3929 = vld [vmem:[%s57 + $0x8] sm:$0xff]
    %v3930 = vld [vmem:[%s57 + $0x10] sm:$0xff]
    %v3931 = vld [vmem:[%s57 + $0x18] sm:$0xff]
    %v3932 = vld [vmem:[%s57 + $0x20] sm:$0xff]
    %v3933 = vld [vmem:[%s57 + $0x28] sm:$0xff]
    %v3934 = vld [vmem:[%s57 + $0x30] sm:$0xff]
    %v3935 = vld [vmem:[%s57 + $0x38] sm:$0xff]
    %v3936 = vld [vmem:[%s59] sm:$0x1]
    %v3938 = vperm.slane %v3936, 0
    %v3941 = vsel %vm378, %v3926, 0
    %3943 = vmatpush.msra.mxu0 0.0
    %3944 = vmatpush.msra.mxu0 0.0
    %3945 = vmatpush.msra.mxu0 0.0
    %3946 = vmatpush.msra.mxu0 0.0
    %3947 = vmatpush.msra.mxu0 0.0
    %3948 = vmatpush.msra.mxu0 0.0
    %3949 = vmatpush.msra.mxu0 0.0
    %3950 = vmatpush.msra.mxu0 0.0
    %3951 = vmatpush.msra.mxu0 %v3935
    %3952 = vmatpush.msra.mxu0 %v3934
    %3953 = vmatpush.msra.mxu0 %v3933
    %3954 = vmatpush.msra.mxu0 %v3932
    %3955 = vmatpush.msra.mxu0 %v3931
    %3956 = vmatpush.msra.mxu0 %v3930
    %3957 = vmatpush.msra.mxu0 %v3929
    %3958 = vmatpush.msra.mxu0 %v3928
    %3959 = vmatmul.f32.gmra.mxu0 %v3941
    %v3960 = vpop.f32.mrf.mxu0
    %v3961 = vadd.f32 %v3938, %v3960
    %3962 = vdwg.mxu0
    %vm3963 = vcmask 76800
    %3964 = vst.msk [vmem:[#allocation18] sm:$0xf] %vm3963, %v3961
    // Predicated region
    $region158: #{tpu_custom_call.1} parent=1 // pred_check
      _
    $region159: #{tpu_custom_call.1} parent=1 // pred_check_branch
      %3966 = sbr.rel (0) target = $region161
    $region160: #{tpu_custom_call.1} parent=1 // pred_region
      %3968 = vsyncadd [#allocation5], 0
      %s3970 = sshll.u32 [#allocation18], 4
      %s3971 = int_to_ptr.vmem [resolvable:$true] %s3970
      %s3972 = sshll.u32 %s61, 4
      %s3973 = int_to_ptr.hbm [resolvable:$true] %s3972
      %3975 = dma.vmem_to_hbm [thread:$0]  %s3971, 64, %s3973, [#allocation5]
    $region161: #{tpu_custom_call.1} parent=1 // pred_fallthru
      _
    // Predicated region
    $region162: #{tpu_custom_call.1} parent=1 // pred_check
      _
    $region163: #{tpu_custom_call.1} parent=1 // pred_check_branch
      %3977 = sbr.rel (0) target = $region165
    $region164: #{tpu_custom_call.1} parent=1 // pred_region
      %3979 = dma.done [#allocation5], 64
    $region165: #{tpu_custom_call.1} parent=1 // pred_fallthru
      _
    %3980 = vsyncpa [#allocation4], 1
    %3981 = vsyncpa [#allocation7], 1
    %3982 = vsyncpa [#allocation10], 1
    %3983 = vsyncpa [#allocation13], 1
    %3984 = vsyncpa [#allocation16], 1
    %3985 = vsyncpa [#allocation5], 1

</llo_original>
